<compile_context>
chip_gen: v5e
topology: v5e:2x2
jax: 0.10.0
libtpu: 0.0.40
codegen_flags: <defaults>
</compile_context>

<pallas_src>
import functools
import math

import numpy as np

import jax
import jax.numpy as jnp
from jax import lax
from jax.experimental import pallas as pl
from jax.experimental.pallas import tpu as pltpu

EPS = 1e-5                         # nn.BatchNorm default eps
_MXU_DTYPE = jnp.bfloat16          # matmul operand dtype (f32 accumulation)


# ---------------------------------------------------------------------------
# per-chip sizing
# ---------------------------------------------------------------------------
@functools.lru_cache(maxsize=None)
def _chip_defaults():
    """(vmem_limit_bytes, default_block_rows) chosen from the local TPU."""
    try:
        cap = int(pltpu.get_tpu_info().vmem_capacity_bytes)
    except Exception:
        cap = 64 * 1024 * 1024                      # conservative (v7x-sized)
    if cap >= 100 * 1024 * 1024:                    # v5e / v6e: 128 MiB VMEM
        return 96 * 1024 * 1024, 2048
    return 48 * 1024 * 1024, 1024                   # v7x: 64 MiB VMEM


def _compiler_params(semantics):
    return pltpu.CompilerParams(dimension_semantics=semantics,
                                vmem_limit_bytes=_chip_defaults()[0])


# ---------------------------------------------------------------------------
# blocking helpers (never fall back to one giant block)
# ---------------------------------------------------------------------------
def _item_blocking(n_items, rows_per_item, target_rows):
    """Return (items_per_block, padded_n_items).

    items_per_block * rows_per_item is a multiple of 8 and <= target_rows when
    possible; padded_n_items % items_per_block == 0 (pad with zero items)."""
    base = 8 // math.gcd(rows_per_item, 8)          # min items so rows % 8 == 0
    max_c = max(base, (target_rows // (base * rows_per_item)) * base)
    # Prefer an exact divisor of n_items (no padding needed).
    for c in range(min(max_c, n_items), 0, -1):
        if c % base == 0 and n_items % c == 0:
            return c, n_items
    # Otherwise pad n_items up with whole zero items.
    c = min(max_c, base * ((n_items + base - 1) // base))
    return c, ((n_items + c - 1) // c) * c


# ---------------------------------------------------------------------------
# BatchNorm batch statistics: tiled per-channel sum / sum-of-squares reduction
# ---------------------------------------------------------------------------
def _bn_stats_kernel(x_ref, sum_ref, sq_ref):
    @pl.when(pl.program_id(0) == 0)
    def _init():
        sum_ref[...] = jnp.zeros_like(sum_ref)
        sq_ref[...] = jnp.zeros_like(sq_ref)

    x = x_ref[...].astype(jnp.float32)
    sum_ref[...] += jnp.sum(x, axis=0, keepdims=True)
    sq_ref[...] += jnp.sum(x * x, axis=0, keepdims=True)


def bn_stats_pallas(x_rows, *, block_rows):
    M, C = x_rows.shape
    tm = max(8, (min(block_rows, M) // 8) * 8)      # block rows, multiple of 8
    m_pad = pl.cdiv(M, tm) * tm
    if m_pad != M:                                  # zero rows are sum-safe
        x_rows = jnp.pad(x_rows, ((0, m_pad - M), (0, 0)))
    return pl.pallas_call(
        _bn_stats_kernel,
        out_shape=(jax.ShapeDtypeStruct((1, C), jnp.float32),
                   jax.ShapeDtypeStruct((1, C), jnp.float32)),
        grid=(m_pad // tm,),
        in_specs=[pl.BlockSpec((tm, C), lambda i: (i, 0))],
        out_specs=(pl.BlockSpec((1, C), lambda i: (0, 0)),
                   pl.BlockSpec((1, C), lambda i: (0, 0))),
        compiler_params=_compiler_params(("arbitrary",)),
    )(x_rows)


def _fold_bn(s, ss, count, gamma, beta):
    # TODO(synk): single-pass E[x^2]-E[x]^2 loses precision for huge row
    # counts; a per-tile Welford combine would be more robust.
    mean = s / count
    var = jnp.maximum(ss / count - mean * mean, 0.0)   # biased var (training)
    scale = gamma.reshape(1, -1) * lax.rsqrt(var + EPS)
    shift = beta.reshape(1, -1) - mean * scale
    return scale, shift                                 # (1, C) each


# ---------------------------------------------------------------------------
# Fused (BatchNorm -> zero-padded grouped conv) kernel.
# One bf16 MXU matmul per block:
#   [ rolled+masked taps | masks+ones ] @ [ scale-folded tap weights ; ws/bias ]
# ---------------------------------------------------------------------------
def _grouped_conv_kernel(x_ref, w_ref, m_ref, o_ref, xt_ref, *, taps, C, mlanes):
    # x_ref : (rblk, C)               raw activation rows (whole items)
    # w_ref : (n_taps*C + mlanes, C)  stacked bf16 weights (+ shift/bias rows)
    # m_ref : (rblk, mlanes)          f32 tap-validity masks, col n_taps == 1.0
    # o_ref : (rblk, C)               output rows
    # xt_ref: (rblk, n_taps*C+mlanes) bf16 scratch = concatenated matmul LHS
    x = x_ref[...]
    n_taps = len(taps)
    for k, (delta, shift) in enumerate(taps):            # static unroll
        if delta == 0:
            xs = x                                        # centre tap: always valid
        else:
            xs = pltpu.roll(x, shift, 0) * m_ref[:, k:k + 1]   # XLU roll + mask
        xt_ref[:, k * C:(k + 1) * C] = xs.astype(xt_ref.dtype)
    # mask / ones block drives the folded (BN-shift + conv-bias) field
    xt_ref[:, n_taps * C:n_taps * C + mlanes] = m_ref[...].astype(xt_ref.dtype)
    o_ref[...] = jnp.dot(xt_ref[...], w_ref[...],
                         preferred_element_type=jnp.float32).astype(o_ref.dtype)


def grouped_conv_pallas(x_rows, w_full, bias, scale, shift, *, item_shape,
                        block_rows):
    """Fused BN + zero-padded grouped conv over channels-last rows.

    x_rows     : (n_items * rows_per_item, C) RAW activation, item-major rows.
    w_full     : dense block-diagonal weight, (K,K,Cin,Cout) or (K,Cin,Cout).
    bias       : (C,) conv bias.
    scale/shift: (1, C) BatchNorm affine (y = scale*x + shift), folded here.
    item_shape : (H, W) for conv2d, (T,) for conv1d.
    """
    Rtot, C = x_rows.shape
    rows_per_item = math.prod(item_shape)
    n_items = Rtot // rows_per_item
    K = w_full.shape[0]
    P = (K - 1) // 2

    # --- taps + per-item validity masks (trace-time numpy) ---
    if len(item_shape) == 2:                              # conv2d
        H, W = item_shape
        offs = [(kh - P, kw - P) for kh in range(K) for kw in range(K)]
        deltas = [dh * W + dw for dh, dw in offs]
        hh, ww = np.meshgrid(np.arange(H), np.arange(W), indexing="ij")
        valid = [((hh + dh >= 0) & (hh + dh < H) &
                  (ww + dw >= 0) & (ww + dw < W)).reshape(-1) for dh, dw in offs]
        w_taps = w_full.reshape(K * K, C, C)
    else:                                                 # conv1d
        (T,) = item_shape
        deltas = [k - P for k in range(K)]
        tt = np.arange(T)
        valid = [((tt + d >= 0) & (tt + d < T)) for d in deltas]
        w_taps = w_full
    n_taps = len(deltas)
    mlanes = ((n_taps + 1 + 7) // 8) * 8                  # masks + ones column

    # --- robust item blocking (pad with zero items if needed) ---
    items_pb, n_items_pad = _item_blocking(n_items, rows_per_item, block_rows)
    rblk = items_pb * rows_per_item
    r_pad = n_items_pad * rows_per_item
    if r_pad != Rtot:
        x_rows = jnp.pad(x_rows, ((0, r_pad - Rtot), (0, 0)))

    # --- lane-dense per-block mask (+ ones column for the bias field) ---
    mask_item = np.zeros((rows_per_item, mlanes), np.float32)
    for k, v in enumerate(valid):
        mask_item[:, k] = v.astype(np.float32)
    mask_item[:, n_taps] = 1.0
    mask_blk = jnp.asarray(np.tile(mask_item, (items_pb, 1)))    # (rblk, mlanes)

    # --- fold BN into the single stacked weight matrix ---
    #   conv(zero_pad(scale*x + shift)) = conv_{w*scale}(x, masked taps)
    #                                     + Sum_t valid_t * (w_t^T shift) + bias
    hp = lax.Precision.HIGHEST
    w_scaled = (w_taps * scale.reshape(1, C, 1)).reshape(n_taps * C, C)
    ws = jnp.einsum("tio,i->to", w_taps, shift.reshape(C), precision=hp)
    ws_pad = jnp.zeros((mlanes, C), jnp.float32)
    ws_pad = ws_pad.at[:n_taps, :].set(ws).at[n_taps, :].set(bias)
    w_cat = jnp.concatenate([w_scaled, ws_pad], axis=0).astype(_MXU_DTYPE)

    taps = tuple((int(d), int((-d) % rblk)) for d in deltas)
    D = n_taps * C + mlanes

    out = pl.pallas_call(
        functools.partial(_grouped_conv_kernel, taps=taps, C=C, mlanes=mlanes),
        out_shape=jax.ShapeDtypeStruct((r_pad, C), x_rows.dtype),
        grid=(r_pad // rblk,),
        in_specs=[pl.BlockSpec((rblk, C), lambda i: (i, 0)),
                  pl.BlockSpec((D, C), lambda i: (0, 0)),
                  pl.BlockSpec((rblk, mlanes), lambda i: (0, 0))],
        out_specs=pl.BlockSpec((rblk, C), lambda i: (i, 0)),
        scratch_shapes=[pltpu.VMEM((rblk, D), _MXU_DTYPE)],
        compiler_params=_compiler_params(("parallel",)),
    )(x_rows, w_cat, mask_blk)
    return out[:Rtot] if r_pad != Rtot else out


# ---------------------------------------------------------------------------
# Parameter setup: expand PyTorch grouped conv weights to dense block-diagonal
# weights in (K[, K], Cin, Cout) layout (glue, done once).
# ---------------------------------------------------------------------------
def expand_grouped_conv2d_weight(w_g, heads):
    C, cpg, K, _ = w_g.shape                      # (C_out, C_in//heads, K, K)
    w_full = jnp.zeros((C, C, K, K), w_g.dtype)   # (co, ci, kh, kw)
    for g in range(heads):
        sl = slice(g * cpg, (g + 1) * cpg)
        w_full = w_full.at[sl, sl].set(w_g[sl])
    return jnp.transpose(w_full, (2, 3, 1, 0))    # (K, K, Cin, Cout)


def expand_grouped_conv1d_weight(w_g, heads):
    C, cpg, K = w_g.shape                         # (C_out, C_in//heads, K)
    w_full = jnp.zeros((C, C, K), w_g.dtype)      # (co, ci, k)
    for g in range(heads):
        sl = slice(g * cpg, (g + 1) * cpg)
        w_full = w_full.at[sl, sl].set(w_g[sl])
    return jnp.transpose(w_full, (2, 1, 0))       # (K, Cin, Cout)


def init_params(key, dim, heads, kernel=3):
    cpg = dim // heads
    k0, k1, k2, k3 = jax.random.split(key, 4)
    b2 = 1.0 / float(cpg * kernel * kernel) ** 0.5
    b1 = 1.0 / float(cpg * kernel) ** 0.5
    w2d_g = jax.random.uniform(k0, (dim, cpg, kernel, kernel), jnp.float32, -b2, b2)
    b2d = jax.random.uniform(k1, (dim,), jnp.float32, -b2, b2)
    w1d_g = jax.random.uniform(k2, (dim, cpg, kernel), jnp.float32, -b1, b1)
    b1d = jax.random.uniform(k3, (dim,), jnp.float32, -b1, b1)
    return dict(
        gamma2d=jnp.ones((dim,), jnp.float32), beta2d=jnp.zeros((dim,), jnp.float32),
        gamma1d=jnp.ones((dim,), jnp.float32), beta1d=jnp.zeros((dim,), jnp.float32),
        w2d_g=w2d_g, b2d=b2d, w1d_g=w1d_g, b1d=b1d,
        w2d_full=expand_grouped_conv2d_weight(w2d_g, heads),
        w1d_full=expand_grouped_conv1d_weight(w1d_g, heads),
    )


# ---------------------------------------------------------------------------
# Forward pass matching DECOUPLED.forward (training-mode BatchNorm).
# ---------------------------------------------------------------------------
def decoupled_forward(x, params, *, block_rows=None):
    if block_rows is None:
        block_rows = _chip_defaults()[1]
    B, T, H, W, C = x.shape

    # ---- stage 1: x.view(B*T, C, H, W) -> BatchNorm2d -> grouped Conv2d ----
    n1 = B * T
    x2 = jnp.transpose(x.reshape(n1, C, H, W), (0, 2, 3, 1))    # channels-last
    x2_rows = x2.reshape(n1 * H * W, C)
    s1, ss1 = bn_stats_pallas(x2_rows, block_rows=block_rows)
    scale1, shift1 = _fold_bn(s1, ss1, n1 * H * W,
                              params["gamma2d"], params["beta2d"])
    y2_rows = grouped_conv_pallas(x2_rows, params["w2d_full"], params["b2d"],
                                  scale1, shift1, item_shape=(H, W),
                                  block_rows=block_rows)

    # ---- x.view(B*H*W, C, T): raw row-major reinterpretation of the NCHW
    #      conv2d output (exactly torch's .view), then channels-last. ----
    n2 = B * H * W
    y2_nchw = jnp.transpose(y2_rows.reshape(n1, H, W, C), (0, 3, 1, 2))
    x1 = jnp.transpose(y2_nchw.reshape(n2, C, T), (0, 2, 1))    # channels-last
    x1_rows = x1.reshape(n2 * T, C)
    s2, ss2 = bn_stats_pallas(x1_rows, block_rows=block_rows)
    scale2, shift2 = _fold_bn(s2, ss2, n2 * T,
                              params["gamma1d"], params["beta1d"])
    y1_rows = grouped_conv_pallas(x1_rows, params["w1d_full"], params["b1d"],
                                  scale2, shift2, item_shape=(T,),
                                  block_rows=block_rows)

    # ---- x.view(B, T, H, W, C) of the NCT-contiguous conv1d output ----
    y1_nct = jnp.transpose(y1_rows.reshape(n2, T, C), (0, 2, 1))
    return y1_nct.reshape(B, T, H, W, C)


# ---------------------------------------------------------------------------
# Pure-XLA reference (mirrors the PyTorch module) for a correctness check.
# ---------------------------------------------------------------------------
def reference_forward(x, params, heads):
    B, T, H, W, C = x.shape
    K = params["w2d_g"].shape[-1]
    P = K // 2
    hp = lax.Precision.HIGHEST

    x2 = x.reshape(B * T, C, H, W)
    mean = jnp.mean(x2, axis=(0, 2, 3), keepdims=True)
    var = jnp.var(x2, axis=(0, 2, 3), keepdims=True)
    x2 = ((x2 - mean) * lax.rsqrt(var + EPS)
          * params["gamma2d"].reshape(1, C, 1, 1)
          + params["beta2d"].reshape(1, C, 1, 1))
    y2 = lax.conv_general_dilated(
        x2, params["w2d_g"], (1, 1), [(P, P), (P, P)],
        dimension_numbers=("NCHW", "OIHW", "NCHW"),
        feature_group_count=heads, precision=hp)
    y2 = y2 + params["b2d"].reshape(1, C, 1, 1)

    x1 = y2.reshape(B * H * W, C, T)
    mean1 = jnp.mean(x1, axis=(0, 2), keepdims=True)
    var1 = jnp.var(x1, axis=(0, 2), keepdims=True)
    x1 = ((x1 - mean1) * lax.rsqrt(var1 + EPS)
          * params["gamma1d"].reshape(1, C, 1)
          + params["beta1d"].reshape(1, C, 1))
    y1 = lax.conv_general_dilated(
        x1[:, :, :, None], params["w1d_g"][:, :, :, None], (1, 1),
        [(P, P), (0, 0)], dimension_numbers=("NCHW", "OIHW", "NCHW"),
        feature_group_count=heads, precision=hp)
    y1 = y1[:, :, :, 0] + params["b1d"].reshape(1, C, 1)
    return y1.reshape(B, T, H, W, C)


if __name__ == "__main__":
    B, T, H, W = 2, 4, 8, 8
    dim, heads, kernel = 8, 2, 3

    key = jax.random.PRNGKey(0)
    kx, kp = jax.random.split(key)
    x = jax.random.normal(kx, (B, T, H, W, dim), dtype=jnp.float32)
    params = init_params(kp, dim, heads, kernel)

    # block_rows=256 keeps every Pallas grid > 1 step at this toy size so the
    # pipelined / cross-tile paths are actually exercised.
    fwd = jax.jit(functools.partial(decoupled_forward, block_rows=256))
    out = jax.block_until_ready(fwd(x, params))
    assert out.shape == (B, T, H, W, dim)
    assert out.dtype == jnp.float32

    ref = reference_forward(x, params, heads)
    err = float(jnp.max(jnp.abs(out - ref)))
    # bf16 MXU operands with f32 accumulation -> slightly looser tolerance
    # than the pure-f32 path.
    assert err < 5e-2, f"mismatch vs reference: max abs err = {err}"
    print("KERNEL_OK")
</pallas_src>

<mosaic_0001>
module attributes {stable_mosaic.version = 11 : i64} {
  func.func @_bn_stats_kernel(%arg0: i32, %arg1: memref<256x8xf32, #tpu.memory_space<vmem>>, %arg2: memref<1x8xf32, #tpu.memory_space<vmem>>, %arg3: memref<1x8xf32, #tpu.memory_space<vmem>>) attributes {dimension_semantics = [#tpu.dimension_semantics<arbitrary>], iteration_bounds = array<i64: 2>, scalar_prefetch = 0 : i64, scratch_operands = 0 : i64, tpu.core_type = #tpu.core_type<tc>, window_params = [{transform_indices = @transform_0, window_bounds = array<i64: 256, 8>}, {pipeline_mode = #tpu.pipeline_mode<synchronous>, transform_indices = @transform_1, window_bounds = array<i64: 1, 8>}, {pipeline_mode = #tpu.pipeline_mode<synchronous>, transform_indices = @transform_2, window_bounds = array<i64: 1, 8>}]} {
    %c0_i32 = arith.constant 0 : i32
    %0 = arith.cmpi eq, %arg0, %c0_i32 : i32
    %1 = arith.extui %0 : i1 to i32
    %c0_i32_0 = arith.constant 0 : i32
    %2 = arith.cmpi ne, %1, %c0_i32_0 : i32
    scf.if %2 {
      %cst_11 = arith.constant 0.000000e+00 : f32
      %15 = vector.broadcast %cst_11 : f32 to vector<1x8xf32>
      %c0_12 = arith.constant 0 : index
      %c0_13 = arith.constant 0 : index
      %16 = vector.load %arg2[%c0_12, %c0_13] : memref<1x8xf32, #tpu.memory_space<vmem>>, vector<1x8xf32>
      tpu.vector_store %arg2[%c0_12, %c0_13], %15 {strides = array<i32>} : memref<1x8xf32, #tpu.memory_space<vmem>>, vector<1x8xf32>,
      %cst_14 = arith.constant 0.000000e+00 : f32
      %17 = vector.broadcast %cst_14 : f32 to vector<1x8xf32>
      %c0_15 = arith.constant 0 : index
      %c0_16 = arith.constant 0 : index
      %18 = vector.load %arg3[%c0_15, %c0_16] : memref<1x8xf32, #tpu.memory_space<vmem>>, vector<1x8xf32>
      tpu.vector_store %arg3[%c0_15, %c0_16], %17 {strides = array<i32>} : memref<1x8xf32, #tpu.memory_space<vmem>>, vector<1x8xf32>,
    } else {
    }
    %c0 = arith.constant 0 : index
    %c0_1 = arith.constant 0 : index
    %3 = vector.load %arg1[%c0, %c0_1] : memref<256x8xf32, #tpu.memory_space<vmem>>, vector<256x8xf32>
    %c0_2 = arith.constant 0 : index
    %c0_3 = arith.constant 0 : index
    %4 = vector.load %arg2[%c0_2, %c0_3] : memref<1x8xf32, #tpu.memory_space<vmem>>, vector<1x8xf32>
    %cst = arith.constant dense<0.000000e+00> : vector<8xf32>
    %5 = vector.multi_reduction <add>, %3, %cst [0] : vector<256x8xf32> to vector<8xf32>
    %6 = vector.shape_cast %5 : vector<8xf32> to vector<1x8xf32>
    %7 = arith.addf %4, %6 : vector<1x8xf32>
    %c0_4 = arith.constant 0 : index
    %c0_5 = arith.constant 0 : index
    %8 = vector.load %arg2[%c0_4, %c0_5] : memref<1x8xf32, #tpu.memory_space<vmem>>, vector<1x8xf32>
    tpu.vector_store %arg2[%c0_4, %c0_5], %7 {strides = array<i32>} : memref<1x8xf32, #tpu.memory_space<vmem>>, vector<1x8xf32>,
    %c0_6 = arith.constant 0 : index
    %c0_7 = arith.constant 0 : index
    %9 = vector.load %arg3[%c0_6, %c0_7] : memref<1x8xf32, #tpu.memory_space<vmem>>, vector<1x8xf32>
    %10 = arith.mulf %3, %3 : vector<256x8xf32>
    %cst_8 = arith.constant dense<0.000000e+00> : vector<8xf32>
    %11 = vector.multi_reduction <add>, %10, %cst_8 [0] : vector<256x8xf32> to vector<8xf32>
    %12 = vector.shape_cast %11 : vector<8xf32> to vector<1x8xf32>
    %13 = arith.addf %9, %12 : vector<1x8xf32>
    %c0_9 = arith.constant 0 : index
    %c0_10 = arith.constant 0 : index
    %14 = vector.load %arg3[%c0_9, %c0_10] : memref<1x8xf32, #tpu.memory_space<vmem>>, vector<1x8xf32>
    tpu.vector_store %arg3[%c0_9, %c0_10], %13 {strides = array<i32>} : memref<1x8xf32, #tpu.memory_space<vmem>>, vector<1x8xf32>,
    return
  }
  func.func @transform_0(%arg0: i32) -> (i32, i32) {
    %c0_i32 = arith.constant 0 : i32
    %c0_i32_0 = arith.constant 0 : i32
    return %arg0, %c0_i32 : i32, i32
  }
  func.func @transform_1(%arg0: i32) -> (i32, i32) {
    %c0_i32 = arith.constant 0 : i32
    %c0_i32_0 = arith.constant 0 : i32
    %c0_i32_1 = arith.constant 0 : i32
    return %c0_i32, %c0_i32_0 : i32, i32
  }
  func.func @transform_2(%arg0: i32) -> (i32, i32) {
    %c0_i32 = arith.constant 0 : i32
    %c0_i32_0 = arith.constant 0 : i32
    %c0_i32_1 = arith.constant 0 : i32
    return %c0_i32, %c0_i32_0 : i32, i32
  }
}

module attributes {stable_mosaic.version = 11 : i64} {
  func.func @_grouped_conv_kernel(%arg0: i32, %arg1: memref<256x8xf32, #tpu.memory_space<vmem>>, %arg2: memref<88x8xbf16, #tpu.memory_space<vmem>>, %arg3: memref<256x16xf32, #tpu.memory_space<vmem>>, %arg4: memref<256x8xf32, #tpu.memory_space<vmem>>, %arg5: memref<256x88xbf16, #tpu.memory_space<vmem>>) attributes {dimension_semantics = [#tpu.dimension_semantics<parallel>], iteration_bounds = array<i64: 2>, scalar_prefetch = 0 : i64, scratch_operands = 1 : i64, tpu.core_type = #tpu.core_type<tc>, window_params = [{transform_indices = @transform_0, window_bounds = array<i64: 256, 8>}, {pipeline_mode = #tpu.pipeline_mode<synchronous>, transform_indices = @transform_1, window_bounds = array<i64: 88, 8>}, {pipeline_mode = #tpu.pipeline_mode<synchronous>, transform_indices = @transform_2, window_bounds = array<i64: 256, 16>}, {transform_indices = @transform_3, window_bounds = array<i64: 256, 8>}]} {
    %c0 = arith.constant 0 : index
    %c0_0 = arith.constant 0 : index
    %0 = vector.load %arg1[%c0, %c0_0] : memref<256x8xf32, #tpu.memory_space<vmem>>, vector<256x8xf32>
    %c9_i32 = arith.constant 9 : i32
    %1 = tpu.dynamic_rotate %0 by %c9_i32 dim 0 : vector<256x8xf32>, i32 -> vector<256x8xf32>
    %c0_1 = arith.constant 0 : index
    %c0_2 = arith.constant 0 : index
    %2 = vector.load %arg3[%c0_1, %c0_2] : memref<256x16xf32, #tpu.memory_space<vmem>>, vector<256x1xf32>
    %3 = vector.broadcast %2 : vector<256x1xf32> to vector<256x8xf32>
    %4 = arith.mulf %1, %3 : vector<256x8xf32>
    %5 = arith.truncf %4 : vector<256x8xf32> to vector<256x8xbf16>
    %c0_3 = arith.constant 0 : index
    %c0_4 = arith.constant 0 : index
    %6 = vector.load %arg5[%c0_3, %c0_4] : memref<256x88xbf16, #tpu.memory_space<vmem>>, vector<256x8xbf16>
    tpu.vector_store %arg5[%c0_3, %c0_4], %5 {strides = array<i32>} : memref<256x88xbf16, #tpu.memory_space<vmem>>, vector<256x8xbf16>,
    %c8_i32 = arith.constant 8 : i32
    %7 = tpu.dynamic_rotate %0 by %c8_i32 dim 0 : vector<256x8xf32>, i32 -> vector<256x8xf32>
    %c0_5 = arith.constant 0 : index
    %c1 = arith.constant 1 : index
    %8 = vector.load %arg3[%c0_5, %c1] : memref<256x16xf32, #tpu.memory_space<vmem>>, vector<256x1xf32>
    %9 = vector.broadcast %8 : vector<256x1xf32> to vector<256x8xf32>
    %10 = arith.mulf %7, %9 : vector<256x8xf32>
    %11 = arith.truncf %10 : vector<256x8xf32> to vector<256x8xbf16>
    %c0_6 = arith.constant 0 : index
    %c8 = arith.constant 8 : index
    %12 = vector.load %arg5[%c0_6, %c8] : memref<256x88xbf16, #tpu.memory_space<vmem>>, vector<256x8xbf16>
    tpu.vector_store %arg5[%c0_6, %c8], %11 {strides = array<i32>} : memref<256x88xbf16, #tpu.memory_space<vmem>>, vector<256x8xbf16>,
    %c7_i32 = arith.constant 7 : i32
    %13 = tpu.dynamic_rotate %0 by %c7_i32 dim 0 : vector<256x8xf32>, i32 -> vector<256x8xf32>
    %c0_7 = arith.constant 0 : index
    %c2 = arith.constant 2 : index
    %14 = vector.load %arg3[%c0_7, %c2] : memref<256x16xf32, #tpu.memory_space<vmem>>, vector<256x1xf32>
    %15 = vector.broadcast %14 : vector<256x1xf32> to vector<256x8xf32>
    %16 = arith.mulf %13, %15 : vector<256x8xf32>
    %17 = arith.truncf %16 : vector<256x8xf32> to vector<256x8xbf16>
    %c0_8 = arith.constant 0 : index
    %c16 = arith.constant 16 : index
    %18 = vector.load %arg5[%c0_8, %c16] : memref<256x88xbf16, #tpu.memory_space<vmem>>, vector<256x8xbf16>
    tpu.vector_store %arg5[%c0_8, %c16], %17 {strides = array<i32>} : memref<256x88xbf16, #tpu.memory_space<vmem>>, vector<256x8xbf16>,
    %c1_i32 = arith.constant 1 : i32
    %19 = tpu.dynamic_rotate %0 by %c1_i32 dim 0 : vector<256x8xf32>, i32 -> vector<256x8xf32>
    %c0_9 = arith.constant 0 : index
    %c3 = arith.constant 3 : index
    %20 = vector.load %arg3[%c0_9, %c3] : memref<256x16xf32, #tpu.memory_space<vmem>>, vector<256x1xf32>
    %21 = vector.broadcast %20 : vector<256x1xf32> to vector<256x8xf32>
    %22 = arith.mulf %19, %21 : vector<256x8xf32>
    %23 = arith.truncf %22 : vector<256x8xf32> to vector<256x8xbf16>
    %c0_10 = arith.constant 0 : index
    %c24 = arith.constant 24 : index
    %24 = vector.load %arg5[%c0_10, %c24] : memref<256x88xbf16, #tpu.memory_space<vmem>>, vector<256x8xbf16>
    tpu.vector_store %arg5[%c0_10, %c24], %23 {strides = array<i32>} : memref<256x88xbf16, #tpu.memory_space<vmem>>, vector<256x8xbf16>,
    %25 = arith.truncf %0 : vector<256x8xf32> to vector<256x8xbf16>
    %c0_11 = arith.constant 0 : index
    %c32 = arith.constant 32 : index
    %26 = vector.load %arg5[%c0_11, %c32] : memref<256x88xbf16, #tpu.memory_space<vmem>>, vector<256x8xbf16>
    tpu.vector_store %arg5[%c0_11, %c32], %25 {strides = array<i32>} : memref<256x88xbf16, #tpu.memory_space<vmem>>, vector<256x8xbf16>,
    %c255_i32 = arith.constant 255 : i32
    %27 = tpu.dynamic_rotate %0 by %c255_i32 dim 0 : vector<256x8xf32>, i32 -> vector<256x8xf32>
    %c0_12 = arith.constant 0 : index
    %c5 = arith.constant 5 : index
    %28 = vector.load %arg3[%c0_12, %c5] : memref<256x16xf32, #tpu.memory_space<vmem>>, vector<256x1xf32>
    %29 = vector.broadcast %28 : vector<256x1xf32> to vector<256x8xf32>
    %30 = arith.mulf %27, %29 : vector<256x8xf32>
    %31 = arith.truncf %30 : vector<256x8xf32> to vector<256x8xbf16>
    %c0_13 = arith.constant 0 : index
    %c40 = arith.constant 40 : index
    %32 = vector.load %arg5[%c0_13, %c40] : memref<256x88xbf16, #tpu.memory_space<vmem>>, vector<256x8xbf16>
    tpu.vector_store %arg5[%c0_13, %c40], %31 {strides = array<i32>} : memref<256x88xbf16, #tpu.memory_space<vmem>>, vector<256x8xbf16>,
    %c249_i32 = arith.constant 249 : i32
    %33 = tpu.dynamic_rotate %0 by %c249_i32 dim 0 : vector<256x8xf32>, i32 -> vector<256x8xf32>
    %c0_14 = arith.constant 0 : index
    %c6 = arith.constant 6 : index
    %34 = vector.load %arg3[%c0_14, %c6] : memref<256x16xf32, #tpu.memory_space<vmem>>, vector<256x1xf32>
    %35 = vector.broadcast %34 : vector<256x1xf32> to vector<256x8xf32>
    %36 = arith.mulf %33, %35 : vector<256x8xf32>
    %37 = arith.truncf %36 : vector<256x8xf32> to vector<256x8xbf16>
    %c0_15 = arith.constant 0 : index
    %c48 = arith.constant 48 : index
    %38 = vector.load %arg5[%c0_15, %c48] : memref<256x88xbf16, #tpu.memory_space<vmem>>, vector<256x8xbf16>
    tpu.vector_store %arg5[%c0_15, %c48], %37 {strides = array<i32>} : memref<256x88xbf16, #tpu.memory_space<vmem>>, vector<256x8xbf16>,
    %c248_i32 = arith.constant 248 : i32
    %39 = tpu.dynamic_rotate %0 by %c248_i32 dim 0 : vector<256x8xf32>, i32 -> vector<256x8xf32>
    %c0_16 = arith.constant 0 : index
    %c7 = arith.constant 7 : index
    %40 = vector.load %arg3[%c0_16, %c7] : memref<256x16xf32, #tpu.memory_space<vmem>>, vector<256x1xf32>
    %41 = vector.broadcast %40 : vector<256x1xf32> to vector<256x8xf32>
    %42 = arith.mulf %39, %41 : vector<256x8xf32>
    %43 = arith.truncf %42 : vector<256x8xf32> to vector<256x8xbf16>
    %c0_17 = arith.constant 0 : index
    %c56 = arith.constant 56 : index
    %44 = vector.load %arg5[%c0_17, %c56] : memref<256x88xbf16, #tpu.memory_space<vmem>>, vector<256x8xbf16>
    tpu.vector_store %arg5[%c0_17, %c56], %43 {strides = array<i32>} : memref<256x88xbf16, #tpu.memory_space<vmem>>, vector<256x8xbf16>,
    %c247_i32 = arith.constant 247 : i32
    %45 = tpu.dynamic_rotate %0 by %c247_i32 dim 0 : vector<256x8xf32>, i32 -> vector<256x8xf32>
    %c0_18 = arith.constant 0 : index
    %c8_19 = arith.constant 8 : index
    %46 = vector.load %arg3[%c0_18, %c8_19] : memref<256x16xf32, #tpu.memory_space<vmem>>, vector<256x1xf32>
    %47 = vector.broadcast %46 : vector<256x1xf32> to vector<256x8xf32>
    %48 = arith.mulf %45, %47 : vector<256x8xf32>
    %49 = arith.truncf %48 : vector<256x8xf32> to vector<256x8xbf16>
    %c0_20 = arith.constant 0 : index
    %c64 = arith.constant 64 : index
    %50 = vector.load %arg5[%c0_20, %c64] : memref<256x88xbf16, #tpu.memory_space<vmem>>, vector<256x8xbf16>
    tpu.vector_store %arg5[%c0_20, %c64], %49 {strides = array<i32>} : memref<256x88xbf16, #tpu.memory_space<vmem>>, vector<256x8xbf16>,
    %c0_21 = arith.constant 0 : index
    %c0_22 = arith.constant 0 : index
    %51 = vector.load %arg3[%c0_21, %c0_22] : memref<256x16xf32, #tpu.memory_space<vmem>>, vector<256x16xf32>
    %52 = arith.truncf %51 : vector<256x16xf32> to vector<256x16xbf16>
    %c0_23 = arith.constant 0 : index
    %c72 = arith.constant 72 : index
    %53 = vector.load %arg5[%c0_23, %c72] : memref<256x88xbf16, #tpu.memory_space<vmem>>, vector<256x16xbf16>
    tpu.vector_store %arg5[%c0_23, %c72], %52 {strides = array<i32>} : memref<256x88xbf16, #tpu.memory_space<vmem>>, vector<256x16xbf16>,
    %c0_24 = arith.constant 0 : index
    %c0_25 = arith.constant 0 : index
    %54 = vector.load %arg5[%c0_24, %c0_25] : memref<256x88xbf16, #tpu.memory_space<vmem>>, vector<256x88xbf16>
    %c0_26 = arith.constant 0 : index
    %c0_27 = arith.constant 0 : index
    %55 = vector.load %arg2[%c0_26, %c0_27] : memref<88x8xbf16, #tpu.memory_space<vmem>>, vector<88x8xbf16>
    %cst = arith.constant dense<0.000000e+00> : vector<256x8xf32>
    %56 = tpu.matmul %54, %55, %cst {dimension_numbers = #tpu.dot_dimension_numbers<[1], [0], [0], [1], [0, 0, 1, 1], [], []>} : vector<256x88xbf16>, vector<88x8xbf16>, vector<256x8xf32> -> vector<256x8xf32>
    %c0_28 = arith.constant 0 : index
    %c0_29 = arith.constant 0 : index
    %57 = vector.load %arg4[%c0_28, %c0_29] : memref<256x8xf32, #tpu.memory_space<vmem>>, vector<256x8xf32>
    tpu.vector_store %arg4[%c0_28, %c0_29], %56 {strides = array<i32>} : memref<256x8xf32, #tpu.memory_space<vmem>>, vector<256x8xf32>,
    return
  }
  func.func @transform_0(%arg0: i32) -> (i32, i32) {
    %c0_i32 = arith.constant 0 : i32
    %c0_i32_0 = arith.constant 0 : i32
    return %arg0, %c0_i32 : i32, i32
  }
  func.func @transform_1(%arg0: i32) -> (i32, i32) {
    %c0_i32 = arith.constant 0 : i32
    %c0_i32_0 = arith.constant 0 : i32
    %c0_i32_1 = arith.constant 0 : i32
    return %c0_i32, %c0_i32_0 : i32, i32
  }
  func.func @transform_2(%arg0: i32) -> (i32, i32) {
    %c0_i32 = arith.constant 0 : i32
    %c0_i32_0 = arith.constant 0 : i32
    %c0_i32_1 = arith.constant 0 : i32
    return %c0_i32, %c0_i32_0 : i32, i32
  }
  func.func @transform_3(%arg0: i32) -> (i32, i32) {
    %c0_i32 = arith.constant 0 : i32
    %c0_i32_0 = arith.constant 0 : i32
    return %arg0, %c0_i32 : i32, i32
  }
}

module attributes {stable_mosaic.version = 11 : i64} {
  func.func @_grouped_conv_kernel(%arg0: i32, %arg1: memref<256x8xf32, #tpu.memory_space<vmem>>, %arg2: memref<32x8xbf16, #tpu.memory_space<vmem>>, %arg3: memref<256x8xf32, #tpu.memory_space<vmem>>, %arg4: memref<256x8xf32, #tpu.memory_space<vmem>>, %arg5: memref<256x32xbf16, #tpu.memory_space<vmem>>) attributes {dimension_semantics = [#tpu.dimension_semantics<parallel>], iteration_bounds = array<i64: 2>, scalar_prefetch = 0 : i64, scratch_operands = 1 : i64, tpu.core_type = #tpu.core_type<tc>, window_params = [{transform_indices = @transform_0, window_bounds = array<i64: 256, 8>}, {pipeline_mode = #tpu.pipeline_mode<synchronous>, transform_indices = @transform_1, window_bounds = array<i64: 32, 8>}, {pipeline_mode = #tpu.pipeline_mode<synchronous>, transform_indices = @transform_2, window_bounds = array<i64: 256, 8>}, {transform_indices = @transform_3, window_bounds = array<i64: 256, 8>}]} {
    %c0 = arith.constant 0 : index
    %c0_0 = arith.constant 0 : index
    %0 = vector.load %arg1[%c0, %c0_0] : memref<256x8xf32, #tpu.memory_space<vmem>>, vector<256x8xf32>
    %c1_i32 = arith.constant 1 : i32
    %1 = tpu.dynamic_rotate %0 by %c1_i32 dim 0 : vector<256x8xf32>, i32 -> vector<256x8xf32>
    %c0_1 = arith.constant 0 : index
    %c0_2 = arith.constant 0 : index
    %2 = vector.load %arg3[%c0_1, %c0_2] : memref<256x8xf32, #tpu.memory_space<vmem>>, vector<256x1xf32>
    %3 = vector.broadcast %2 : vector<256x1xf32> to vector<256x8xf32>
    %4 = arith.mulf %1, %3 : vector<256x8xf32>
    %5 = arith.truncf %4 : vector<256x8xf32> to vector<256x8xbf16>
    %c0_3 = arith.constant 0 : index
    %c0_4 = arith.constant 0 : index
    %6 = vector.load %arg5[%c0_3, %c0_4] : memref<256x32xbf16, #tpu.memory_space<vmem>>, vector<256x8xbf16>
    tpu.vector_store %arg5[%c0_3, %c0_4], %5 {strides = array<i32>} : memref<256x32xbf16, #tpu.memory_space<vmem>>, vector<256x8xbf16>,
    %7 = arith.truncf %0 : vector<256x8xf32> to vector<256x8xbf16>
    %c0_5 = arith.constant 0 : index
    %c8 = arith.constant 8 : index
    %8 = vector.load %arg5[%c0_5, %c8] : memref<256x32xbf16, #tpu.memory_space<vmem>>, vector<256x8xbf16>
    tpu.vector_store %arg5[%c0_5, %c8], %7 {strides = array<i32>} : memref<256x32xbf16, #tpu.memory_space<vmem>>, vector<256x8xbf16>,
    %c255_i32 = arith.constant 255 : i32
    %9 = tpu.dynamic_rotate %0 by %c255_i32 dim 0 : vector<256x8xf32>, i32 -> vector<256x8xf32>
    %c0_6 = arith.constant 0 : index
    %c2 = arith.constant 2 : index
    %10 = vector.load %arg3[%c0_6, %c2] : memref<256x8xf32, #tpu.memory_space<vmem>>, vector<256x1xf32>
    %11 = vector.broadcast %10 : vector<256x1xf32> to vector<256x8xf32>
    %12 = arith.mulf %9, %11 : vector<256x8xf32>
    %13 = arith.truncf %12 : vector<256x8xf32> to vector<256x8xbf16>
    %c0_7 = arith.constant 0 : index
    %c16 = arith.constant 16 : index
    %14 = vector.load %arg5[%c0_7, %c16] : memref<256x32xbf16, #tpu.memory_space<vmem>>, vector<256x8xbf16>
    tpu.vector_store %arg5[%c0_7, %c16], %13 {strides = array<i32>} : memref<256x32xbf16, #tpu.memory_space<vmem>>, vector<256x8xbf16>,
    %c0_8 = arith.constant 0 : index
    %c0_9 = arith.constant 0 : index
    %15 = vector.load %arg3[%c0_8, %c0_9] : memref<256x8xf32, #tpu.memory_space<vmem>>, vector<256x8xf32>
    %16 = arith.truncf %15 : vector<256x8xf32> to vector<256x8xbf16>
    %c0_10 = arith.constant 0 : index
    %c24 = arith.constant 24 : index
    %17 = vector.load %arg5[%c0_10, %c24] : memref<256x32xbf16, #tpu.memory_space<vmem>>, vector<256x8xbf16>
    tpu.vector_store %arg5[%c0_10, %c24], %16 {strides = array<i32>} : memref<256x32xbf16, #tpu.memory_space<vmem>>, vector<256x8xbf16>,
    %c0_11 = arith.constant 0 : index
    %c0_12 = arith.constant 0 : index
    %18 = vector.load %arg5[%c0_11, %c0_12] : memref<256x32xbf16, #tpu.memory_space<vmem>>, vector<256x32xbf16>
    %c0_13 = arith.constant 0 : index
    %c0_14 = arith.constant 0 : index
    %19 = vector.load %arg2[%c0_13, %c0_14] : memref<32x8xbf16, #tpu.memory_space<vmem>>, vector<32x8xbf16>
    %cst = arith.constant dense<0.000000e+00> : vector<256x8xf32>
    %20 = tpu.matmul %18, %19, %cst {dimension_numbers = #tpu.dot_dimension_numbers<[1], [0], [0], [1], [0, 0, 1, 1], [], []>} : vector<256x32xbf16>, vector<32x8xbf16>, vector<256x8xf32> -> vector<256x8xf32>
    %c0_15 = arith.constant 0 : index
    %c0_16 = arith.constant 0 : index
    %21 = vector.load %arg4[%c0_15, %c0_16] : memref<256x8xf32, #tpu.memory_space<vmem>>, vector<256x8xf32>
    tpu.vector_store %arg4[%c0_15, %c0_16], %20 {strides = array<i32>} : memref<256x8xf32, #tpu.memory_space<vmem>>, vector<256x8xf32>,
    return
  }
  func.func @transform_0(%arg0: i32) -> (i32, i32) {
    %c0_i32 = arith.constant 0 : i32
    %c0_i32_0 = arith.constant 0 : i32
    return %arg0, %c0_i32 : i32, i32
  }
  func.func @transform_1(%arg0: i32) -> (i32, i32) {
    %c0_i32 = arith.constant 0 : i32
    %c0_i32_0 = arith.constant 0 : i32
    %c0_i32_1 = arith.constant 0 : i32
    return %c0_i32, %c0_i32_0 : i32, i32
  }
  func.func @transform_2(%arg0: i32) -> (i32, i32) {
    %c0_i32 = arith.constant 0 : i32
    %c0_i32_0 = arith.constant 0 : i32
    %c0_i32_1 = arith.constant 0 : i32
    return %c0_i32, %c0_i32_0 : i32, i32
  }
  func.func @transform_3(%arg0: i32) -> (i32, i32) {
    %c0_i32 = arith.constant 0 : i32
    %c0_i32_0 = arith.constant 0 : i32
    return %arg0, %c0_i32 : i32, i32
  }
}

</mosaic_0001>

<llo_original>
// kernel: decoupled_forward.4
$region0: #{decoupled_forward.4}
  #allocation0 [shape = 'u32[]', space=smem, size = 0x4, offset = 0x4, fixed_abs, tag = 'smem constant byte address 0x4 - core index']
  #allocation1 [shape = 'u32[72,128]{1,0:T(1,128)}', space=vmem, size = 0x9000, scoped, tag = 'internal scratch']
  %s0 = inlined_call_operand.vmem [shape: f32[512,8], index: 0, kind: input, shape index: {}]
  %s1 = inlined_call_operand.vmem [shape: f32[1,8], index: 1, kind: output, shape index: {0}]
  %s2 = inlined_call_operand.vmem [shape: f32[1,8], index: 2, kind: output, shape index: {1}]
  %3 = xla_tuple %s1, %s2
  %s4 = sld [smem:[#allocation0]]
  $region49: #{decoupled_forward.4} parent=0
    _
  %s6 = ssub.s32 1, %s4
  %s7 = scalar_select 0, %s6, %s4
  loop: start=0, step=1, limit=4
  $region2: #{decoupled_forward.4} parent=0 // loop_pre_header
    _
  $region3: #{decoupled_forward.4} parent=0 // loop_header
    %s9 = sphi 0, %s13
    %p10 = scmp.ge.s32.totalorder %s9, 4
    %s19 = sphi 0, %s21
    %s22 = sphi 0, %s19
    %s23 = sphi 0, %s22
    %s39 = sphi 0, %s23
    %s43 = sphi 0, %s43
    %s45 = sphi 0, %s43
    %s46 = sphi 0, %s45
    %s60 = sphi 0, %s46
    %s64 = sphi 0, %s64
    %s66 = sphi 0, %s64
    %s67 = sphi 0, %s66
    %s81 = sphi 0, %s67
  $region4: #{decoupled_forward.4} parent=0 // loop_header_branch
    %12 = sbr.rel (%p10) target = $region8
  $region5: #{decoupled_forward.4} parent=0 // loop_body
    %s14 = ssub.s32 %s9, 1
    %s15 = ssub.s32 %s9, 2
    %s16 = sadd.s32 %s9, 1
    %s17 = ssub.s32 %s9, %s16
    %p18 = scmp.eq.s32.totalorder %s17, 0
    %s20 = sadd.s32 %s19, 1
    %s21 = scalar_select %p18, %s19, %s20
    %p24 = pneg %p18
    %p25 = scmp.eq.s32.totalorder %s9, 1
    %p26 = por %p24, %p25
    %p27 = scmp.ne.s32.totalorder %s19, %s22
    %p28 = scmp.eq.s32.totalorder %s9, 0
    %p29 = por %p27, %p28
    %p30 = scmp.ne.s32.totalorder %s19, %s22
    %p31 = scmp.eq.s32.totalorder %s14, 1
    %p32 = por %p30, %p31
    %p33 = scmp.ne.s32.totalorder %s22, %s23
    %p34 = scmp.eq.s32.totalorder %s14, 0
    %p35 = por %p33, %p34
    %p36 = scmp.ne.s32.totalorder %s22, %s23
    %p37 = scmp.eq.s32.totalorder %s15, 1
    %p38 = por %p36, %p37
    %p40 = scmp.ne.s32.totalorder %s23, %s39
    %p41 = scmp.eq.s32.totalorder %s15, 0
    %p42 = por %p40, %p41
    %s44 = sadd.s32 %s43, 1
    %p47 = scmp.eq.s32.totalorder %s9, 1
    %p48 = scmp.ne.s32.totalorder %s43, %s45
    %p49 = scmp.eq.s32.totalorder %s9, 0
    %p50 = por %p48, %p49
    %p51 = scmp.ne.s32.totalorder %s43, %s45
    %p52 = scmp.eq.s32.totalorder %s14, 1
    %p53 = por %p51, %p52
    %p54 = scmp.ne.s32.totalorder %s45, %s46
    %p55 = scmp.eq.s32.totalorder %s14, 0
    %p56 = por %p54, %p55
    %p57 = scmp.ne.s32.totalorder %s45, %s46
    %p58 = scmp.eq.s32.totalorder %s15, 1
    %p59 = por %p57, %p58
    %p61 = scmp.ne.s32.totalorder %s46, %s60
    %p62 = scmp.eq.s32.totalorder %s15, 0
    %p63 = por %p61, %p62
    %s65 = sadd.s32 %s64, 1
    %p68 = scmp.eq.s32.totalorder %s9, 1
    %p69 = scmp.ne.s32.totalorder %s64, %s66
    %p70 = scmp.eq.s32.totalorder %s9, 0
    %p71 = por %p69, %p70
    %p72 = scmp.ne.s32.totalorder %s64, %s66
    %p73 = scmp.eq.s32.totalorder %s14, 1
    %p74 = por %p72, %p73
    %p75 = scmp.ne.s32.totalorder %s66, %s67
    %p76 = scmp.eq.s32.totalorder %s14, 0
    %p77 = por %p75, %p76
    %p78 = scmp.ne.s32.totalorder %s66, %s67
    %p79 = scmp.eq.s32.totalorder %s15, 1
    %p80 = por %p78, %p79
    %p82 = scmp.ne.s32.totalorder %s67, %s81
    %p83 = scmp.eq.s32.totalorder %s15, 0
    %p84 = por %p82, %p83
    %p85 = scmp.le.s32.totalorder 1, %s9
    %p86 = scmp.lt.s32.totalorder %s9, 3
    %p87 = pnand %p85, %p86
    %p88 = pneg %p87
    // Predicated region
    $region9: #{decoupled_forward.4} parent=5 // pred_check
      _
    $region10: #{decoupled_forward.4} parent=5 // pred_check_branch
      %90 = sbr.rel (%p87) target = $region12
    $region11: #{decoupled_forward.4} parent=5 // pred_region
      %s91 = ssub.s32 %s9, 1
    $region12: #{decoupled_forward.4} parent=5 // pred_fallthru
      _
    %p92 = scmp.lt.s32.totalorder %s9, 2
    // Predicated region
    $region13: #{decoupled_forward.4} parent=5 // pred_check
      %p93 = pneg %p92
    $region14: #{decoupled_forward.4} parent=5 // pred_check_branch
      %95 = sbr.rel (%p93) target = $region16
    $region15: #{decoupled_forward.4} parent=5 // pred_region
      // Predicated region
      $region17: #{decoupled_forward.4} parent=15 // pred_check
        %p96 = pneg %p29
      $region18: #{decoupled_forward.4} parent=15 // pred_check_branch
        %98 = sbr.rel (%p96) target = $region20
      $region19: #{decoupled_forward.4} parent=15 // pred_region
        %s99 = smul.u32 32, %s9
        %p100 = scmp.lt.s32.totalorder %s99, 63
        %s101 = scalar_select %p100, %s99, 63
        %s102 = smul.addr %s101, 8
        %s103 = scalar_lea.vmem %s0, %s102
        %s104 = smul.u32 32, %s9
      $region20: #{decoupled_forward.4} parent=15 // pred_fallthru
        _
    $region16: #{decoupled_forward.4} parent=5 // pred_fallthru
      _
    %p105 = scmp.le.s32.totalorder 1, %s9
    %p106 = scmp.lt.s32.totalorder %s9, 3
    %p107 = pnand %p105, %p106
    %p108 = pneg %p107
    // Predicated region
    $region21: #{decoupled_forward.4} parent=5 // pred_check
      _
    $region22: #{decoupled_forward.4} parent=5 // pred_check_branch
      %110 = sbr.rel (%p107) target = $region24
    $region23: #{decoupled_forward.4} parent=5 // pred_region
      %s111 = ssub.s32 %s9, 1
      %s112 = smul.u32 32, %s14
      %p113 = scmp.lt.s32.totalorder %s112, 63
      %s114 = scalar_select %p113, %s112, 63
      %s115 = smul.addr %s114, 8
      %s116 = scalar_lea.vmem %s0, %s115
      %p117 = pneg %p35
      %p118 = pneg %p32
      %p119 = pneg %p56
      %p120 = pneg %p53
      %p121 = pneg %p77
      %p122 = pneg %p74
      %s123 = smul.u32 32, %s14
      %p124 = scmp.lt.s32.totalorder %s123, 63
      %s125 = scalar_select %p124, %s123, 63
      %s126 = smul.addr %s125, 8
      %s127 = scalar_lea.vmem %s0, %s126
      %s128 = smul.u32 32, %s14
      %p129 = scmp.eq.s32.totalorder %s14, 0
      // Predicated region
      $region25: #{decoupled_forward.4} parent=23 // pred_check
        %p130 = pneg %p129
      $region26: #{decoupled_forward.4} parent=23 // pred_check_branch
        %132 = sbr.rel (%p130) target = $region28
      $region27: #{decoupled_forward.4} parent=23 // pred_region
        %vm133 = vcmask 57344
        %134 = vst.msk [vmem:[%s1] sm:$0x1] %vm133, 0.0
        %135 = vst.msk [vmem:[%s2] sm:$0x1] %vm133, 0.0
      $region28: #{decoupled_forward.4} parent=23 // pred_fallthru
        _
      %v136 = vld [vmem:[%s127] sm:$0xff]
      %v137 = vld [vmem:[%s127 + $0x8] sm:$0xff]
      %v138 = vld [vmem:[%s127 + $0x10] sm:$0xff]
      %v139 = vld [vmem:[%s127 + $0x18] sm:$0xff]
      %v140 = vld [vmem:[%s127 + $0x20] sm:$0xff]
      %v141 = vld [vmem:[%s127 + $0x28] sm:$0xff]
      %v142 = vld [vmem:[%s127 + $0x30] sm:$0xff]
      %v143 = vld [vmem:[%s127 + $0x38] sm:$0xff]
      %v144 = vld [vmem:[%s127 + $0x40] sm:$0xff]
      %v145 = vld [vmem:[%s127 + $0x48] sm:$0xff]
      %v146 = vld [vmem:[%s127 + $0x50] sm:$0xff]
      %v147 = vld [vmem:[%s127 + $0x58] sm:$0xff]
      %v148 = vld [vmem:[%s127 + $0x60] sm:$0xff]
      %v149 = vld [vmem:[%s127 + $0x68] sm:$0xff]
      %v150 = vld [vmem:[%s127 + $0x70] sm:$0xff]
      %v151 = vld [vmem:[%s127 + $0x78] sm:$0xff]
      %v152 = vld [vmem:[%s127 + $0x80] sm:$0xff]
      %v153 = vld [vmem:[%s127 + $0x88] sm:$0xff]
      %v154 = vld [vmem:[%s127 + $0x90] sm:$0xff]
      %v155 = vld [vmem:[%s127 + $0x98] sm:$0xff]
      %v156 = vld [vmem:[%s127 + $0xa0] sm:$0xff]
      %v157 = vld [vmem:[%s127 + $0xa8] sm:$0xff]
      %v158 = vld [vmem:[%s127 + $0xb0] sm:$0xff]
      %v159 = vld [vmem:[%s127 + $0xb8] sm:$0xff]
      %v160 = vld [vmem:[%s127 + $0xc0] sm:$0xff]
      %v161 = vld [vmem:[%s127 + $0xc8] sm:$0xff]
      %v162 = vld [vmem:[%s127 + $0xd0] sm:$0xff]
      %v163 = vld [vmem:[%s127 + $0xd8] sm:$0xff]
      %v164 = vld [vmem:[%s127 + $0xe0] sm:$0xff]
      %v165 = vld [vmem:[%s127 + $0xe8] sm:$0xff]
      %v166 = vld [vmem:[%s127 + $0xf0] sm:$0xff]
      %v167 = vld [vmem:[%s127 + $0xf8] sm:$0xff]
      %v168 = vld [vmem:[%s1] sm:$0x1]
      %vm169 = vcmask 64512
      %v170 = vsel %vm169, %v136, 0.0
      %v171 = vsel %vm169, %v137, 0.0
      %v172 = vadd.f32 %v170, %v171
      %v173 = vsel %vm169, %v138, 0.0
      %v174 = vadd.f32 %v172, %v173
      %v175 = vsel %vm169, %v139, 0.0
      %v176 = vadd.f32 %v174, %v175
      %v177 = vsel %vm169, %v140, 0.0
      %v178 = vadd.f32 %v176, %v177
      %v179 = vsel %vm169, %v141, 0.0
      %v180 = vadd.f32 %v178, %v179
      %v181 = vsel %vm169, %v142, 0.0
      %v182 = vadd.f32 %v180, %v181
      %v183 = vsel %vm169, %v143, 0.0
      %v184 = vadd.f32 %v182, %v183
      %v185 = vsel %vm169, %v144, 0.0
      %v186 = vadd.f32 %v184, %v185
      %v187 = vsel %vm169, %v145, 0.0
      %v188 = vadd.f32 %v186, %v187
      %v189 = vsel %vm169, %v146, 0.0
      %v190 = vadd.f32 %v188, %v189
      %v191 = vsel %vm169, %v147, 0.0
      %v192 = vadd.f32 %v190, %v191
      %v193 = vsel %vm169, %v148, 0.0
      %v194 = vadd.f32 %v192, %v193
      %v195 = vsel %vm169, %v149, 0.0
      %v196 = vadd.f32 %v194, %v195
      %v197 = vsel %vm169, %v150, 0.0
      %v198 = vadd.f32 %v196, %v197
      %v199 = vsel %vm169, %v151, 0.0
      %v200 = vadd.f32 %v198, %v199
      %v201 = vsel %vm169, %v152, 0.0
      %v202 = vadd.f32 %v200, %v201
      %v203 = vsel %vm169, %v153, 0.0
      %v204 = vadd.f32 %v202, %v203
      %v205 = vsel %vm169, %v154, 0.0
      %v206 = vadd.f32 %v204, %v205
      %v207 = vsel %vm169, %v155, 0.0
      %v208 = vadd.f32 %v206, %v207
      %v209 = vsel %vm169, %v156, 0.0
      %v210 = vadd.f32 %v208, %v209
      %v211 = vsel %vm169, %v157, 0.0
      %v212 = vadd.f32 %v210, %v211
      %v213 = vsel %vm169, %v158, 0.0
      %v214 = vadd.f32 %v212, %v213
      %v215 = vsel %vm169, %v159, 0.0
      %v216 = vadd.f32 %v214, %v215
      %v217 = vsel %vm169, %v160, 0.0
      %v218 = vadd.f32 %v216, %v217
      %v219 = vsel %vm169, %v161, 0.0
      %v220 = vadd.f32 %v218, %v219
      %v221 = vsel %vm169, %v162, 0.0
      %v222 = vadd.f32 %v220, %v221
      %v223 = vsel %vm169, %v163, 0.0
      %v224 = vadd.f32 %v222, %v223
      %v225 = vsel %vm169, %v164, 0.0
      %v226 = vadd.f32 %v224, %v225
      %v227 = vsel %vm169, %v165, 0.0
      %v228 = vadd.f32 %v226, %v227
      %v229 = vsel %vm169, %v166, 0.0
      %v230 = vadd.f32 %v228, %v229
      %v231 = vsel %vm169, %v167, 0.0
      %v232 = vadd.f32 %v230, %v231
      %v233 = vrot.slane %v232, 4
      %v234 = vadd.f32 %v232, %v233
      %v235 = vrot.slane %v234, 2
      %v236 = vadd.f32 %v234, %v235
      %v237 = vrot.slane %v236, 1
      %v238 = vadd.f32 %v236, %v237
      %v239 = vadd.f32 %v168, %v238
      %vm240 = vcmask 57344
      %241 = vst.msk [vmem:[%s1] sm:$0x1] %vm240, %v239
      %v242 = vld [vmem:[%s2] sm:$0x1]
      %v243 = vmul.f32 %v136, %v136
      %v244 = vmul.f32 %v137, %v137
      %v245 = vmul.f32 %v138, %v138
      %v246 = vmul.f32 %v139, %v139
      %v247 = vmul.f32 %v140, %v140
      %v248 = vmul.f32 %v141, %v141
      %v249 = vmul.f32 %v142, %v142
      %v250 = vmul.f32 %v143, %v143
      %v251 = vmul.f32 %v144, %v144
      %v252 = vmul.f32 %v145, %v145
      %v253 = vmul.f32 %v146, %v146
      %v254 = vmul.f32 %v147, %v147
      %v255 = vmul.f32 %v148, %v148
      %v256 = vmul.f32 %v149, %v149
      %v257 = vmul.f32 %v150, %v150
      %v258 = vmul.f32 %v151, %v151
      %v259 = vmul.f32 %v152, %v152
      %v260 = vmul.f32 %v153, %v153
      %v261 = vmul.f32 %v154, %v154
      %v262 = vmul.f32 %v155, %v155
      %v263 = vmul.f32 %v156, %v156
      %v264 = vmul.f32 %v157, %v157
      %v265 = vmul.f32 %v158, %v158
      %v266 = vmul.f32 %v159, %v159
      %v267 = vmul.f32 %v160, %v160
      %v268 = vmul.f32 %v161, %v161
      %v269 = vmul.f32 %v162, %v162
      %v270 = vmul.f32 %v163, %v163
      %v271 = vmul.f32 %v164, %v164
      %v272 = vmul.f32 %v165, %v165
      %v273 = vmul.f32 %v166, %v166
      %v274 = vmul.f32 %v167, %v167
      %v275 = vsel %vm169, %v243, 0.0
      %v276 = vsel %vm169, %v244, 0.0
      %v277 = vadd.f32 %v275, %v276
      %v278 = vsel %vm169, %v245, 0.0
      %v279 = vadd.f32 %v277, %v278
      %v280 = vsel %vm169, %v246, 0.0
      %v281 = vadd.f32 %v279, %v280
      %v282 = vsel %vm169, %v247, 0.0
      %v283 = vadd.f32 %v281, %v282
      %v284 = vsel %vm169, %v248, 0.0
      %v285 = vadd.f32 %v283, %v284
      %v286 = vsel %vm169, %v249, 0.0
      %v287 = vadd.f32 %v285, %v286
      %v288 = vsel %vm169, %v250, 0.0
      %v289 = vadd.f32 %v287, %v288
      %v290 = vsel %vm169, %v251, 0.0
      %v291 = vadd.f32 %v289, %v290
      %v292 = vsel %vm169, %v252, 0.0
      %v293 = vadd.f32 %v291, %v292
      %v294 = vsel %vm169, %v253, 0.0
      %v295 = vadd.f32 %v293, %v294
      %v296 = vsel %vm169, %v254, 0.0
      %v297 = vadd.f32 %v295, %v296
      %v298 = vsel %vm169, %v255, 0.0
      %v299 = vadd.f32 %v297, %v298
      %v300 = vsel %vm169, %v256, 0.0
      %v301 = vadd.f32 %v299, %v300
      %v302 = vsel %vm169, %v257, 0.0
      %v303 = vadd.f32 %v301, %v302
      %v304 = vsel %vm169, %v258, 0.0
      %v305 = vadd.f32 %v303, %v304
      %v306 = vsel %vm169, %v259, 0.0
      %v307 = vadd.f32 %v305, %v306
      %v308 = vsel %vm169, %v260, 0.0
      %v309 = vadd.f32 %v307, %v308
      %v310 = vsel %vm169, %v261, 0.0
      %v311 = vadd.f32 %v309, %v310
      %v312 = vsel %vm169, %v262, 0.0
      %v313 = vadd.f32 %v311, %v312
      %v314 = vsel %vm169, %v263, 0.0
      %v315 = vadd.f32 %v313, %v314
      %v316 = vsel %vm169, %v264, 0.0
      %v317 = vadd.f32 %v315, %v316
      %v318 = vsel %vm169, %v265, 0.0
      %v319 = vadd.f32 %v317, %v318
      %v320 = vsel %vm169, %v266, 0.0
      %v321 = vadd.f32 %v319, %v320
      %v322 = vsel %vm169, %v267, 0.0
      %v323 = vadd.f32 %v321, %v322
      %v324 = vsel %vm169, %v268, 0.0
      %v325 = vadd.f32 %v323, %v324
      %v326 = vsel %vm169, %v269, 0.0
      %v327 = vadd.f32 %v325, %v326
      %v328 = vsel %vm169, %v270, 0.0
      %v329 = vadd.f32 %v327, %v328
      %v330 = vsel %vm169, %v271, 0.0
      %v331 = vadd.f32 %v329, %v330
      %v332 = vsel %vm169, %v272, 0.0
      %v333 = vadd.f32 %v331, %v332
      %v334 = vsel %vm169, %v273, 0.0
      %v335 = vadd.f32 %v333, %v334
      %v336 = vsel %vm169, %v274, 0.0
      %v337 = vadd.f32 %v335, %v336
      %v338 = vrot.slane %v337, 4
      %v339 = vadd.f32 %v337, %v338
      %v340 = vrot.slane %v339, 2
      %v341 = vadd.f32 %v339, %v340
      %v342 = vrot.slane %v341, 1
      %v343 = vadd.f32 %v341, %v342
      %v344 = vadd.f32 %v242, %v343
      %345 = vst.msk [vmem:[%s2] sm:$0x1] %vm240, %v344
      // Predicated region
      $region29: #{decoupled_forward.4} parent=23 // pred_check
        %p346 = pneg %p53
      $region30: #{decoupled_forward.4} parent=23 // pred_check_branch
        %348 = sbr.rel (%p346) target = $region32
      $region31: #{decoupled_forward.4} parent=23 // pred_region
        _
      $region32: #{decoupled_forward.4} parent=23 // pred_fallthru
        _
      // Predicated region
      $region33: #{decoupled_forward.4} parent=23 // pred_check
        %p349 = pneg %p74
      $region34: #{decoupled_forward.4} parent=23 // pred_check_branch
        %351 = sbr.rel (%p349) target = $region36
      $region35: #{decoupled_forward.4} parent=23 // pred_region
        _
      $region36: #{decoupled_forward.4} parent=23 // pred_fallthru
        _
      // Predicated region
      $region37: #{decoupled_forward.4} parent=23 // pred_check
        %p352 = pneg %p53
      $region38: #{decoupled_forward.4} parent=23 // pred_check_branch
        %354 = sbr.rel (%p352) target = $region40
      $region39: #{decoupled_forward.4} parent=23 // pred_region
        _
      $region40: #{decoupled_forward.4} parent=23 // pred_fallthru
        _
      // Predicated region
      $region41: #{decoupled_forward.4} parent=23 // pred_check
        %p355 = pneg %p74
      $region42: #{decoupled_forward.4} parent=23 // pred_check_branch
        %357 = sbr.rel (%p355) target = $region44
      $region43: #{decoupled_forward.4} parent=23 // pred_region
        _
      $region44: #{decoupled_forward.4} parent=23 // pred_fallthru
        _
    $region24: #{decoupled_forward.4} parent=5 // pred_fallthru
      _
    %p358 = scmp.le.s32.totalorder 2, %s9
    // Predicated region
    $region45: #{decoupled_forward.4} parent=5 // pred_check
      %p359 = pneg %p358
    $region46: #{decoupled_forward.4} parent=5 // pred_check_branch
      %361 = sbr.rel (%p359) target = $region48
    $region47: #{decoupled_forward.4} parent=5 // pred_region
      %s362 = ssub.s32 %s9, 2
    $region48: #{decoupled_forward.4} parent=5 // pred_fallthru
      _
  $region6: #{decoupled_forward.4} parent=0 // loop_footer
    %s13 = sadd.s32 1, %s9
  $region7: #{decoupled_forward.4} parent=0 // loop_footer_branch
    %8 = sbr.rel target = $region3
  $region8: #{decoupled_forward.4} parent=0 // loop_exit
    _

// kernel: decoupled_forward.7
$region0: #{decoupled_forward.7}
  #allocation0 [shape = 'u32[]', space=smem, size = 0x4, offset = 0x4, fixed_abs, tag = 'smem constant byte address 0x4 - core index']
  #allocation1 [shape = 'u32[72,128]{1,0:T(1,128)}', space=vmem, size = 0x9000, scoped, tag = 'internal scratch']
  #allocation2 [shape = 'bf16[256,32]{1,0:T(8,128)(2,1)}', space=vmem, size = 0x10000, scoped, tag = 'scratch operand']
  %s0 = inlined_call_operand.vmem [shape: f32[512,8], index: 0, kind: input, shape index: {}]
  %s1 = inlined_call_operand.vmem [shape: bf16[32,8], index: 1, kind: input, shape index: {}]
  %s2 = inlined_call_operand.vmem [shape: f32[256,8], index: 2, kind: input, shape index: {}]
  %s3 = inlined_call_operand.vmem [shape: f32[512,8], index: 3, kind: output, shape index: {}]
  %s4 = sld [smem:[#allocation0]]
  $region45: #{decoupled_forward.7} parent=0
    _
  %s6 = ssub.s32 1, %s4
  %s7 = scalar_select 0, %s6, %s4
  loop: start=0, step=1, limit=4
  $region2: #{decoupled_forward.7} parent=0 // loop_pre_header
    _
  $region3: #{decoupled_forward.7} parent=0 // loop_header
    %s9 = sphi 0, %s13
    %p10 = scmp.ge.s32.totalorder %s9, 4
    %s19 = sphi 0, %s21
    %s22 = sphi 0, %s19
    %s23 = sphi 0, %s22
    %s39 = sphi 0, %s23
    %s43 = sphi 0, %s43
    %s45 = sphi 0, %s43
    %s46 = sphi 0, %s45
    %s60 = sphi 0, %s46
    %s64 = sphi 0, %s64
    %s66 = sphi 0, %s64
    %s67 = sphi 0, %s66
    %s81 = sphi 0, %s67
    %s87 = sphi 0, %s89
    %s90 = sphi 0, %s87
    %s91 = sphi 0, %s90
    %s107 = sphi 0, %s91
  $region4: #{decoupled_forward.7} parent=0 // loop_header_branch
    %12 = sbr.rel (%p10) target = $region8
  $region5: #{decoupled_forward.7} parent=0 // loop_body
    %s14 = ssub.s32 %s9, 1
    %s15 = ssub.s32 %s9, 2
    %s16 = sadd.s32 %s9, 1
    %s17 = ssub.s32 %s9, %s16
    %p18 = scmp.eq.s32.totalorder %s17, 0
    %s20 = sadd.s32 %s19, 1
    %s21 = scalar_select %p18, %s19, %s20
    %p24 = pneg %p18
    %p25 = scmp.eq.s32.totalorder %s9, 1
    %p26 = por %p24, %p25
    %p27 = scmp.ne.s32.totalorder %s19, %s22
    %p28 = scmp.eq.s32.totalorder %s9, 0
    %p29 = por %p27, %p28
    %p30 = scmp.ne.s32.totalorder %s19, %s22
    %p31 = scmp.eq.s32.totalorder %s14, 1
    %p32 = por %p30, %p31
    %p33 = scmp.ne.s32.totalorder %s22, %s23
    %p34 = scmp.eq.s32.totalorder %s14, 0
    %p35 = por %p33, %p34
    %p36 = scmp.ne.s32.totalorder %s22, %s23
    %p37 = scmp.eq.s32.totalorder %s15, 1
    %p38 = por %p36, %p37
    %p40 = scmp.ne.s32.totalorder %s23, %s39
    %p41 = scmp.eq.s32.totalorder %s15, 0
    %p42 = por %p40, %p41
    %s44 = sadd.s32 %s43, 1
    %p47 = scmp.eq.s32.totalorder %s9, 1
    %p48 = scmp.ne.s32.totalorder %s43, %s45
    %p49 = scmp.eq.s32.totalorder %s9, 0
    %p50 = por %p48, %p49
    %p51 = scmp.ne.s32.totalorder %s43, %s45
    %p52 = scmp.eq.s32.totalorder %s14, 1
    %p53 = por %p51, %p52
    %p54 = scmp.ne.s32.totalorder %s45, %s46
    %p55 = scmp.eq.s32.totalorder %s14, 0
    %p56 = por %p54, %p55
    %p57 = scmp.ne.s32.totalorder %s45, %s46
    %p58 = scmp.eq.s32.totalorder %s15, 1
    %p59 = por %p57, %p58
    %p61 = scmp.ne.s32.totalorder %s46, %s60
    %p62 = scmp.eq.s32.totalorder %s15, 0
    %p63 = por %p61, %p62
    %s65 = sadd.s32 %s64, 1
    %p68 = scmp.eq.s32.totalorder %s9, 1
    %p69 = scmp.ne.s32.totalorder %s64, %s66
    %p70 = scmp.eq.s32.totalorder %s9, 0
    %p71 = por %p69, %p70
    %p72 = scmp.ne.s32.totalorder %s64, %s66
    %p73 = scmp.eq.s32.totalorder %s14, 1
    %p74 = por %p72, %p73
    %p75 = scmp.ne.s32.totalorder %s66, %s67
    %p76 = scmp.eq.s32.totalorder %s14, 0
    %p77 = por %p75, %p76
    %p78 = scmp.ne.s32.totalorder %s66, %s67
    %p79 = scmp.eq.s32.totalorder %s15, 1
    %p80 = por %p78, %p79
    %p82 = scmp.ne.s32.totalorder %s67, %s81
    %p83 = scmp.eq.s32.totalorder %s15, 0
    %p84 = por %p82, %p83
    %s85 = ssub.s32 %s9, %s16
    %p86 = scmp.eq.s32.totalorder %s85, 0
    %s88 = sadd.s32 %s87, 1
    %s89 = scalar_select %p86, %s87, %s88
    %p92 = pneg %p86
    %p93 = scmp.eq.s32.totalorder %s9, 1
    %p94 = por %p92, %p93
    %p95 = scmp.ne.s32.totalorder %s87, %s90
    %p96 = scmp.eq.s32.totalorder %s9, 0
    %p97 = por %p95, %p96
    %p98 = scmp.ne.s32.totalorder %s87, %s90
    %p99 = scmp.eq.s32.totalorder %s14, 1
    %p100 = por %p98, %p99
    %p101 = scmp.ne.s32.totalorder %s90, %s91
    %p102 = scmp.eq.s32.totalorder %s14, 0
    %p103 = por %p101, %p102
    %p104 = scmp.ne.s32.totalorder %s90, %s91
    %p105 = scmp.eq.s32.totalorder %s15, 1
    %p106 = por %p104, %p105
    %p108 = scmp.ne.s32.totalorder %s91, %s107
    %p109 = scmp.eq.s32.totalorder %s15, 0
    %p110 = por %p108, %p109
    %p111 = scmp.le.s32.totalorder 1, %s9
    %p112 = scmp.lt.s32.totalorder %s9, 3
    %p113 = pnand %p111, %p112
    %p114 = pneg %p113
    // Predicated region
    $region9: #{decoupled_forward.7} parent=5 // pred_check
      _
    $region10: #{decoupled_forward.7} parent=5 // pred_check_branch
      %116 = sbr.rel (%p113) target = $region12
    $region11: #{decoupled_forward.7} parent=5 // pred_region
      %s117 = ssub.s32 %s9, 1
      // Predicated region
      $region13: #{decoupled_forward.7} parent=11 // pred_check
        %p118 = pneg %p56
      $region14: #{decoupled_forward.7} parent=11 // pred_check_branch
        %120 = sbr.rel (%p118) target = $region16
      $region15: #{decoupled_forward.7} parent=11 // pred_region
        _
      $region16: #{decoupled_forward.7} parent=11 // pred_fallthru
        _
      // Predicated region
      $region17: #{decoupled_forward.7} parent=11 // pred_check
        %p121 = pneg %p77
      $region18: #{decoupled_forward.7} parent=11 // pred_check_branch
        %123 = sbr.rel (%p121) target = $region20
      $region19: #{decoupled_forward.7} parent=11 // pred_region
        _
      $region20: #{decoupled_forward.7} parent=11 // pred_fallthru
        _
    $region12: #{decoupled_forward.7} parent=5 // pred_fallthru
      _
    %p124 = scmp.lt.s32.totalorder %s9, 2
    // Predicated region
    $region21: #{decoupled_forward.7} parent=5 // pred_check
      %p125 = pneg %p124
    $region22: #{decoupled_forward.7} parent=5 // pred_check_branch
      %127 = sbr.rel (%p125) target = $region24
    $region23: #{decoupled_forward.7} parent=5 // pred_region
      // Predicated region
      $region25: #{decoupled_forward.7} parent=23 // pred_check
        %p128 = pneg %p29
      $region26: #{decoupled_forward.7} parent=23 // pred_check_branch
        %130 = sbr.rel (%p128) target = $region28
      $region27: #{decoupled_forward.7} parent=23 // pred_region
        %s131 = smul.u32 32, %s9
        %p132 = scmp.lt.s32.totalorder %s131, 63
        %s133 = scalar_select %p132, %s131, 63
        %s134 = smul.addr %s133, 8
        %s135 = scalar_lea.vmem %s0, %s134
        %s136 = smul.u32 32, %s9
      $region28: #{decoupled_forward.7} parent=23 // pred_fallthru
        _
    $region24: #{decoupled_forward.7} parent=5 // pred_fallthru
      _
    %p137 = scmp.le.s32.totalorder 1, %s9
    %p138 = scmp.lt.s32.totalorder %s9, 3
    %p139 = pnand %p137, %p138
    %p140 = pneg %p139
    // Predicated region
    $region29: #{decoupled_forward.7} parent=5 // pred_check
      _
    $region30: #{decoupled_forward.7} parent=5 // pred_check_branch
      %142 = sbr.rel (%p139) target = $region32
    $region31: #{decoupled_forward.7} parent=5 // pred_region
      %s143 = ssub.s32 %s9, 1
      %s144 = smul.u32 32, %s14
      %p145 = scmp.lt.s32.totalorder %s144, 63
      %s146 = scalar_select %p145, %s144, 63
      %s147 = smul.addr %s146, 8
      %s148 = scalar_lea.vmem %s0, %s147
      %p149 = pneg %p35
      %p150 = pneg %p32
      %p151 = pneg %p56
      %p152 = pneg %p53
      %p153 = pneg %p77
      %p154 = pneg %p74
      %p155 = pneg %p103
      %p156 = pneg %p100
      %s157 = smul.u32 32, %s14
      %p158 = scmp.lt.s32.totalorder %s157, 63
      %s159 = scalar_select %p158, %s157, 63
      %s160 = smul.addr %s159, 8
      %s161 = scalar_lea.vmem %s3, %s160
      %s162 = smul.u32 32, %s14
      %p163 = scmp.lt.s32.totalorder %s162, 63
      %s164 = scalar_select %p163, %s162, 63
      %s165 = smul.addr %s164, 8
      %s166 = scalar_lea.vmem %s0, %s165
      %s167 = smul.u32 32, %s14
      %s168 = smul.u32 32, %s14
      %p169 = scmp.lt.s32.totalorder %s168, 63
      %s170 = scalar_select %p169, %s168, 63
      %s171 = smul.addr %s170, 8
      %s172 = scalar_lea.vmem %s3, %s171
      %s173 = smul.u32 32, %s14
      %v175 = vld [vmem:[%s166] sm:$0xff]
      %v176 = vld [vmem:[%s166 + $0x8] sm:$0xff]
      %v177 = vld [vmem:[%s166 + $0x10] sm:$0xff]
      %v178 = vld [vmem:[%s166 + $0x18] sm:$0xff]
      %v179 = vld [vmem:[%s166 + $0x20] sm:$0xff]
      %v180 = vld [vmem:[%s166 + $0x28] sm:$0xff]
      %v181 = vld [vmem:[%s166 + $0x30] sm:$0xff]
      %v182 = vld [vmem:[%s166 + $0x38] sm:$0xff]
      %v183 = vld [vmem:[%s166 + $0x40] sm:$0xff]
      %v184 = vld [vmem:[%s166 + $0x48] sm:$0xff]
      %v185 = vld [vmem:[%s166 + $0x50] sm:$0xff]
      %v186 = vld [vmem:[%s166 + $0x58] sm:$0xff]
      %v187 = vld [vmem:[%s166 + $0x60] sm:$0xff]
      %v188 = vld [vmem:[%s166 + $0x68] sm:$0xff]
      %v189 = vld [vmem:[%s166 + $0x70] sm:$0xff]
      %v190 = vld [vmem:[%s166 + $0x78] sm:$0xff]
      %v191 = vld [vmem:[%s166 + $0x80] sm:$0xff]
      %v192 = vld [vmem:[%s166 + $0x88] sm:$0xff]
      %v193 = vld [vmem:[%s166 + $0x90] sm:$0xff]
      %v194 = vld [vmem:[%s166 + $0x98] sm:$0xff]
      %v195 = vld [vmem:[%s166 + $0xa0] sm:$0xff]
      %v196 = vld [vmem:[%s166 + $0xa8] sm:$0xff]
      %v197 = vld [vmem:[%s166 + $0xb0] sm:$0xff]
      %v198 = vld [vmem:[%s166 + $0xb8] sm:$0xff]
      %v199 = vld [vmem:[%s166 + $0xc0] sm:$0xff]
      %v200 = vld [vmem:[%s166 + $0xc8] sm:$0xff]
      %v201 = vld [vmem:[%s166 + $0xd0] sm:$0xff]
      %v202 = vld [vmem:[%s166 + $0xd8] sm:$0xff]
      %v203 = vld [vmem:[%s166 + $0xe0] sm:$0xff]
      %v204 = vld [vmem:[%s166 + $0xe8] sm:$0xff]
      %v205 = vld [vmem:[%s166 + $0xf0] sm:$0xff]
      %v206 = vld [vmem:[%s166 + $0xf8] sm:$0xff]
      %v207 = vrot.slane %v175, 7
      %v208 = vrot.slane %v176, 7
      %v209 = vrot.slane %v177, 7
      %v210 = vrot.slane %v178, 7
      %v211 = vrot.slane %v179, 7
      %v212 = vrot.slane %v180, 7
      %v213 = vrot.slane %v181, 7
      %v214 = vrot.slane %v182, 7
      %v215 = vrot.slane %v183, 7
      %v216 = vrot.slane %v184, 7
      %v217 = vrot.slane %v185, 7
      %v218 = vrot.slane %v186, 7
      %v219 = vrot.slane %v187, 7
      %v220 = vrot.slane %v188, 7
      %v221 = vrot.slane %v189, 7
      %v222 = vrot.slane %v190, 7
      %v223 = vrot.slane %v191, 7
      %v224 = vrot.slane %v192, 7
      %v225 = vrot.slane %v193, 7
      %v226 = vrot.slane %v194, 7
      %v227 = vrot.slane %v195, 7
      %v228 = vrot.slane %v196, 7
      %v229 = vrot.slane %v197, 7
      %v230 = vrot.slane %v198, 7
      %v231 = vrot.slane %v199, 7
      %v232 = vrot.slane %v200, 7
      %v233 = vrot.slane %v201, 7
      %v234 = vrot.slane %v202, 7
      %v235 = vrot.slane %v203, 7
      %v236 = vrot.slane %v204, 7
      %v237 = vrot.slane %v205, 7
      %v238 = vrot.slane %v206, 7
      %v239 = vlaneseq
      %v240 = vshrl.u32 %v239, 7
      %vm241 = vcmp.lt.s32.totalorder %v240, 1
      %v242 = vsel %vm241, %v237, %v238
      %v243 = vsel %vm241, %v236, %v237
      %v244 = vsel %vm241, %v235, %v236
      %v245 = vsel %vm241, %v234, %v235
      %v246 = vsel %vm241, %v233, %v234
      %v247 = vsel %vm241, %v232, %v233
      %v248 = vsel %vm241, %v231, %v232
      %v249 = vsel %vm241, %v230, %v231
      %v250 = vsel %vm241, %v229, %v230
      %v251 = vsel %vm241, %v228, %v229
      %v252 = vsel %vm241, %v227, %v228
      %v253 = vsel %vm241, %v226, %v227
      %v254 = vsel %vm241, %v225, %v226
      %v255 = vsel %vm241, %v224, %v225
      %v256 = vsel %vm241, %v223, %v224
      %v257 = vsel %vm241, %v222, %v223
      %v258 = vsel %vm241, %v221, %v222
      %v259 = vsel %vm241, %v220, %v221
      %v260 = vsel %vm241, %v219, %v220
      %v261 = vsel %vm241, %v218, %v219
      %v262 = vsel %vm241, %v217, %v218
      %v263 = vsel %vm241, %v216, %v217
      %v264 = vsel %vm241, %v215, %v216
      %v265 = vsel %vm241, %v214, %v215
      %v266 = vsel %vm241, %v213, %v214
      %v267 = vsel %vm241, %v212, %v213
      %v268 = vsel %vm241, %v211, %v212
      %v269 = vsel %vm241, %v210, %v211
      %v270 = vsel %vm241, %v209, %v210
      %v271 = vsel %vm241, %v208, %v209
      %v272 = vsel %vm241, %v207, %v208
      %v273 = vsel %vm241, %v238, %v207
      %v274 = vld [vmem:[%s2] sm:$0xff]
      %v275 = vld [vmem:[%s2 + $0x8] sm:$0xff]
      %v276 = vld [vmem:[%s2 + $0x10] sm:$0xff]
      %v277 = vld [vmem:[%s2 + $0x18] sm:$0xff]
      %v278 = vld [vmem:[%s2 + $0x20] sm:$0xff]
      %v279 = vld [vmem:[%s2 + $0x28] sm:$0xff]
      %v280 = vld [vmem:[%s2 + $0x30] sm:$0xff]
      %v281 = vld [vmem:[%s2 + $0x38] sm:$0xff]
      %v282 = vld [vmem:[%s2 + $0x40] sm:$0xff]
      %v283 = vld [vmem:[%s2 + $0x48] sm:$0xff]
      %v284 = vld [vmem:[%s2 + $0x50] sm:$0xff]
      %v285 = vld [vmem:[%s2 + $0x58] sm:$0xff]
      %v286 = vld [vmem:[%s2 + $0x60] sm:$0xff]
      %v287 = vld [vmem:[%s2 + $0x68] sm:$0xff]
      %v288 = vld [vmem:[%s2 + $0x70] sm:$0xff]
      %v289 = vld [vmem:[%s2 + $0x78] sm:$0xff]
      %v290 = vld [vmem:[%s2 + $0x80] sm:$0xff]
      %v291 = vld [vmem:[%s2 + $0x88] sm:$0xff]
      %v292 = vld [vmem:[%s2 + $0x90] sm:$0xff]
      %v293 = vld [vmem:[%s2 + $0x98] sm:$0xff]
      %v294 = vld [vmem:[%s2 + $0xa0] sm:$0xff]
      %v295 = vld [vmem:[%s2 + $0xa8] sm:$0xff]
      %v296 = vld [vmem:[%s2 + $0xb0] sm:$0xff]
      %v297 = vld [vmem:[%s2 + $0xb8] sm:$0xff]
      %v298 = vld [vmem:[%s2 + $0xc0] sm:$0xff]
      %v299 = vld [vmem:[%s2 + $0xc8] sm:$0xff]
      %v300 = vld [vmem:[%s2 + $0xd0] sm:$0xff]
      %v301 = vld [vmem:[%s2 + $0xd8] sm:$0xff]
      %v302 = vld [vmem:[%s2 + $0xe0] sm:$0xff]
      %v303 = vld [vmem:[%s2 + $0xe8] sm:$0xff]
      %v304 = vld [vmem:[%s2 + $0xf0] sm:$0xff]
      %v305 = vld [vmem:[%s2 + $0xf8] sm:$0xff]
      %307 = vset.pattern.permute.xlu0 0
      %308 = vperm.xlu0 %307, %v274
      %v309 = vpop.permute.xlu0 %308
      %312 = vset.pattern.permute.xlu0 0
      %313 = vperm.xlu0 %312, %v275
      %v314 = vpop.permute.xlu0 %313
      %317 = vset.pattern.permute.xlu0 0
      %318 = vperm.xlu0 %317, %v276
      %v319 = vpop.permute.xlu0 %318
      %322 = vset.pattern.permute.xlu0 0
      %323 = vperm.xlu0 %322, %v277
      %v324 = vpop.permute.xlu0 %323
      %327 = vset.pattern.permute.xlu0 0
      %328 = vperm.xlu0 %327, %v278
      %v329 = vpop.permute.xlu0 %328
      %332 = vset.pattern.permute.xlu0 0
      %333 = vperm.xlu0 %332, %v279
      %v334 = vpop.permute.xlu0 %333
      %337 = vset.pattern.permute.xlu0 0
      %338 = vperm.xlu0 %337, %v280
      %v339 = vpop.permute.xlu0 %338
      %342 = vset.pattern.permute.xlu0 0
      %343 = vperm.xlu0 %342, %v281
      %v344 = vpop.permute.xlu0 %343
      %347 = vset.pattern.permute.xlu0 0
      %348 = vperm.xlu0 %347, %v282
      %v349 = vpop.permute.xlu0 %348
      %352 = vset.pattern.permute.xlu0 0
      %353 = vperm.xlu0 %352, %v283
      %v354 = vpop.permute.xlu0 %353
      %357 = vset.pattern.permute.xlu0 0
      %358 = vperm.xlu0 %357, %v284
      %v359 = vpop.permute.xlu0 %358
      %362 = vset.pattern.permute.xlu0 0
      %363 = vperm.xlu0 %362, %v285
      %v364 = vpop.permute.xlu0 %363
      %367 = vset.pattern.permute.xlu0 0
      %368 = vperm.xlu0 %367, %v286
      %v369 = vpop.permute.xlu0 %368
      %372 = vset.pattern.permute.xlu0 0
      %373 = vperm.xlu0 %372, %v287
      %v374 = vpop.permute.xlu0 %373
      %377 = vset.pattern.permute.xlu0 0
      %378 = vperm.xlu0 %377, %v288
      %v379 = vpop.permute.xlu0 %378
      %382 = vset.pattern.permute.xlu0 0
      %383 = vperm.xlu0 %382, %v289
      %v384 = vpop.permute.xlu0 %383
      %387 = vset.pattern.permute.xlu0 0
      %388 = vperm.xlu0 %387, %v290
      %v389 = vpop.permute.xlu0 %388
      %392 = vset.pattern.permute.xlu0 0
      %393 = vperm.xlu0 %392, %v291
      %v394 = vpop.permute.xlu0 %393
      %397 = vset.pattern.permute.xlu0 0
      %398 = vperm.xlu0 %397, %v292
      %v399 = vpop.permute.xlu0 %398
      %402 = vset.pattern.permute.xlu0 0
      %403 = vperm.xlu0 %402, %v293
      %v404 = vpop.permute.xlu0 %403
      %407 = vset.pattern.permute.xlu0 0
      %408 = vperm.xlu0 %407, %v294
      %v409 = vpop.permute.xlu0 %408
      %412 = vset.pattern.permute.xlu0 0
      %413 = vperm.xlu0 %412, %v295
      %v414 = vpop.permute.xlu0 %413
      %417 = vset.pattern.permute.xlu0 0
      %418 = vperm.xlu0 %417, %v296
      %v419 = vpop.permute.xlu0 %418
      %422 = vset.pattern.permute.xlu0 0
      %423 = vperm.xlu0 %422, %v297
      %v424 = vpop.permute.xlu0 %423
      %427 = vset.pattern.permute.xlu0 0
      %428 = vperm.xlu0 %427, %v298
      %v429 = vpop.permute.xlu0 %428
      %432 = vset.pattern.permute.xlu0 0
      %433 = vperm.xlu0 %432, %v299
      %v434 = vpop.permute.xlu0 %433
      %437 = vset.pattern.permute.xlu0 0
      %438 = vperm.xlu0 %437, %v300
      %v439 = vpop.permute.xlu0 %438
      %442 = vset.pattern.permute.xlu0 0
      %443 = vperm.xlu0 %442, %v301
      %v444 = vpop.permute.xlu0 %443
      %447 = vset.pattern.permute.xlu0 0
      %448 = vperm.xlu0 %447, %v302
      %v449 = vpop.permute.xlu0 %448
      %452 = vset.pattern.permute.xlu0 0
      %453 = vperm.xlu0 %452, %v303
      %v454 = vpop.permute.xlu0 %453
      %457 = vset.pattern.permute.xlu0 0
      %458 = vperm.xlu0 %457, %v304
      %v459 = vpop.permute.xlu0 %458
      %462 = vset.pattern.permute.xlu0 0
      %463 = vperm.xlu0 %462, %v305
      %v464 = vpop.permute.xlu0 %463
      %v466 = vmul.f32 %v273, %v309
      %v467 = vmul.f32 %v272, %v314
      %v468 = vmul.f32 %v271, %v319
      %v469 = vmul.f32 %v270, %v324
      %v470 = vmul.f32 %v269, %v329
      %v471 = vmul.f32 %v268, %v334
      %v472 = vmul.f32 %v267, %v339
      %v473 = vmul.f32 %v266, %v344
      %v474 = vmul.f32 %v265, %v349
      %v475 = vmul.f32 %v264, %v354
      %v476 = vmul.f32 %v263, %v359
      %v477 = vmul.f32 %v262, %v364
      %v478 = vmul.f32 %v261, %v369
      %v479 = vmul.f32 %v260, %v374
      %v480 = vmul.f32 %v259, %v379
      %v481 = vmul.f32 %v258, %v384
      %v482 = vmul.f32 %v257, %v389
      %v483 = vmul.f32 %v256, %v394
      %v484 = vmul.f32 %v255, %v399
      %v485 = vmul.f32 %v254, %v404
      %v486 = vmul.f32 %v253, %v409
      %v487 = vmul.f32 %v252, %v414
      %v488 = vmul.f32 %v251, %v419
      %v489 = vmul.f32 %v250, %v424
      %v490 = vmul.f32 %v249, %v429
      %v491 = vmul.f32 %v248, %v434
      %v492 = vmul.f32 %v247, %v439
      %v493 = vmul.f32 %v246, %v444
      %v494 = vmul.f32 %v245, %v449
      %v495 = vmul.f32 %v244, %v454
      %v496 = vmul.f32 %v243, %v459
      %v497 = vmul.f32 %v242, %v464
      %v498 = vpack.c.bf16 %v466, %v466
      %v499 = vpack.c.bf16 %v467, %v467
      %v500 = vpack.c.bf16 %v468, %v468
      %v501 = vpack.c.bf16 %v469, %v469
      %v502 = vpack.c.bf16 %v470, %v470
      %v503 = vpack.c.bf16 %v471, %v471
      %v504 = vpack.c.bf16 %v472, %v472
      %v505 = vpack.c.bf16 %v473, %v473
      %v506 = vpack.c.bf16 %v474, %v474
      %v507 = vpack.c.bf16 %v475, %v475
      %v508 = vpack.c.bf16 %v476, %v476
      %v509 = vpack.c.bf16 %v477, %v477
      %v510 = vpack.c.bf16 %v478, %v478
      %v511 = vpack.c.bf16 %v479, %v479
      %v512 = vpack.c.bf16 %v480, %v480
      %v513 = vpack.c.bf16 %v481, %v481
      %v514 = vpack.c.bf16 %v482, %v482
      %v515 = vpack.c.bf16 %v483, %v483
      %v516 = vpack.c.bf16 %v484, %v484
      %v517 = vpack.c.bf16 %v485, %v485
      %v518 = vpack.c.bf16 %v486, %v486
      %v519 = vpack.c.bf16 %v487, %v487
      %v520 = vpack.c.bf16 %v488, %v488
      %v521 = vpack.c.bf16 %v489, %v489
      %v522 = vpack.c.bf16 %v490, %v490
      %v523 = vpack.c.bf16 %v491, %v491
      %v524 = vpack.c.bf16 %v492, %v492
      %v525 = vpack.c.bf16 %v493, %v493
      %v526 = vpack.c.bf16 %v494, %v494
      %v527 = vpack.c.bf16 %v495, %v495
      %v528 = vpack.c.bf16 %v496, %v496
      %v529 = vpack.c.bf16 %v497, %v497
      %vm530 = vcmask 60416
      %531 = vst.msk [vmem:[#allocation2] sm:$0xf] %vm530, %v498
      %532 = vst.msk [vmem:[#allocation2 + $0x4] sm:$0xf] %vm530, %v499
      %533 = vst.msk [vmem:[#allocation2 + $0x8] sm:$0xf] %vm530, %v500
      %534 = vst.msk [vmem:[#allocation2 + $0xc] sm:$0xf] %vm530, %v501
      %535 = vst.msk [vmem:[#allocation2 + $0x10] sm:$0xf] %vm530, %v502
      %536 = vst.msk [vmem:[#allocation2 + $0x14] sm:$0xf] %vm530, %v503
      %537 = vst.msk [vmem:[#allocation2 + $0x18] sm:$0xf] %vm530, %v504
      %538 = vst.msk [vmem:[#allocation2 + $0x1c] sm:$0xf] %vm530, %v505
      %539 = vst.msk [vmem:[#allocation2 + $0x20] sm:$0xf] %vm530, %v506
      %540 = vst.msk [vmem:[#allocation2 + $0x24] sm:$0xf] %vm530, %v507
      %541 = vst.msk [vmem:[#allocation2 + $0x28] sm:$0xf] %vm530, %v508
      %542 = vst.msk [vmem:[#allocation2 + $0x2c] sm:$0xf] %vm530, %v509
      %543 = vst.msk [vmem:[#allocation2 + $0x30] sm:$0xf] %vm530, %v510
      %544 = vst.msk [vmem:[#allocation2 + $0x34] sm:$0xf] %vm530, %v511
      %545 = vst.msk [vmem:[#allocation2 + $0x38] sm:$0xf] %vm530, %v512
      %546 = vst.msk [vmem:[#allocation2 + $0x3c] sm:$0xf] %vm530, %v513
      %547 = vst.msk [vmem:[#allocation2 + $0x40] sm:$0xf] %vm530, %v514
      %548 = vst.msk [vmem:[#allocation2 + $0x44] sm:$0xf] %vm530, %v515
      %549 = vst.msk [vmem:[#allocation2 + $0x48] sm:$0xf] %vm530, %v516
      %550 = vst.msk [vmem:[#allocation2 + $0x4c] sm:$0xf] %vm530, %v517
      %551 = vst.msk [vmem:[#allocation2 + $0x50] sm:$0xf] %vm530, %v518
      %552 = vst.msk [vmem:[#allocation2 + $0x54] sm:$0xf] %vm530, %v519
      %553 = vst.msk [vmem:[#allocation2 + $0x58] sm:$0xf] %vm530, %v520
      %554 = vst.msk [vmem:[#allocation2 + $0x5c] sm:$0xf] %vm530, %v521
      %555 = vst.msk [vmem:[#allocation2 + $0x60] sm:$0xf] %vm530, %v522
      %556 = vst.msk [vmem:[#allocation2 + $0x64] sm:$0xf] %vm530, %v523
      %557 = vst.msk [vmem:[#allocation2 + $0x68] sm:$0xf] %vm530, %v524
      %558 = vst.msk [vmem:[#allocation2 + $0x6c] sm:$0xf] %vm530, %v525
      %559 = vst.msk [vmem:[#allocation2 + $0x70] sm:$0xf] %vm530, %v526
      %560 = vst.msk [vmem:[#allocation2 + $0x74] sm:$0xf] %vm530, %v527
      %561 = vst.msk [vmem:[#allocation2 + $0x78] sm:$0xf] %vm530, %v528
      %562 = vst.msk [vmem:[#allocation2 + $0x7c] sm:$0xf] %vm530, %v529
      %v563 = vpack.c.bf16 %v175, %v175
      %v564 = vpack.c.bf16 %v176, %v176
      %v565 = vpack.c.bf16 %v177, %v177
      %v566 = vpack.c.bf16 %v178, %v178
      %v567 = vpack.c.bf16 %v179, %v179
      %v568 = vpack.c.bf16 %v180, %v180
      %v569 = vpack.c.bf16 %v181, %v181
      %v570 = vpack.c.bf16 %v182, %v182
      %v571 = vpack.c.bf16 %v183, %v183
      %v572 = vpack.c.bf16 %v184, %v184
      %v573 = vpack.c.bf16 %v185, %v185
      %v574 = vpack.c.bf16 %v186, %v186
      %v575 = vpack.c.bf16 %v187, %v187
      %v576 = vpack.c.bf16 %v188, %v188
      %v577 = vpack.c.bf16 %v189, %v189
      %v578 = vpack.c.bf16 %v190, %v190
      %v579 = vpack.c.bf16 %v191, %v191
      %v580 = vpack.c.bf16 %v192, %v192
      %v581 = vpack.c.bf16 %v193, %v193
      %v582 = vpack.c.bf16 %v194, %v194
      %v583 = vpack.c.bf16 %v195, %v195
      %v584 = vpack.c.bf16 %v196, %v196
      %v585 = vpack.c.bf16 %v197, %v197
      %v586 = vpack.c.bf16 %v198, %v198
      %v587 = vpack.c.bf16 %v199, %v199
      %v588 = vpack.c.bf16 %v200, %v200
      %v589 = vpack.c.bf16 %v201, %v201
      %v590 = vpack.c.bf16 %v202, %v202
      %v591 = vpack.c.bf16 %v203, %v203
      %v592 = vpack.c.bf16 %v204, %v204
      %v593 = vpack.c.bf16 %v205, %v205
      %v594 = vpack.c.bf16 %v206, %v206
      %627 = vrot.lane.b32.xlu0 %v563, 8
      %v628 = vpop.permute.xlu0 %627
      %629 = vrot.lane.b32.xlu0 %v564, 8
      %v630 = vpop.permute.xlu0 %629
      %631 = vrot.lane.b32.xlu0 %v565, 8
      %v632 = vpop.permute.xlu0 %631
      %633 = vrot.lane.b32.xlu0 %v566, 8
      %v634 = vpop.permute.xlu0 %633
      %635 = vrot.lane.b32.xlu0 %v567, 8
      %v636 = vpop.permute.xlu0 %635
      %637 = vrot.lane.b32.xlu0 %v568, 8
      %v638 = vpop.permute.xlu0 %637
      %639 = vrot.lane.b32.xlu0 %v569, 8
      %v640 = vpop.permute.xlu0 %639
      %641 = vrot.lane.b32.xlu0 %v570, 8
      %v642 = vpop.permute.xlu0 %641
      %643 = vrot.lane.b32.xlu0 %v571, 8
      %v644 = vpop.permute.xlu0 %643
      %645 = vrot.lane.b32.xlu0 %v572, 8
      %v646 = vpop.permute.xlu0 %645
      %647 = vrot.lane.b32.xlu0 %v573, 8
      %v648 = vpop.permute.xlu0 %647
      %649 = vrot.lane.b32.xlu0 %v574, 8
      %v650 = vpop.permute.xlu0 %649
      %651 = vrot.lane.b32.xlu0 %v575, 8
      %v652 = vpop.permute.xlu0 %651
      %653 = vrot.lane.b32.xlu0 %v576, 8
      %v654 = vpop.permute.xlu0 %653
      %655 = vrot.lane.b32.xlu0 %v577, 8
      %v656 = vpop.permute.xlu0 %655
      %657 = vrot.lane.b32.xlu0 %v578, 8
      %v658 = vpop.permute.xlu0 %657
      %659 = vrot.lane.b32.xlu0 %v579, 8
      %v660 = vpop.permute.xlu0 %659
      %661 = vrot.lane.b32.xlu0 %v580, 8
      %v662 = vpop.permute.xlu0 %661
      %663 = vrot.lane.b32.xlu0 %v581, 8
      %v664 = vpop.permute.xlu0 %663
      %665 = vrot.lane.b32.xlu0 %v582, 8
      %v666 = vpop.permute.xlu0 %665
      %667 = vrot.lane.b32.xlu0 %v583, 8
      %v668 = vpop.permute.xlu0 %667
      %669 = vrot.lane.b32.xlu0 %v584, 8
      %v670 = vpop.permute.xlu0 %669
      %671 = vrot.lane.b32.xlu0 %v585, 8
      %v672 = vpop.permute.xlu0 %671
      %673 = vrot.lane.b32.xlu0 %v586, 8
      %v674 = vpop.permute.xlu0 %673
      %675 = vrot.lane.b32.xlu0 %v587, 8
      %v676 = vpop.permute.xlu0 %675
      %677 = vrot.lane.b32.xlu0 %v588, 8
      %v678 = vpop.permute.xlu0 %677
      %679 = vrot.lane.b32.xlu0 %v589, 8
      %v680 = vpop.permute.xlu0 %679
      %681 = vrot.lane.b32.xlu0 %v590, 8
      %v682 = vpop.permute.xlu0 %681
      %683 = vrot.lane.b32.xlu0 %v591, 8
      %v684 = vpop.permute.xlu0 %683
      %685 = vrot.lane.b32.xlu0 %v592, 8
      %v686 = vpop.permute.xlu0 %685
      %687 = vrot.lane.b32.xlu0 %v593, 8
      %v688 = vpop.permute.xlu0 %687
      %689 = vrot.lane.b32.xlu0 %v594, 8
      %v690 = vpop.permute.xlu0 %689
      %vm723 = vcmask 126016
      %724 = vst.msk [vmem:[#allocation2] sm:$0xf] %vm723, %v628
      %725 = vst.msk [vmem:[#allocation2 + $0x4] sm:$0xf] %vm723, %v630
      %726 = vst.msk [vmem:[#allocation2 + $0x8] sm:$0xf] %vm723, %v632
      %727 = vst.msk [vmem:[#allocation2 + $0xc] sm:$0xf] %vm723, %v634
      %728 = vst.msk [vmem:[#allocation2 + $0x10] sm:$0xf] %vm723, %v636
      %729 = vst.msk [vmem:[#allocation2 + $0x14] sm:$0xf] %vm723, %v638
      %730 = vst.msk [vmem:[#allocation2 + $0x18] sm:$0xf] %vm723, %v640
      %731 = vst.msk [vmem:[#allocation2 + $0x1c] sm:$0xf] %vm723, %v642
      %732 = vst.msk [vmem:[#allocation2 + $0x20] sm:$0xf] %vm723, %v644
      %733 = vst.msk [vmem:[#allocation2 + $0x24] sm:$0xf] %vm723, %v646
      %734 = vst.msk [vmem:[#allocation2 + $0x28] sm:$0xf] %vm723, %v648
      %735 = vst.msk [vmem:[#allocation2 + $0x2c] sm:$0xf] %vm723, %v650
      %736 = vst.msk [vmem:[#allocation2 + $0x30] sm:$0xf] %vm723, %v652
      %737 = vst.msk [vmem:[#allocation2 + $0x34] sm:$0xf] %vm723, %v654
      %738 = vst.msk [vmem:[#allocation2 + $0x38] sm:$0xf] %vm723, %v656
      %739 = vst.msk [vmem:[#allocation2 + $0x3c] sm:$0xf] %vm723, %v658
      %740 = vst.msk [vmem:[#allocation2 + $0x40] sm:$0xf] %vm723, %v660
      %741 = vst.msk [vmem:[#allocation2 + $0x44] sm:$0xf] %vm723, %v662
      %742 = vst.msk [vmem:[#allocation2 + $0x48] sm:$0xf] %vm723, %v664
      %743 = vst.msk [vmem:[#allocation2 + $0x4c] sm:$0xf] %vm723, %v666
      %744 = vst.msk [vmem:[#allocation2 + $0x50] sm:$0xf] %vm723, %v668
      %745 = vst.msk [vmem:[#allocation2 + $0x54] sm:$0xf] %vm723, %v670
      %746 = vst.msk [vmem:[#allocation2 + $0x58] sm:$0xf] %vm723, %v672
      %747 = vst.msk [vmem:[#allocation2 + $0x5c] sm:$0xf] %vm723, %v674
      %748 = vst.msk [vmem:[#allocation2 + $0x60] sm:$0xf] %vm723, %v676
      %749 = vst.msk [vmem:[#allocation2 + $0x64] sm:$0xf] %vm723, %v678
      %750 = vst.msk [vmem:[#allocation2 + $0x68] sm:$0xf] %vm723, %v680
      %751 = vst.msk [vmem:[#allocation2 + $0x6c] sm:$0xf] %vm723, %v682
      %752 = vst.msk [vmem:[#allocation2 + $0x70] sm:$0xf] %vm723, %v684
      %753 = vst.msk [vmem:[#allocation2 + $0x74] sm:$0xf] %vm723, %v686
      %754 = vst.msk [vmem:[#allocation2 + $0x78] sm:$0xf] %vm723, %v688
      %755 = vst.msk [vmem:[#allocation2 + $0x7c] sm:$0xf] %vm723, %v690
      %v756 = vrot.slane %v175, 1
      %v757 = vrot.slane %v176, 1
      %v758 = vrot.slane %v177, 1
      %v759 = vrot.slane %v178, 1
      %v760 = vrot.slane %v179, 1
      %v761 = vrot.slane %v180, 1
      %v762 = vrot.slane %v181, 1
      %v763 = vrot.slane %v182, 1
      %v764 = vrot.slane %v183, 1
      %v765 = vrot.slane %v184, 1
      %v766 = vrot.slane %v185, 1
      %v767 = vrot.slane %v186, 1
      %v768 = vrot.slane %v187, 1
      %v769 = vrot.slane %v188, 1
      %v770 = vrot.slane %v189, 1
      %v771 = vrot.slane %v190, 1
      %v772 = vrot.slane %v191, 1
      %v773 = vrot.slane %v192, 1
      %v774 = vrot.slane %v193, 1
      %v775 = vrot.slane %v194, 1
      %v776 = vrot.slane %v195, 1
      %v777 = vrot.slane %v196, 1
      %v778 = vrot.slane %v197, 1
      %v779 = vrot.slane %v198, 1
      %v780 = vrot.slane %v199, 1
      %v781 = vrot.slane %v200, 1
      %v782 = vrot.slane %v201, 1
      %v783 = vrot.slane %v202, 1
      %v784 = vrot.slane %v203, 1
      %v785 = vrot.slane %v204, 1
      %v786 = vrot.slane %v205, 1
      %v787 = vrot.slane %v206, 1
      %vm788 = vcmp.lt.s32.totalorder %v240, 7
      %v789 = vsel %vm788, %v786, %v787
      %v790 = vsel %vm788, %v785, %v786
      %v791 = vsel %vm788, %v784, %v785
      %v792 = vsel %vm788, %v783, %v784
      %v793 = vsel %vm788, %v782, %v783
      %v794 = vsel %vm788, %v781, %v782
      %v795 = vsel %vm788, %v780, %v781
      %v796 = vsel %vm788, %v779, %v780
      %v797 = vsel %vm788, %v778, %v779
      %v798 = vsel %vm788, %v777, %v778
      %v799 = vsel %vm788, %v776, %v777
      %v800 = vsel %vm788, %v775, %v776
      %v801 = vsel %vm788, %v774, %v775
      %v802 = vsel %vm788, %v773, %v774
      %v803 = vsel %vm788, %v772, %v773
      %v804 = vsel %vm788, %v771, %v772
      %v805 = vsel %vm788, %v770, %v771
      %v806 = vsel %vm788, %v769, %v770
      %v807 = vsel %vm788, %v768, %v769
      %v808 = vsel %vm788, %v767, %v768
      %v809 = vsel %vm788, %v766, %v767
      %v810 = vsel %vm788, %v765, %v766
      %v811 = vsel %vm788, %v764, %v765
      %v812 = vsel %vm788, %v763, %v764
      %v813 = vsel %vm788, %v762, %v763
      %v814 = vsel %vm788, %v761, %v762
      %v815 = vsel %vm788, %v760, %v761
      %v816 = vsel %vm788, %v759, %v760
      %v817 = vsel %vm788, %v758, %v759
      %v818 = vsel %vm788, %v757, %v758
      %v819 = vsel %vm788, %v756, %v757
      %v820 = vsel %vm788, %v787, %v756
      %v821 = vld [vmem:[%s2] sm:$0xff]
      %v822 = vld [vmem:[%s2 + $0x8] sm:$0xff]
      %v823 = vld [vmem:[%s2 + $0x10] sm:$0xff]
      %v824 = vld [vmem:[%s2 + $0x18] sm:$0xff]
      %v825 = vld [vmem:[%s2 + $0x20] sm:$0xff]
      %v826 = vld [vmem:[%s2 + $0x28] sm:$0xff]
      %v827 = vld [vmem:[%s2 + $0x30] sm:$0xff]
      %v828 = vld [vmem:[%s2 + $0x38] sm:$0xff]
      %v829 = vld [vmem:[%s2 + $0x40] sm:$0xff]
      %v830 = vld [vmem:[%s2 + $0x48] sm:$0xff]
      %v831 = vld [vmem:[%s2 + $0x50] sm:$0xff]
      %v832 = vld [vmem:[%s2 + $0x58] sm:$0xff]
      %v833 = vld [vmem:[%s2 + $0x60] sm:$0xff]
      %v834 = vld [vmem:[%s2 + $0x68] sm:$0xff]
      %v835 = vld [vmem:[%s2 + $0x70] sm:$0xff]
      %v836 = vld [vmem:[%s2 + $0x78] sm:$0xff]
      %v837 = vld [vmem:[%s2 + $0x80] sm:$0xff]
      %v838 = vld [vmem:[%s2 + $0x88] sm:$0xff]
      %v839 = vld [vmem:[%s2 + $0x90] sm:$0xff]
      %v840 = vld [vmem:[%s2 + $0x98] sm:$0xff]
      %v841 = vld [vmem:[%s2 + $0xa0] sm:$0xff]
      %v842 = vld [vmem:[%s2 + $0xa8] sm:$0xff]
      %v843 = vld [vmem:[%s2 + $0xb0] sm:$0xff]
      %v844 = vld [vmem:[%s2 + $0xb8] sm:$0xff]
      %v845 = vld [vmem:[%s2 + $0xc0] sm:$0xff]
      %v846 = vld [vmem:[%s2 + $0xc8] sm:$0xff]
      %v847 = vld [vmem:[%s2 + $0xd0] sm:$0xff]
      %v848 = vld [vmem:[%s2 + $0xd8] sm:$0xff]
      %v849 = vld [vmem:[%s2 + $0xe0] sm:$0xff]
      %v850 = vld [vmem:[%s2 + $0xe8] sm:$0xff]
      %v851 = vld [vmem:[%s2 + $0xf0] sm:$0xff]
      %v852 = vld [vmem:[%s2 + $0xf8] sm:$0xff]
      %854 = vset.pattern.permute.xlu0 2
      %855 = vperm.xlu0 %854, %v821
      %v856 = vpop.permute.xlu0 %855
      %859 = vset.pattern.permute.xlu0 2
      %860 = vperm.xlu0 %859, %v822
      %v861 = vpop.permute.xlu0 %860
      %864 = vset.pattern.permute.xlu0 2
      %865 = vperm.xlu0 %864, %v823
      %v866 = vpop.permute.xlu0 %865
      %869 = vset.pattern.permute.xlu0 2
      %870 = vperm.xlu0 %869, %v824
      %v871 = vpop.permute.xlu0 %870
      %874 = vset.pattern.permute.xlu0 2
      %875 = vperm.xlu0 %874, %v825
      %v876 = vpop.permute.xlu0 %875
      %879 = vset.pattern.permute.xlu0 2
      %880 = vperm.xlu0 %879, %v826
      %v881 = vpop.permute.xlu0 %880
      %884 = vset.pattern.permute.xlu0 2
      %885 = vperm.xlu0 %884, %v827
      %v886 = vpop.permute.xlu0 %885
      %889 = vset.pattern.permute.xlu0 2
      %890 = vperm.xlu0 %889, %v828
      %v891 = vpop.permute.xlu0 %890
      %894 = vset.pattern.permute.xlu0 2
      %895 = vperm.xlu0 %894, %v829
      %v896 = vpop.permute.xlu0 %895
      %899 = vset.pattern.permute.xlu0 2
      %900 = vperm.xlu0 %899, %v830
      %v901 = vpop.permute.xlu0 %900
      %904 = vset.pattern.permute.xlu0 2
      %905 = vperm.xlu0 %904, %v831
      %v906 = vpop.permute.xlu0 %905
      %909 = vset.pattern.permute.xlu0 2
      %910 = vperm.xlu0 %909, %v832
      %v911 = vpop.permute.xlu0 %910
      %914 = vset.pattern.permute.xlu0 2
      %915 = vperm.xlu0 %914, %v833
      %v916 = vpop.permute.xlu0 %915
      %919 = vset.pattern.permute.xlu0 2
      %920 = vperm.xlu0 %919, %v834
      %v921 = vpop.permute.xlu0 %920
      %924 = vset.pattern.permute.xlu0 2
      %925 = vperm.xlu0 %924, %v835
      %v926 = vpop.permute.xlu0 %925
      %929 = vset.pattern.permute.xlu0 2
      %930 = vperm.xlu0 %929, %v836
      %v931 = vpop.permute.xlu0 %930
      %934 = vset.pattern.permute.xlu0 2
      %935 = vperm.xlu0 %934, %v837
      %v936 = vpop.permute.xlu0 %935
      %939 = vset.pattern.permute.xlu0 2
      %940 = vperm.xlu0 %939, %v838
      %v941 = vpop.permute.xlu0 %940
      %944 = vset.pattern.permute.xlu0 2
      %945 = vperm.xlu0 %944, %v839
      %v946 = vpop.permute.xlu0 %945
      %949 = vset.pattern.permute.xlu0 2
      %950 = vperm.xlu0 %949, %v840
      %v951 = vpop.permute.xlu0 %950
      %954 = vset.pattern.permute.xlu0 2
      %955 = vperm.xlu0 %954, %v841
      %v956 = vpop.permute.xlu0 %955
      %959 = vset.pattern.permute.xlu0 2
      %960 = vperm.xlu0 %959, %v842
      %v961 = vpop.permute.xlu0 %960
      %964 = vset.pattern.permute.xlu0 2
      %965 = vperm.xlu0 %964, %v843
      %v966 = vpop.permute.xlu0 %965
      %969 = vset.pattern.permute.xlu0 2
      %970 = vperm.xlu0 %969, %v844
      %v971 = vpop.permute.xlu0 %970
      %974 = vset.pattern.permute.xlu0 2
      %975 = vperm.xlu0 %974, %v845
      %v976 = vpop.permute.xlu0 %975
      %979 = vset.pattern.permute.xlu0 2
      %980 = vperm.xlu0 %979, %v846
      %v981 = vpop.permute.xlu0 %980
      %984 = vset.pattern.permute.xlu0 2
      %985 = vperm.xlu0 %984, %v847
      %v986 = vpop.permute.xlu0 %985
      %989 = vset.pattern.permute.xlu0 2
      %990 = vperm.xlu0 %989, %v848
      %v991 = vpop.permute.xlu0 %990
      %994 = vset.pattern.permute.xlu0 2
      %995 = vperm.xlu0 %994, %v849
      %v996 = vpop.permute.xlu0 %995
      %999 = vset.pattern.permute.xlu0 2
      %1000 = vperm.xlu0 %999, %v850
      %v1001 = vpop.permute.xlu0 %1000
      %1004 = vset.pattern.permute.xlu0 2
      %1005 = vperm.xlu0 %1004, %v851
      %v1006 = vpop.permute.xlu0 %1005
      %1009 = vset.pattern.permute.xlu0 2
      %1010 = vperm.xlu0 %1009, %v852
      %v1011 = vpop.permute.xlu0 %1010
      %v1013 = vmul.f32 %v819, %v856
      %v1014 = vmul.f32 %v818, %v861
      %v1015 = vmul.f32 %v817, %v866
      %v1016 = vmul.f32 %v816, %v871
      %v1017 = vmul.f32 %v815, %v876
      %v1018 = vmul.f32 %v814, %v881
      %v1019 = vmul.f32 %v813, %v886
      %v1020 = vmul.f32 %v812, %v891
      %v1021 = vmul.f32 %v811, %v896
      %v1022 = vmul.f32 %v810, %v901
      %v1023 = vmul.f32 %v809, %v906
      %v1024 = vmul.f32 %v808, %v911
      %v1025 = vmul.f32 %v807, %v916
      %v1026 = vmul.f32 %v806, %v921
      %v1027 = vmul.f32 %v805, %v926
      %v1028 = vmul.f32 %v804, %v931
      %v1029 = vmul.f32 %v803, %v936
      %v1030 = vmul.f32 %v802, %v941
      %v1031 = vmul.f32 %v801, %v946
      %v1032 = vmul.f32 %v800, %v951
      %v1033 = vmul.f32 %v799, %v956
      %v1034 = vmul.f32 %v798, %v961
      %v1035 = vmul.f32 %v797, %v966
      %v1036 = vmul.f32 %v796, %v971
      %v1037 = vmul.f32 %v795, %v976
      %v1038 = vmul.f32 %v794, %v981
      %v1039 = vmul.f32 %v793, %v986
      %v1040 = vmul.f32 %v792, %v991
      %v1041 = vmul.f32 %v791, %v996
      %v1042 = vmul.f32 %v790, %v1001
      %v1043 = vmul.f32 %v789, %v1006
      %v1044 = vmul.f32 %v820, %v1011
      %v1045 = vpack.c.bf16 %v1013, %v1013
      %v1046 = vpack.c.bf16 %v1014, %v1014
      %v1047 = vpack.c.bf16 %v1015, %v1015
      %v1048 = vpack.c.bf16 %v1016, %v1016
      %v1049 = vpack.c.bf16 %v1017, %v1017
      %v1050 = vpack.c.bf16 %v1018, %v1018
      %v1051 = vpack.c.bf16 %v1019, %v1019
      %v1052 = vpack.c.bf16 %v1020, %v1020
      %v1053 = vpack.c.bf16 %v1021, %v1021
      %v1054 = vpack.c.bf16 %v1022, %v1022
      %v1055 = vpack.c.bf16 %v1023, %v1023
      %v1056 = vpack.c.bf16 %v1024, %v1024
      %v1057 = vpack.c.bf16 %v1025, %v1025
      %v1058 = vpack.c.bf16 %v1026, %v1026
      %v1059 = vpack.c.bf16 %v1027, %v1027
      %v1060 = vpack.c.bf16 %v1028, %v1028
      %v1061 = vpack.c.bf16 %v1029, %v1029
      %v1062 = vpack.c.bf16 %v1030, %v1030
      %v1063 = vpack.c.bf16 %v1031, %v1031
      %v1064 = vpack.c.bf16 %v1032, %v1032
      %v1065 = vpack.c.bf16 %v1033, %v1033
      %v1066 = vpack.c.bf16 %v1034, %v1034
      %v1067 = vpack.c.bf16 %v1035, %v1035
      %v1068 = vpack.c.bf16 %v1036, %v1036
      %v1069 = vpack.c.bf16 %v1037, %v1037
      %v1070 = vpack.c.bf16 %v1038, %v1038
      %v1071 = vpack.c.bf16 %v1039, %v1039
      %v1072 = vpack.c.bf16 %v1040, %v1040
      %v1073 = vpack.c.bf16 %v1041, %v1041
      %v1074 = vpack.c.bf16 %v1042, %v1042
      %v1075 = vpack.c.bf16 %v1043, %v1043
      %v1076 = vpack.c.bf16 %v1044, %v1044
      %1109 = vrot.lane.b32.xlu0 %v1045, 16
      %v1110 = vpop.permute.xlu0 %1109
      %1111 = vrot.lane.b32.xlu0 %v1046, 16
      %v1112 = vpop.permute.xlu0 %1111
      %1113 = vrot.lane.b32.xlu0 %v1047, 16
      %v1114 = vpop.permute.xlu0 %1113
      %1115 = vrot.lane.b32.xlu0 %v1048, 16
      %v1116 = vpop.permute.xlu0 %1115
      %1117 = vrot.lane.b32.xlu0 %v1049, 16
      %v1118 = vpop.permute.xlu0 %1117
      %1119 = vrot.lane.b32.xlu0 %v1050, 16
      %v1120 = vpop.permute.xlu0 %1119
      %1121 = vrot.lane.b32.xlu0 %v1051, 16
      %v1122 = vpop.permute.xlu0 %1121
      %1123 = vrot.lane.b32.xlu0 %v1052, 16
      %v1124 = vpop.permute.xlu0 %1123
      %1125 = vrot.lane.b32.xlu0 %v1053, 16
      %v1126 = vpop.permute.xlu0 %1125
      %1127 = vrot.lane.b32.xlu0 %v1054, 16
      %v1128 = vpop.permute.xlu0 %1127
      %1129 = vrot.lane.b32.xlu0 %v1055, 16
      %v1130 = vpop.permute.xlu0 %1129
      %1131 = vrot.lane.b32.xlu0 %v1056, 16
      %v1132 = vpop.permute.xlu0 %1131
      %1133 = vrot.lane.b32.xlu0 %v1057, 16
      %v1134 = vpop.permute.xlu0 %1133
      %1135 = vrot.lane.b32.xlu0 %v1058, 16
      %v1136 = vpop.permute.xlu0 %1135
      %1137 = vrot.lane.b32.xlu0 %v1059, 16
      %v1138 = vpop.permute.xlu0 %1137
      %1139 = vrot.lane.b32.xlu0 %v1060, 16
      %v1140 = vpop.permute.xlu0 %1139
      %1141 = vrot.lane.b32.xlu0 %v1061, 16
      %v1142 = vpop.permute.xlu0 %1141
      %1143 = vrot.lane.b32.xlu0 %v1062, 16
      %v1144 = vpop.permute.xlu0 %1143
      %1145 = vrot.lane.b32.xlu0 %v1063, 16
      %v1146 = vpop.permute.xlu0 %1145
      %1147 = vrot.lane.b32.xlu0 %v1064, 16
      %v1148 = vpop.permute.xlu0 %1147
      %1149 = vrot.lane.b32.xlu0 %v1065, 16
      %v1150 = vpop.permute.xlu0 %1149
      %1151 = vrot.lane.b32.xlu0 %v1066, 16
      %v1152 = vpop.permute.xlu0 %1151
      %1153 = vrot.lane.b32.xlu0 %v1067, 16
      %v1154 = vpop.permute.xlu0 %1153
      %1155 = vrot.lane.b32.xlu0 %v1068, 16
      %v1156 = vpop.permute.xlu0 %1155
      %1157 = vrot.lane.b32.xlu0 %v1069, 16
      %v1158 = vpop.permute.xlu0 %1157
      %1159 = vrot.lane.b32.xlu0 %v1070, 16
      %v1160 = vpop.permute.xlu0 %1159
      %1161 = vrot.lane.b32.xlu0 %v1071, 16
      %v1162 = vpop.permute.xlu0 %1161
      %1163 = vrot.lane.b32.xlu0 %v1072, 16
      %v1164 = vpop.permute.xlu0 %1163
      %1165 = vrot.lane.b32.xlu0 %v1073, 16
      %v1166 = vpop.permute.xlu0 %1165
      %1167 = vrot.lane.b32.xlu0 %v1074, 16
      %v1168 = vpop.permute.xlu0 %1167
      %1169 = vrot.lane.b32.xlu0 %v1075, 16
      %v1170 = vpop.permute.xlu0 %1169
      %1171 = vrot.lane.b32.xlu0 %v1076, 16
      %v1172 = vpop.permute.xlu0 %1171
      %vm1205 = vcmask 191616
      %1206 = vst.msk [vmem:[#allocation2] sm:$0xf] %vm1205, %v1110
      %1207 = vst.msk [vmem:[#allocation2 + $0x4] sm:$0xf] %vm1205, %v1112
      %1208 = vst.msk [vmem:[#allocation2 + $0x8] sm:$0xf] %vm1205, %v1114
      %1209 = vst.msk [vmem:[#allocation2 + $0xc] sm:$0xf] %vm1205, %v1116
      %1210 = vst.msk [vmem:[#allocation2 + $0x10] sm:$0xf] %vm1205, %v1118
      %1211 = vst.msk [vmem:[#allocation2 + $0x14] sm:$0xf] %vm1205, %v1120
      %1212 = vst.msk [vmem:[#allocation2 + $0x18] sm:$0xf] %vm1205, %v1122
      %1213 = vst.msk [vmem:[#allocation2 + $0x1c] sm:$0xf] %vm1205, %v1124
      %1214 = vst.msk [vmem:[#allocation2 + $0x20] sm:$0xf] %vm1205, %v1126
      %1215 = vst.msk [vmem:[#allocation2 + $0x24] sm:$0xf] %vm1205, %v1128
      %1216 = vst.msk [vmem:[#allocation2 + $0x28] sm:$0xf] %vm1205, %v1130
      %1217 = vst.msk [vmem:[#allocation2 + $0x2c] sm:$0xf] %vm1205, %v1132
      %1218 = vst.msk [vmem:[#allocation2 + $0x30] sm:$0xf] %vm1205, %v1134
      %1219 = vst.msk [vmem:[#allocation2 + $0x34] sm:$0xf] %vm1205, %v1136
      %1220 = vst.msk [vmem:[#allocation2 + $0x38] sm:$0xf] %vm1205, %v1138
      %1221 = vst.msk [vmem:[#allocation2 + $0x3c] sm:$0xf] %vm1205, %v1140
      %1222 = vst.msk [vmem:[#allocation2 + $0x40] sm:$0xf] %vm1205, %v1142
      %1223 = vst.msk [vmem:[#allocation2 + $0x44] sm:$0xf] %vm1205, %v1144
      %1224 = vst.msk [vmem:[#allocation2 + $0x48] sm:$0xf] %vm1205, %v1146
      %1225 = vst.msk [vmem:[#allocation2 + $0x4c] sm:$0xf] %vm1205, %v1148
      %1226 = vst.msk [vmem:[#allocation2 + $0x50] sm:$0xf] %vm1205, %v1150
      %1227 = vst.msk [vmem:[#allocation2 + $0x54] sm:$0xf] %vm1205, %v1152
      %1228 = vst.msk [vmem:[#allocation2 + $0x58] sm:$0xf] %vm1205, %v1154
      %1229 = vst.msk [vmem:[#allocation2 + $0x5c] sm:$0xf] %vm1205, %v1156
      %1230 = vst.msk [vmem:[#allocation2 + $0x60] sm:$0xf] %vm1205, %v1158
      %1231 = vst.msk [vmem:[#allocation2 + $0x64] sm:$0xf] %vm1205, %v1160
      %1232 = vst.msk [vmem:[#allocation2 + $0x68] sm:$0xf] %vm1205, %v1162
      %1233 = vst.msk [vmem:[#allocation2 + $0x6c] sm:$0xf] %vm1205, %v1164
      %1234 = vst.msk [vmem:[#allocation2 + $0x70] sm:$0xf] %vm1205, %v1166
      %1235 = vst.msk [vmem:[#allocation2 + $0x74] sm:$0xf] %vm1205, %v1168
      %1236 = vst.msk [vmem:[#allocation2 + $0x78] sm:$0xf] %vm1205, %v1170
      %1237 = vst.msk [vmem:[#allocation2 + $0x7c] sm:$0xf] %vm1205, %v1172
      %v1238 = vld [vmem:[%s2] sm:$0xff]
      %v1239 = vld [vmem:[%s2 + $0x8] sm:$0xff]
      %v1240 = vld [vmem:[%s2 + $0x10] sm:$0xff]
      %v1241 = vld [vmem:[%s2 + $0x18] sm:$0xff]
      %v1242 = vld [vmem:[%s2 + $0x20] sm:$0xff]
      %v1243 = vld [vmem:[%s2 + $0x28] sm:$0xff]
      %v1244 = vld [vmem:[%s2 + $0x30] sm:$0xff]
      %v1245 = vld [vmem:[%s2 + $0x38] sm:$0xff]
      %v1246 = vld [vmem:[%s2 + $0x40] sm:$0xff]
      %v1247 = vld [vmem:[%s2 + $0x48] sm:$0xff]
      %v1248 = vld [vmem:[%s2 + $0x50] sm:$0xff]
      %v1249 = vld [vmem:[%s2 + $0x58] sm:$0xff]
      %v1250 = vld [vmem:[%s2 + $0x60] sm:$0xff]
      %v1251 = vld [vmem:[%s2 + $0x68] sm:$0xff]
      %v1252 = vld [vmem:[%s2 + $0x70] sm:$0xff]
      %v1253 = vld [vmem:[%s2 + $0x78] sm:$0xff]
      %v1254 = vld [vmem:[%s2 + $0x80] sm:$0xff]
      %v1255 = vld [vmem:[%s2 + $0x88] sm:$0xff]
      %v1256 = vld [vmem:[%s2 + $0x90] sm:$0xff]
      %v1257 = vld [vmem:[%s2 + $0x98] sm:$0xff]
      %v1258 = vld [vmem:[%s2 + $0xa0] sm:$0xff]
      %v1259 = vld [vmem:[%s2 + $0xa8] sm:$0xff]
      %v1260 = vld [vmem:[%s2 + $0xb0] sm:$0xff]
      %v1261 = vld [vmem:[%s2 + $0xb8] sm:$0xff]
      %v1262 = vld [vmem:[%s2 + $0xc0] sm:$0xff]
      %v1263 = vld [vmem:[%s2 + $0xc8] sm:$0xff]
      %v1264 = vld [vmem:[%s2 + $0xd0] sm:$0xff]
      %v1265 = vld [vmem:[%s2 + $0xd8] sm:$0xff]
      %v1266 = vld [vmem:[%s2 + $0xe0] sm:$0xff]
      %v1267 = vld [vmem:[%s2 + $0xe8] sm:$0xff]
      %v1268 = vld [vmem:[%s2 + $0xf0] sm:$0xff]
      %v1269 = vld [vmem:[%s2 + $0xf8] sm:$0xff]
      %v1270 = vpack.c.bf16 %v1238, %v1238
      %v1271 = vpack.c.bf16 %v1239, %v1239
      %v1272 = vpack.c.bf16 %v1240, %v1240
      %v1273 = vpack.c.bf16 %v1241, %v1241
      %v1274 = vpack.c.bf16 %v1242, %v1242
      %v1275 = vpack.c.bf16 %v1243, %v1243
      %v1276 = vpack.c.bf16 %v1244, %v1244
      %v1277 = vpack.c.bf16 %v1245, %v1245
      %v1278 = vpack.c.bf16 %v1246, %v1246
      %v1279 = vpack.c.bf16 %v1247, %v1247
      %v1280 = vpack.c.bf16 %v1248, %v1248
      %v1281 = vpack.c.bf16 %v1249, %v1249
      %v1282 = vpack.c.bf16 %v1250, %v1250
      %v1283 = vpack.c.bf16 %v1251, %v1251
      %v1284 = vpack.c.bf16 %v1252, %v1252
      %v1285 = vpack.c.bf16 %v1253, %v1253
      %v1286 = vpack.c.bf16 %v1254, %v1254
      %v1287 = vpack.c.bf16 %v1255, %v1255
      %v1288 = vpack.c.bf16 %v1256, %v1256
      %v1289 = vpack.c.bf16 %v1257, %v1257
      %v1290 = vpack.c.bf16 %v1258, %v1258
      %v1291 = vpack.c.bf16 %v1259, %v1259
      %v1292 = vpack.c.bf16 %v1260, %v1260
      %v1293 = vpack.c.bf16 %v1261, %v1261
      %v1294 = vpack.c.bf16 %v1262, %v1262
      %v1295 = vpack.c.bf16 %v1263, %v1263
      %v1296 = vpack.c.bf16 %v1264, %v1264
      %v1297 = vpack.c.bf16 %v1265, %v1265
      %v1298 = vpack.c.bf16 %v1266, %v1266
      %v1299 = vpack.c.bf16 %v1267, %v1267
      %v1300 = vpack.c.bf16 %v1268, %v1268
      %v1301 = vpack.c.bf16 %v1269, %v1269
      %1334 = vrot.lane.b32.xlu0 %v1270, 24
      %v1335 = vpop.permute.xlu0 %1334
      %1336 = vrot.lane.b32.xlu0 %v1271, 24
      %v1337 = vpop.permute.xlu0 %1336
      %1338 = vrot.lane.b32.xlu0 %v1272, 24
      %v1339 = vpop.permute.xlu0 %1338
      %1340 = vrot.lane.b32.xlu0 %v1273, 24
      %v1341 = vpop.permute.xlu0 %1340
      %1342 = vrot.lane.b32.xlu0 %v1274, 24
      %v1343 = vpop.permute.xlu0 %1342
      %1344 = vrot.lane.b32.xlu0 %v1275, 24
      %v1345 = vpop.permute.xlu0 %1344
      %1346 = vrot.lane.b32.xlu0 %v1276, 24
      %v1347 = vpop.permute.xlu0 %1346
      %1348 = vrot.lane.b32.xlu0 %v1277, 24
      %v1349 = vpop.permute.xlu0 %1348
      %1350 = vrot.lane.b32.xlu0 %v1278, 24
      %v1351 = vpop.permute.xlu0 %1350
      %1352 = vrot.lane.b32.xlu0 %v1279, 24
      %v1353 = vpop.permute.xlu0 %1352
      %1354 = vrot.lane.b32.xlu0 %v1280, 24
      %v1355 = vpop.permute.xlu0 %1354
      %1356 = vrot.lane.b32.xlu0 %v1281, 24
      %v1357 = vpop.permute.xlu0 %1356
      %1358 = vrot.lane.b32.xlu0 %v1282, 24
      %v1359 = vpop.permute.xlu0 %1358
      %1360 = vrot.lane.b32.xlu0 %v1283, 24
      %v1361 = vpop.permute.xlu0 %1360
      %1362 = vrot.lane.b32.xlu0 %v1284, 24
      %v1363 = vpop.permute.xlu0 %1362
      %1364 = vrot.lane.b32.xlu0 %v1285, 24
      %v1365 = vpop.permute.xlu0 %1364
      %1366 = vrot.lane.b32.xlu0 %v1286, 24
      %v1367 = vpop.permute.xlu0 %1366
      %1368 = vrot.lane.b32.xlu0 %v1287, 24
      %v1369 = vpop.permute.xlu0 %1368
      %1370 = vrot.lane.b32.xlu0 %v1288, 24
      %v1371 = vpop.permute.xlu0 %1370
      %1372 = vrot.lane.b32.xlu0 %v1289, 24
      %v1373 = vpop.permute.xlu0 %1372
      %1374 = vrot.lane.b32.xlu0 %v1290, 24
      %v1375 = vpop.permute.xlu0 %1374
      %1376 = vrot.lane.b32.xlu0 %v1291, 24
      %v1377 = vpop.permute.xlu0 %1376
      %1378 = vrot.lane.b32.xlu0 %v1292, 24
      %v1379 = vpop.permute.xlu0 %1378
      %1380 = vrot.lane.b32.xlu0 %v1293, 24
      %v1381 = vpop.permute.xlu0 %1380
      %1382 = vrot.lane.b32.xlu0 %v1294, 24
      %v1383 = vpop.permute.xlu0 %1382
      %1384 = vrot.lane.b32.xlu0 %v1295, 24
      %v1385 = vpop.permute.xlu0 %1384
      %1386 = vrot.lane.b32.xlu0 %v1296, 24
      %v1387 = vpop.permute.xlu0 %1386
      %1388 = vrot.lane.b32.xlu0 %v1297, 24
      %v1389 = vpop.permute.xlu0 %1388
      %1390 = vrot.lane.b32.xlu0 %v1298, 24
      %v1391 = vpop.permute.xlu0 %1390
      %1392 = vrot.lane.b32.xlu0 %v1299, 24
      %v1393 = vpop.permute.xlu0 %1392
      %1394 = vrot.lane.b32.xlu0 %v1300, 24
      %v1395 = vpop.permute.xlu0 %1394
      %1396 = vrot.lane.b32.xlu0 %v1301, 24
      %v1397 = vpop.permute.xlu0 %1396
      %vm1430 = vcmask 257216
      %1431 = vst.msk [vmem:[#allocation2] sm:$0xf] %vm1430, %v1335
      %1432 = vst.msk [vmem:[#allocation2 + $0x4] sm:$0xf] %vm1430, %v1337
      %1433 = vst.msk [vmem:[#allocation2 + $0x8] sm:$0xf] %vm1430, %v1339
      %1434 = vst.msk [vmem:[#allocation2 + $0xc] sm:$0xf] %vm1430, %v1341
      %1435 = vst.msk [vmem:[#allocation2 + $0x10] sm:$0xf] %vm1430, %v1343
      %1436 = vst.msk [vmem:[#allocation2 + $0x14] sm:$0xf] %vm1430, %v1345
      %1437 = vst.msk [vmem:[#allocation2 + $0x18] sm:$0xf] %vm1430, %v1347
      %1438 = vst.msk [vmem:[#allocation2 + $0x1c] sm:$0xf] %vm1430, %v1349
      %1439 = vst.msk [vmem:[#allocation2 + $0x20] sm:$0xf] %vm1430, %v1351
      %1440 = vst.msk [vmem:[#allocation2 + $0x24] sm:$0xf] %vm1430, %v1353
      %1441 = vst.msk [vmem:[#allocation2 + $0x28] sm:$0xf] %vm1430, %v1355
      %1442 = vst.msk [vmem:[#allocation2 + $0x2c] sm:$0xf] %vm1430, %v1357
      %1443 = vst.msk [vmem:[#allocation2 + $0x30] sm:$0xf] %vm1430, %v1359
      %1444 = vst.msk [vmem:[#allocation2 + $0x34] sm:$0xf] %vm1430, %v1361
      %1445 = vst.msk [vmem:[#allocation2 + $0x38] sm:$0xf] %vm1430, %v1363
      %1446 = vst.msk [vmem:[#allocation2 + $0x3c] sm:$0xf] %vm1430, %v1365
      %1447 = vst.msk [vmem:[#allocation2 + $0x40] sm:$0xf] %vm1430, %v1367
      %1448 = vst.msk [vmem:[#allocation2 + $0x44] sm:$0xf] %vm1430, %v1369
      %1449 = vst.msk [vmem:[#allocation2 + $0x48] sm:$0xf] %vm1430, %v1371
      %1450 = vst.msk [vmem:[#allocation2 + $0x4c] sm:$0xf] %vm1430, %v1373
      %1451 = vst.msk [vmem:[#allocation2 + $0x50] sm:$0xf] %vm1430, %v1375
      %1452 = vst.msk [vmem:[#allocation2 + $0x54] sm:$0xf] %vm1430, %v1377
      %1453 = vst.msk [vmem:[#allocation2 + $0x58] sm:$0xf] %vm1430, %v1379
      %1454 = vst.msk [vmem:[#allocation2 + $0x5c] sm:$0xf] %vm1430, %v1381
      %1455 = vst.msk [vmem:[#allocation2 + $0x60] sm:$0xf] %vm1430, %v1383
      %1456 = vst.msk [vmem:[#allocation2 + $0x64] sm:$0xf] %vm1430, %v1385
      %1457 = vst.msk [vmem:[#allocation2 + $0x68] sm:$0xf] %vm1430, %v1387
      %1458 = vst.msk [vmem:[#allocation2 + $0x6c] sm:$0xf] %vm1430, %v1389
      %1459 = vst.msk [vmem:[#allocation2 + $0x70] sm:$0xf] %vm1430, %v1391
      %1460 = vst.msk [vmem:[#allocation2 + $0x74] sm:$0xf] %vm1430, %v1393
      %1461 = vst.msk [vmem:[#allocation2 + $0x78] sm:$0xf] %vm1430, %v1395
      %1462 = vst.msk [vmem:[#allocation2 + $0x7c] sm:$0xf] %vm1430, %v1397
      %v1463 = vld [vmem:[#allocation2] sm:$0xf]
      %v1464 = vld [vmem:[#allocation2 + $0x4] sm:$0xf]
      %v1465 = vld [vmem:[#allocation2 + $0x8] sm:$0xf]
      %v1466 = vld [vmem:[#allocation2 + $0xc] sm:$0xf]
      %v1467 = vld [vmem:[#allocation2 + $0x10] sm:$0xf]
      %v1468 = vld [vmem:[#allocation2 + $0x14] sm:$0xf]
      %v1469 = vld [vmem:[#allocation2 + $0x18] sm:$0xf]
      %v1470 = vld [vmem:[#allocation2 + $0x1c] sm:$0xf]
      %v1471 = vld [vmem:[#allocation2 + $0x20] sm:$0xf]
      %v1472 = vld [vmem:[#allocation2 + $0x24] sm:$0xf]
      %v1473 = vld [vmem:[#allocation2 + $0x28] sm:$0xf]
      %v1474 = vld [vmem:[#allocation2 + $0x2c] sm:$0xf]
      %v1475 = vld [vmem:[#allocation2 + $0x30] sm:$0xf]
      %v1476 = vld [vmem:[#allocation2 + $0x34] sm:$0xf]
      %v1477 = vld [vmem:[#allocation2 + $0x38] sm:$0xf]
      %v1478 = vld [vmem:[#allocation2 + $0x3c] sm:$0xf]
      %v1479 = vld [vmem:[#allocation2 + $0x40] sm:$0xf]
      %v1480 = vld [vmem:[#allocation2 + $0x44] sm:$0xf]
      %v1481 = vld [vmem:[#allocation2 + $0x48] sm:$0xf]
      %v1482 = vld [vmem:[#allocation2 + $0x4c] sm:$0xf]
      %v1483 = vld [vmem:[#allocation2 + $0x50] sm:$0xf]
      %v1484 = vld [vmem:[#allocation2 + $0x54] sm:$0xf]
      %v1485 = vld [vmem:[#allocation2 + $0x58] sm:$0xf]
      %v1486 = vld [vmem:[#allocation2 + $0x5c] sm:$0xf]
      %v1487 = vld [vmem:[#allocation2 + $0x60] sm:$0xf]
      %v1488 = vld [vmem:[#allocation2 + $0x64] sm:$0xf]
      %v1489 = vld [vmem:[#allocation2 + $0x68] sm:$0xf]
      %v1490 = vld [vmem:[#allocation2 + $0x6c] sm:$0xf]
      %v1491 = vld [vmem:[#allocation2 + $0x70] sm:$0xf]
      %v1492 = vld [vmem:[#allocation2 + $0x74] sm:$0xf]
      %v1493 = vld [vmem:[#allocation2 + $0x78] sm:$0xf]
      %v1494 = vld [vmem:[#allocation2 + $0x7c] sm:$0xf]
      %v1495 = vld [vmem:[%s1] sm:$0xf]
      %v1496 = vld [vmem:[%s1 + $0x4] sm:$0xf]
      %v1497 = vld [vmem:[%s1 + $0x8] sm:$0xf]
      %v1498 = vld [vmem:[%s1 + $0xc] sm:$0xf]
      %v1531 = vunpack.c.l.b16 %v1463
      %v1532 = vunpack.c.l.b16 %v1464
      %v1533 = vunpack.c.l.b16 %v1465
      %v1534 = vunpack.c.l.b16 %v1466
      %v1535 = vunpack.c.l.b16 %v1467
      %v1536 = vunpack.c.l.b16 %v1468
      %v1537 = vunpack.c.l.b16 %v1469
      %v1538 = vunpack.c.l.b16 %v1470
      %v1539 = vunpack.c.l.b16 %v1471
      %v1540 = vunpack.c.l.b16 %v1472
      %v1541 = vunpack.c.l.b16 %v1473
      %v1542 = vunpack.c.l.b16 %v1474
      %v1543 = vunpack.c.l.b16 %v1475
      %v1544 = vunpack.c.l.b16 %v1476
      %v1545 = vunpack.c.l.b16 %v1477
      %v1546 = vunpack.c.l.b16 %v1478
      %v1547 = vunpack.c.l.b16 %v1479
      %v1548 = vunpack.c.l.b16 %v1480
      %v1549 = vunpack.c.l.b16 %v1481
      %v1550 = vunpack.c.l.b16 %v1482
      %v1551 = vunpack.c.l.b16 %v1483
      %v1552 = vunpack.c.l.b16 %v1484
      %v1553 = vunpack.c.l.b16 %v1485
      %v1554 = vunpack.c.l.b16 %v1486
      %v1555 = vunpack.c.l.b16 %v1487
      %v1556 = vunpack.c.l.b16 %v1488
      %v1557 = vunpack.c.l.b16 %v1489
      %v1558 = vunpack.c.l.b16 %v1490
      %v1559 = vunpack.c.l.b16 %v1491
      %v1560 = vunpack.c.l.b16 %v1492
      %v1561 = vunpack.c.l.b16 %v1493
      %v1562 = vunpack.c.l.b16 %v1494
      %v1563 = vpack.c.b16 %v1532, %v1531
      %v1564 = vpack.c.b16 %v1534, %v1533
      %v1565 = vpack.c.b16 %v1536, %v1535
      %v1566 = vpack.c.b16 %v1538, %v1537
      %v1567 = vpack.c.b16 %v1540, %v1539
      %v1568 = vpack.c.b16 %v1542, %v1541
      %v1569 = vpack.c.b16 %v1544, %v1543
      %v1570 = vpack.c.b16 %v1546, %v1545
      %v1571 = vpack.c.b16 %v1548, %v1547
      %v1572 = vpack.c.b16 %v1550, %v1549
      %v1573 = vpack.c.b16 %v1552, %v1551
      %v1574 = vpack.c.b16 %v1554, %v1553
      %v1575 = vpack.c.b16 %v1556, %v1555
      %v1576 = vpack.c.b16 %v1558, %v1557
      %v1577 = vpack.c.b16 %v1560, %v1559
      %v1578 = vpack.c.b16 %v1562, %v1561
      %v1583 = vunpack.c.l.b16 %v1495
      %v1584 = vunpack.c.l.b16 %v1496
      %v1585 = vunpack.c.l.b16 %v1497
      %v1586 = vunpack.c.l.b16 %v1498
      %v1587 = vpack.c.b16 %v1584, %v1583
      %v1588 = vpack.c.b16 %v1586, %v1585
      %vm1591 = vcmask 261120
      %v1593 = vsel %vm1591, %v1563, 0
      %v1596 = vsel %vm1591, %v1564, 0
      %v1599 = vsel %vm1591, %v1565, 0
      %v1602 = vsel %vm1591, %v1566, 0
      %v1605 = vsel %vm1591, %v1567, 0
      %v1608 = vsel %vm1591, %v1568, 0
      %v1611 = vsel %vm1591, %v1569, 0
      %v1614 = vsel %vm1591, %v1570, 0
      %v1617 = vsel %vm1591, %v1571, 0
      %v1620 = vsel %vm1591, %v1572, 0
      %v1623 = vsel %vm1591, %v1573, 0
      %v1626 = vsel %vm1591, %v1574, 0
      %v1629 = vsel %vm1591, %v1575, 0
      %v1632 = vsel %vm1591, %v1576, 0
      %v1635 = vsel %vm1591, %v1577, 0
      %v1638 = vsel %vm1591, %v1578, 0
      %1640 = vmatpush.bf16.msra.mxu0 0
      %1641 = vmatpush.bf16.msra.mxu0 0
      %1642 = vmatpush.bf16.msra.mxu0 0
      %1643 = vmatpush.bf16.msra.mxu0 0
      %1644 = vmatpush.bf16.msra.mxu0 0
      %1645 = vmatpush.bf16.msra.mxu0 0
      %1646 = vmatpush.bf16.msra.mxu0 %v1588
      %1647 = vmatpush.bf16.msra.mxu0 %v1587
      %1648 = vmatmul.bf16.gmra.mxu0 %v1593
      %v1649 = vpop.f32.mrf.mxu0
      %v1650 = vadd.f32 0.0, %v1649
      %v1651 = vpop.f32.mrf.mxu0
      %v1652 = vadd.f32 0.0, %v1651
      %1653 = vmatmul.bf16.gmra.mxu0 %v1596
      %v1654 = vpop.f32.mrf.mxu0
      %v1655 = vadd.f32 0.0, %v1654
      %v1656 = vpop.f32.mrf.mxu0
      %v1657 = vadd.f32 0.0, %v1656
      %1658 = vmatmul.bf16.gmra.mxu0 %v1599
      %v1659 = vpop.f32.mrf.mxu0
      %v1660 = vadd.f32 0.0, %v1659
      %v1661 = vpop.f32.mrf.mxu0
      %v1662 = vadd.f32 0.0, %v1661
      %1663 = vmatmul.bf16.gmra.mxu0 %v1602
      %v1664 = vpop.f32.mrf.mxu0
      %v1665 = vadd.f32 0.0, %v1664
      %v1666 = vpop.f32.mrf.mxu0
      %v1667 = vadd.f32 0.0, %v1666
      %1668 = vmatmul.bf16.gmra.mxu0 %v1605
      %v1669 = vpop.f32.mrf.mxu0
      %v1670 = vadd.f32 0.0, %v1669
      %v1671 = vpop.f32.mrf.mxu0
      %v1672 = vadd.f32 0.0, %v1671
      %1673 = vmatmul.bf16.gmra.mxu0 %v1608
      %v1674 = vpop.f32.mrf.mxu0
      %v1675 = vadd.f32 0.0, %v1674
      %v1676 = vpop.f32.mrf.mxu0
      %v1677 = vadd.f32 0.0, %v1676
      %1678 = vmatmul.bf16.gmra.mxu0 %v1611
      %v1679 = vpop.f32.mrf.mxu0
      %v1680 = vadd.f32 0.0, %v1679
      %v1681 = vpop.f32.mrf.mxu0
      %v1682 = vadd.f32 0.0, %v1681
      %1683 = vmatmul.bf16.gmra.mxu0 %v1614
      %v1684 = vpop.f32.mrf.mxu0
      %v1685 = vadd.f32 0.0, %v1684
      %v1686 = vpop.f32.mrf.mxu0
      %v1687 = vadd.f32 0.0, %v1686
      %1688 = vmatmul.bf16.gmra.mxu0 %v1617
      %v1689 = vpop.f32.mrf.mxu0
      %v1690 = vadd.f32 0.0, %v1689
      %v1691 = vpop.f32.mrf.mxu0
      %v1692 = vadd.f32 0.0, %v1691
      %1693 = vmatmul.bf16.gmra.mxu0 %v1620
      %v1694 = vpop.f32.mrf.mxu0
      %v1695 = vadd.f32 0.0, %v1694
      %v1696 = vpop.f32.mrf.mxu0
      %v1697 = vadd.f32 0.0, %v1696
      %1698 = vmatmul.bf16.gmra.mxu0 %v1623
      %v1699 = vpop.f32.mrf.mxu0
      %v1700 = vadd.f32 0.0, %v1699
      %v1701 = vpop.f32.mrf.mxu0
      %v1702 = vadd.f32 0.0, %v1701
      %1703 = vmatmul.bf16.gmra.mxu0 %v1626
      %v1704 = vpop.f32.mrf.mxu0
      %v1705 = vadd.f32 0.0, %v1704
      %v1706 = vpop.f32.mrf.mxu0
      %v1707 = vadd.f32 0.0, %v1706
      %1708 = vmatmul.bf16.gmra.mxu0 %v1629
      %v1709 = vpop.f32.mrf.mxu0
      %v1710 = vadd.f32 0.0, %v1709
      %v1711 = vpop.f32.mrf.mxu0
      %v1712 = vadd.f32 0.0, %v1711
      %1713 = vmatmul.bf16.gmra.mxu0 %v1632
      %v1714 = vpop.f32.mrf.mxu0
      %v1715 = vadd.f32 0.0, %v1714
      %v1716 = vpop.f32.mrf.mxu0
      %v1717 = vadd.f32 0.0, %v1716
      %1718 = vmatmul.bf16.gmra.mxu0 %v1635
      %v1719 = vpop.f32.mrf.mxu0
      %v1720 = vadd.f32 0.0, %v1719
      %v1721 = vpop.f32.mrf.mxu0
      %v1722 = vadd.f32 0.0, %v1721
      %1723 = vmatmul.bf16.gmra.mxu0 %v1638
      %v1724 = vpop.f32.mrf.mxu0
      %v1725 = vadd.f32 0.0, %v1724
      %v1726 = vpop.f32.mrf.mxu0
      %v1727 = vadd.f32 0.0, %v1726
      %1728 = vdwg.mxu0
      %vm1729 = vcmask 64512
      %1730 = vst.msk [vmem:[%s172] sm:$0xff] %vm1729, %v1650
      %1731 = vst.msk [vmem:[%s172 + $0x8] sm:$0xff] %vm1729, %v1652
      %1732 = vst.msk [vmem:[%s172 + $0x10] sm:$0xff] %vm1729, %v1655
      %1733 = vst.msk [vmem:[%s172 + $0x18] sm:$0xff] %vm1729, %v1657
      %1734 = vst.msk [vmem:[%s172 + $0x20] sm:$0xff] %vm1729, %v1660
      %1735 = vst.msk [vmem:[%s172 + $0x28] sm:$0xff] %vm1729, %v1662
      %1736 = vst.msk [vmem:[%s172 + $0x30] sm:$0xff] %vm1729, %v1665
      %1737 = vst.msk [vmem:[%s172 + $0x38] sm:$0xff] %vm1729, %v1667
      %1738 = vst.msk [vmem:[%s172 + $0x40] sm:$0xff] %vm1729, %v1670
      %1739 = vst.msk [vmem:[%s172 + $0x48] sm:$0xff] %vm1729, %v1672
      %1740 = vst.msk [vmem:[%s172 + $0x50] sm:$0xff] %vm1729, %v1675
      %1741 = vst.msk [vmem:[%s172 + $0x58] sm:$0xff] %vm1729, %v1677
      %1742 = vst.msk [vmem:[%s172 + $0x60] sm:$0xff] %vm1729, %v1680
      %1743 = vst.msk [vmem:[%s172 + $0x68] sm:$0xff] %vm1729, %v1682
      %1744 = vst.msk [vmem:[%s172 + $0x70] sm:$0xff] %vm1729, %v1685
      %1745 = vst.msk [vmem:[%s172 + $0x78] sm:$0xff] %vm1729, %v1687
      %1746 = vst.msk [vmem:[%s172 + $0x80] sm:$0xff] %vm1729, %v1690
      %1747 = vst.msk [vmem:[%s172 + $0x88] sm:$0xff] %vm1729, %v1692
      %1748 = vst.msk [vmem:[%s172 + $0x90] sm:$0xff] %vm1729, %v1695
      %1749 = vst.msk [vmem:[%s172 + $0x98] sm:$0xff] %vm1729, %v1697
      %1750 = vst.msk [vmem:[%s172 + $0xa0] sm:$0xff] %vm1729, %v1700
      %1751 = vst.msk [vmem:[%s172 + $0xa8] sm:$0xff] %vm1729, %v1702
      %1752 = vst.msk [vmem:[%s172 + $0xb0] sm:$0xff] %vm1729, %v1705
      %1753 = vst.msk [vmem:[%s172 + $0xb8] sm:$0xff] %vm1729, %v1707
      %1754 = vst.msk [vmem:[%s172 + $0xc0] sm:$0xff] %vm1729, %v1710
      %1755 = vst.msk [vmem:[%s172 + $0xc8] sm:$0xff] %vm1729, %v1712
      %1756 = vst.msk [vmem:[%s172 + $0xd0] sm:$0xff] %vm1729, %v1715
      %1757 = vst.msk [vmem:[%s172 + $0xd8] sm:$0xff] %vm1729, %v1717
      %1758 = vst.msk [vmem:[%s172 + $0xe0] sm:$0xff] %vm1729, %v1720
      %1759 = vst.msk [vmem:[%s172 + $0xe8] sm:$0xff] %vm1729, %v1722
      %1760 = vst.msk [vmem:[%s172 + $0xf0] sm:$0xff] %vm1729, %v1725
      %1761 = vst.msk [vmem:[%s172 + $0xf8] sm:$0xff] %vm1729, %v1727
      %s1762 = smul.u32 32, %s14
      %p1763 = scmp.lt.s32.totalorder %s1762, 63
      %s1764 = scalar_select %p1763, %s1762, 63
      %s1765 = smul.addr %s1764, 8
      %s1766 = scalar_lea.vmem %s3, %s1765
      // Predicated region
      $region33: #{decoupled_forward.7} parent=31 // pred_check
        %p1767 = pneg %p100
      $region34: #{decoupled_forward.7} parent=31 // pred_check_branch
        %1769 = sbr.rel (%p1767) target = $region36
      $region35: #{decoupled_forward.7} parent=31 // pred_region
        %s1770 = smul.u32 32, %s14
      $region36: #{decoupled_forward.7} parent=31 // pred_fallthru
        _
    $region32: #{decoupled_forward.7} parent=5 // pred_fallthru
      _
    %p1771 = scmp.le.s32.totalorder 2, %s9
    // Predicated region
    $region37: #{decoupled_forward.7} parent=5 // pred_check
      %p1772 = pneg %p1771
    $region38: #{decoupled_forward.7} parent=5 // pred_check_branch
      %1774 = sbr.rel (%p1772) target = $region40
    $region39: #{decoupled_forward.7} parent=5 // pred_region
      %s1775 = ssub.s32 %s9, 2
      // Predicated region
      $region41: #{decoupled_forward.7} parent=39 // pred_check
        %p1776 = pneg %p106
      $region42: #{decoupled_forward.7} parent=39 // pred_check_branch
        %1778 = sbr.rel (%p1776) target = $region44
      $region43: #{decoupled_forward.7} parent=39 // pred_region
        %s1779 = smul.u32 32, %s15
        %p1780 = scmp.lt.s32.totalorder %s1779, 63
        %s1781 = scalar_select %p1780, %s1779, 63
        %s1782 = smul.addr %s1781, 8
        %s1783 = scalar_lea.vmem %s3, %s1782
      $region44: #{decoupled_forward.7} parent=39 // pred_fallthru
        _
    $region40: #{decoupled_forward.7} parent=5 // pred_fallthru
      _
  $region6: #{decoupled_forward.7} parent=0 // loop_footer
    %s13 = sadd.s32 1, %s9
  $region7: #{decoupled_forward.7} parent=0 // loop_footer_branch
    %8 = sbr.rel target = $region3
  $region8: #{decoupled_forward.7} parent=0 // loop_exit
    _

// kernel: decoupled_forward.5
$region0: #{decoupled_forward.5}
  #allocation0 [shape = 'u32[]', space=smem, size = 0x4, offset = 0x4, fixed_abs, tag = 'smem constant byte address 0x4 - core index']
  #allocation1 [shape = 'u32[72,128]{1,0:T(1,128)}', space=vmem, size = 0x9000, scoped, tag = 'internal scratch']
  #allocation2 [shape = 'bf16[256,88]{1,0:T(8,128)(2,1)}', space=vmem, size = 0x10000, scoped, tag = 'scratch operand']
  %s0 = inlined_call_operand.vmem [shape: f32[512,8], index: 0, kind: input, shape index: {}]
  %s1 = inlined_call_operand.vmem [shape: bf16[88,8], index: 1, kind: input, shape index: {}]
  %s2 = inlined_call_operand.vmem [shape: f32[256,16], index: 2, kind: input, shape index: {}]
  %s3 = inlined_call_operand.vmem [shape: f32[512,8], index: 3, kind: output, shape index: {}]
  %s4 = sld [smem:[#allocation0]]
  $region45: #{decoupled_forward.5} parent=0
    _
  %s6 = ssub.s32 1, %s4
  %s7 = scalar_select 0, %s6, %s4
  loop: start=0, step=1, limit=4
  $region2: #{decoupled_forward.5} parent=0 // loop_pre_header
    _
  $region3: #{decoupled_forward.5} parent=0 // loop_header
    %s9 = sphi 0, %s13
    %p10 = scmp.ge.s32.totalorder %s9, 4
    %s19 = sphi 0, %s21
    %s22 = sphi 0, %s19
    %s23 = sphi 0, %s22
    %s39 = sphi 0, %s23
    %s43 = sphi 0, %s43
    %s45 = sphi 0, %s43
    %s46 = sphi 0, %s45
    %s60 = sphi 0, %s46
    %s64 = sphi 0, %s64
    %s66 = sphi 0, %s64
    %s67 = sphi 0, %s66
    %s81 = sphi 0, %s67
    %s87 = sphi 0, %s89
    %s90 = sphi 0, %s87
    %s91 = sphi 0, %s90
    %s107 = sphi 0, %s91
  $region4: #{decoupled_forward.5} parent=0 // loop_header_branch
    %12 = sbr.rel (%p10) target = $region8
  $region5: #{decoupled_forward.5} parent=0 // loop_body
    %s14 = ssub.s32 %s9, 1
    %s15 = ssub.s32 %s9, 2
    %s16 = sadd.s32 %s9, 1
    %s17 = ssub.s32 %s9, %s16
    %p18 = scmp.eq.s32.totalorder %s17, 0
    %s20 = sadd.s32 %s19, 1
    %s21 = scalar_select %p18, %s19, %s20
    %p24 = pneg %p18
    %p25 = scmp.eq.s32.totalorder %s9, 1
    %p26 = por %p24, %p25
    %p27 = scmp.ne.s32.totalorder %s19, %s22
    %p28 = scmp.eq.s32.totalorder %s9, 0
    %p29 = por %p27, %p28
    %p30 = scmp.ne.s32.totalorder %s19, %s22
    %p31 = scmp.eq.s32.totalorder %s14, 1
    %p32 = por %p30, %p31
    %p33 = scmp.ne.s32.totalorder %s22, %s23
    %p34 = scmp.eq.s32.totalorder %s14, 0
    %p35 = por %p33, %p34
    %p36 = scmp.ne.s32.totalorder %s22, %s23
    %p37 = scmp.eq.s32.totalorder %s15, 1
    %p38 = por %p36, %p37
    %p40 = scmp.ne.s32.totalorder %s23, %s39
    %p41 = scmp.eq.s32.totalorder %s15, 0
    %p42 = por %p40, %p41
    %s44 = sadd.s32 %s43, 1
    %p47 = scmp.eq.s32.totalorder %s9, 1
    %p48 = scmp.ne.s32.totalorder %s43, %s45
    %p49 = scmp.eq.s32.totalorder %s9, 0
    %p50 = por %p48, %p49
    %p51 = scmp.ne.s32.totalorder %s43, %s45
    %p52 = scmp.eq.s32.totalorder %s14, 1
    %p53 = por %p51, %p52
    %p54 = scmp.ne.s32.totalorder %s45, %s46
    %p55 = scmp.eq.s32.totalorder %s14, 0
    %p56 = por %p54, %p55
    %p57 = scmp.ne.s32.totalorder %s45, %s46
    %p58 = scmp.eq.s32.totalorder %s15, 1
    %p59 = por %p57, %p58
    %p61 = scmp.ne.s32.totalorder %s46, %s60
    %p62 = scmp.eq.s32.totalorder %s15, 0
    %p63 = por %p61, %p62
    %s65 = sadd.s32 %s64, 1
    %p68 = scmp.eq.s32.totalorder %s9, 1
    %p69 = scmp.ne.s32.totalorder %s64, %s66
    %p70 = scmp.eq.s32.totalorder %s9, 0
    %p71 = por %p69, %p70
    %p72 = scmp.ne.s32.totalorder %s64, %s66
    %p73 = scmp.eq.s32.totalorder %s14, 1
    %p74 = por %p72, %p73
    %p75 = scmp.ne.s32.totalorder %s66, %s67
    %p76 = scmp.eq.s32.totalorder %s14, 0
    %p77 = por %p75, %p76
    %p78 = scmp.ne.s32.totalorder %s66, %s67
    %p79 = scmp.eq.s32.totalorder %s15, 1
    %p80 = por %p78, %p79
    %p82 = scmp.ne.s32.totalorder %s67, %s81
    %p83 = scmp.eq.s32.totalorder %s15, 0
    %p84 = por %p82, %p83
    %s85 = ssub.s32 %s9, %s16
    %p86 = scmp.eq.s32.totalorder %s85, 0
    %s88 = sadd.s32 %s87, 1
    %s89 = scalar_select %p86, %s87, %s88
    %p92 = pneg %p86
    %p93 = scmp.eq.s32.totalorder %s9, 1
    %p94 = por %p92, %p93
    %p95 = scmp.ne.s32.totalorder %s87, %s90
    %p96 = scmp.eq.s32.totalorder %s9, 0
    %p97 = por %p95, %p96
    %p98 = scmp.ne.s32.totalorder %s87, %s90
    %p99 = scmp.eq.s32.totalorder %s14, 1
    %p100 = por %p98, %p99
    %p101 = scmp.ne.s32.totalorder %s90, %s91
    %p102 = scmp.eq.s32.totalorder %s14, 0
    %p103 = por %p101, %p102
    %p104 = scmp.ne.s32.totalorder %s90, %s91
    %p105 = scmp.eq.s32.totalorder %s15, 1
    %p106 = por %p104, %p105
    %p108 = scmp.ne.s32.totalorder %s91, %s107
    %p109 = scmp.eq.s32.totalorder %s15, 0
    %p110 = por %p108, %p109
    %p111 = scmp.le.s32.totalorder 1, %s9
    %p112 = scmp.lt.s32.totalorder %s9, 3
    %p113 = pnand %p111, %p112
    %p114 = pneg %p113
    // Predicated region
    $region9: #{decoupled_forward.5} parent=5 // pred_check
      _
    $region10: #{decoupled_forward.5} parent=5 // pred_check_branch
      %116 = sbr.rel (%p113) target = $region12
    $region11: #{decoupled_forward.5} parent=5 // pred_region
      %s117 = ssub.s32 %s9, 1
      // Predicated region
      $region13: #{decoupled_forward.5} parent=11 // pred_check
        %p118 = pneg %p56
      $region14: #{decoupled_forward.5} parent=11 // pred_check_branch
        %120 = sbr.rel (%p118) target = $region16
      $region15: #{decoupled_forward.5} parent=11 // pred_region
        _
      $region16: #{decoupled_forward.5} parent=11 // pred_fallthru
        _
      // Predicated region
      $region17: #{decoupled_forward.5} parent=11 // pred_check
        %p121 = pneg %p77
      $region18: #{decoupled_forward.5} parent=11 // pred_check_branch
        %123 = sbr.rel (%p121) target = $region20
      $region19: #{decoupled_forward.5} parent=11 // pred_region
        _
      $region20: #{decoupled_forward.5} parent=11 // pred_fallthru
        _
    $region12: #{decoupled_forward.5} parent=5 // pred_fallthru
      _
    %p124 = scmp.lt.s32.totalorder %s9, 2
    // Predicated region
    $region21: #{decoupled_forward.5} parent=5 // pred_check
      %p125 = pneg %p124
    $region22: #{decoupled_forward.5} parent=5 // pred_check_branch
      %127 = sbr.rel (%p125) target = $region24
    $region23: #{decoupled_forward.5} parent=5 // pred_region
      // Predicated region
      $region25: #{decoupled_forward.5} parent=23 // pred_check
        %p128 = pneg %p29
      $region26: #{decoupled_forward.5} parent=23 // pred_check_branch
        %130 = sbr.rel (%p128) target = $region28
      $region27: #{decoupled_forward.5} parent=23 // pred_region
        %s131 = smul.u32 32, %s9
        %p132 = scmp.lt.s32.totalorder %s131, 63
        %s133 = scalar_select %p132, %s131, 63
        %s134 = smul.addr %s133, 8
        %s135 = scalar_lea.vmem %s0, %s134
        %s136 = smul.u32 32, %s9
      $region28: #{decoupled_forward.5} parent=23 // pred_fallthru
        _
    $region24: #{decoupled_forward.5} parent=5 // pred_fallthru
      _
    %p137 = scmp.le.s32.totalorder 1, %s9
    %p138 = scmp.lt.s32.totalorder %s9, 3
    %p139 = pnand %p137, %p138
    %p140 = pneg %p139
    // Predicated region
    $region29: #{decoupled_forward.5} parent=5 // pred_check
      _
    $region30: #{decoupled_forward.5} parent=5 // pred_check_branch
      %142 = sbr.rel (%p139) target = $region32
    $region31: #{decoupled_forward.5} parent=5 // pred_region
      %s143 = ssub.s32 %s9, 1
      %s144 = smul.u32 32, %s14
      %p145 = scmp.lt.s32.totalorder %s144, 63
      %s146 = scalar_select %p145, %s144, 63
      %s147 = smul.addr %s146, 8
      %s148 = scalar_lea.vmem %s0, %s147
      %p149 = pneg %p35
      %p150 = pneg %p32
      %p151 = pneg %p56
      %p152 = pneg %p53
      %p153 = pneg %p77
      %p154 = pneg %p74
      %p155 = pneg %p103
      %p156 = pneg %p100
      %s157 = smul.u32 32, %s14
      %p158 = scmp.lt.s32.totalorder %s157, 63
      %s159 = scalar_select %p158, %s157, 63
      %s160 = smul.addr %s159, 8
      %s161 = scalar_lea.vmem %s3, %s160
      %s162 = smul.u32 32, %s14
      %p163 = scmp.lt.s32.totalorder %s162, 63
      %s164 = scalar_select %p163, %s162, 63
      %s165 = smul.addr %s164, 8
      %s166 = scalar_lea.vmem %s0, %s165
      %s167 = smul.u32 32, %s14
      %s168 = smul.u32 32, %s14
      %p169 = scmp.lt.s32.totalorder %s168, 63
      %s170 = scalar_select %p169, %s168, 63
      %s171 = smul.addr %s170, 8
      %s172 = scalar_lea.vmem %s3, %s171
      %s173 = smul.u32 32, %s14
      %v175 = vld [vmem:[%s166] sm:$0xff]
      %v176 = vld [vmem:[%s166 + $0x8] sm:$0xff]
      %v177 = vld [vmem:[%s166 + $0x10] sm:$0xff]
      %v178 = vld [vmem:[%s166 + $0x18] sm:$0xff]
      %v179 = vld [vmem:[%s166 + $0x20] sm:$0xff]
      %v180 = vld [vmem:[%s166 + $0x28] sm:$0xff]
      %v181 = vld [vmem:[%s166 + $0x30] sm:$0xff]
      %v182 = vld [vmem:[%s166 + $0x38] sm:$0xff]
      %v183 = vld [vmem:[%s166 + $0x40] sm:$0xff]
      %v184 = vld [vmem:[%s166 + $0x48] sm:$0xff]
      %v185 = vld [vmem:[%s166 + $0x50] sm:$0xff]
      %v186 = vld [vmem:[%s166 + $0x58] sm:$0xff]
      %v187 = vld [vmem:[%s166 + $0x60] sm:$0xff]
      %v188 = vld [vmem:[%s166 + $0x68] sm:$0xff]
      %v189 = vld [vmem:[%s166 + $0x70] sm:$0xff]
      %v190 = vld [vmem:[%s166 + $0x78] sm:$0xff]
      %v191 = vld [vmem:[%s166 + $0x80] sm:$0xff]
      %v192 = vld [vmem:[%s166 + $0x88] sm:$0xff]
      %v193 = vld [vmem:[%s166 + $0x90] sm:$0xff]
      %v194 = vld [vmem:[%s166 + $0x98] sm:$0xff]
      %v195 = vld [vmem:[%s166 + $0xa0] sm:$0xff]
      %v196 = vld [vmem:[%s166 + $0xa8] sm:$0xff]
      %v197 = vld [vmem:[%s166 + $0xb0] sm:$0xff]
      %v198 = vld [vmem:[%s166 + $0xb8] sm:$0xff]
      %v199 = vld [vmem:[%s166 + $0xc0] sm:$0xff]
      %v200 = vld [vmem:[%s166 + $0xc8] sm:$0xff]
      %v201 = vld [vmem:[%s166 + $0xd0] sm:$0xff]
      %v202 = vld [vmem:[%s166 + $0xd8] sm:$0xff]
      %v203 = vld [vmem:[%s166 + $0xe0] sm:$0xff]
      %v204 = vld [vmem:[%s166 + $0xe8] sm:$0xff]
      %v205 = vld [vmem:[%s166 + $0xf0] sm:$0xff]
      %v206 = vld [vmem:[%s166 + $0xf8] sm:$0xff]
      %v207 = vrot.slane %v175, 7
      %v208 = vrot.slane %v176, 7
      %v209 = vrot.slane %v177, 7
      %v210 = vrot.slane %v178, 7
      %v211 = vrot.slane %v179, 7
      %v212 = vrot.slane %v180, 7
      %v213 = vrot.slane %v181, 7
      %v214 = vrot.slane %v182, 7
      %v215 = vrot.slane %v183, 7
      %v216 = vrot.slane %v184, 7
      %v217 = vrot.slane %v185, 7
      %v218 = vrot.slane %v186, 7
      %v219 = vrot.slane %v187, 7
      %v220 = vrot.slane %v188, 7
      %v221 = vrot.slane %v189, 7
      %v222 = vrot.slane %v190, 7
      %v223 = vrot.slane %v191, 7
      %v224 = vrot.slane %v192, 7
      %v225 = vrot.slane %v193, 7
      %v226 = vrot.slane %v194, 7
      %v227 = vrot.slane %v195, 7
      %v228 = vrot.slane %v196, 7
      %v229 = vrot.slane %v197, 7
      %v230 = vrot.slane %v198, 7
      %v231 = vrot.slane %v199, 7
      %v232 = vrot.slane %v200, 7
      %v233 = vrot.slane %v201, 7
      %v234 = vrot.slane %v202, 7
      %v235 = vrot.slane %v203, 7
      %v236 = vrot.slane %v204, 7
      %v237 = vrot.slane %v205, 7
      %v238 = vrot.slane %v206, 7
      %v239 = vlaneseq
      %v240 = vshrl.u32 %v239, 7
      %vm241 = vcmp.lt.s32.totalorder %v240, 1
      %v242 = vsel %vm241, %v237, %v238
      %v243 = vsel %vm241, %v236, %v237
      %v244 = vsel %vm241, %v235, %v236
      %v245 = vsel %vm241, %v234, %v235
      %v246 = vsel %vm241, %v233, %v234
      %v247 = vsel %vm241, %v232, %v233
      %v248 = vsel %vm241, %v231, %v232
      %v249 = vsel %vm241, %v230, %v231
      %v250 = vsel %vm241, %v229, %v230
      %v251 = vsel %vm241, %v228, %v229
      %v252 = vsel %vm241, %v227, %v228
      %v253 = vsel %vm241, %v226, %v227
      %v254 = vsel %vm241, %v225, %v226
      %v255 = vsel %vm241, %v224, %v225
      %v256 = vsel %vm241, %v223, %v224
      %v257 = vsel %vm241, %v222, %v223
      %v258 = vsel %vm241, %v221, %v222
      %v259 = vsel %vm241, %v220, %v221
      %v260 = vsel %vm241, %v219, %v220
      %v261 = vsel %vm241, %v218, %v219
      %v262 = vsel %vm241, %v217, %v218
      %v263 = vsel %vm241, %v216, %v217
      %v264 = vsel %vm241, %v215, %v216
      %v265 = vsel %vm241, %v214, %v215
      %v266 = vsel %vm241, %v213, %v214
      %v267 = vsel %vm241, %v212, %v213
      %v268 = vsel %vm241, %v211, %v212
      %v269 = vsel %vm241, %v210, %v211
      %v270 = vsel %vm241, %v209, %v210
      %v271 = vsel %vm241, %v208, %v209
      %v272 = vsel %vm241, %v207, %v208
      %v273 = vsel %vm241, %v238, %v207
      %v274 = vld [vmem:[%s2] sm:$0xff]
      %v275 = vld [vmem:[%s2 + $0x8] sm:$0xff]
      %v276 = vld [vmem:[%s2 + $0x10] sm:$0xff]
      %v277 = vld [vmem:[%s2 + $0x18] sm:$0xff]
      %v278 = vld [vmem:[%s2 + $0x20] sm:$0xff]
      %v279 = vld [vmem:[%s2 + $0x28] sm:$0xff]
      %v280 = vld [vmem:[%s2 + $0x30] sm:$0xff]
      %v281 = vld [vmem:[%s2 + $0x38] sm:$0xff]
      %v282 = vld [vmem:[%s2 + $0x40] sm:$0xff]
      %v283 = vld [vmem:[%s2 + $0x48] sm:$0xff]
      %v284 = vld [vmem:[%s2 + $0x50] sm:$0xff]
      %v285 = vld [vmem:[%s2 + $0x58] sm:$0xff]
      %v286 = vld [vmem:[%s2 + $0x60] sm:$0xff]
      %v287 = vld [vmem:[%s2 + $0x68] sm:$0xff]
      %v288 = vld [vmem:[%s2 + $0x70] sm:$0xff]
      %v289 = vld [vmem:[%s2 + $0x78] sm:$0xff]
      %v290 = vld [vmem:[%s2 + $0x80] sm:$0xff]
      %v291 = vld [vmem:[%s2 + $0x88] sm:$0xff]
      %v292 = vld [vmem:[%s2 + $0x90] sm:$0xff]
      %v293 = vld [vmem:[%s2 + $0x98] sm:$0xff]
      %v294 = vld [vmem:[%s2 + $0xa0] sm:$0xff]
      %v295 = vld [vmem:[%s2 + $0xa8] sm:$0xff]
      %v296 = vld [vmem:[%s2 + $0xb0] sm:$0xff]
      %v297 = vld [vmem:[%s2 + $0xb8] sm:$0xff]
      %v298 = vld [vmem:[%s2 + $0xc0] sm:$0xff]
      %v299 = vld [vmem:[%s2 + $0xc8] sm:$0xff]
      %v300 = vld [vmem:[%s2 + $0xd0] sm:$0xff]
      %v301 = vld [vmem:[%s2 + $0xd8] sm:$0xff]
      %v302 = vld [vmem:[%s2 + $0xe0] sm:$0xff]
      %v303 = vld [vmem:[%s2 + $0xe8] sm:$0xff]
      %v304 = vld [vmem:[%s2 + $0xf0] sm:$0xff]
      %v305 = vld [vmem:[%s2 + $0xf8] sm:$0xff]
      %307 = vset.pattern.permute.xlu0 0
      %308 = vperm.xlu0 %307, %v274
      %v309 = vpop.permute.xlu0 %308
      %312 = vset.pattern.permute.xlu0 0
      %313 = vperm.xlu0 %312, %v275
      %v314 = vpop.permute.xlu0 %313
      %317 = vset.pattern.permute.xlu0 0
      %318 = vperm.xlu0 %317, %v276
      %v319 = vpop.permute.xlu0 %318
      %322 = vset.pattern.permute.xlu0 0
      %323 = vperm.xlu0 %322, %v277
      %v324 = vpop.permute.xlu0 %323
      %327 = vset.pattern.permute.xlu0 0
      %328 = vperm.xlu0 %327, %v278
      %v329 = vpop.permute.xlu0 %328
      %332 = vset.pattern.permute.xlu0 0
      %333 = vperm.xlu0 %332, %v279
      %v334 = vpop.permute.xlu0 %333
      %337 = vset.pattern.permute.xlu0 0
      %338 = vperm.xlu0 %337, %v280
      %v339 = vpop.permute.xlu0 %338
      %342 = vset.pattern.permute.xlu0 0
      %343 = vperm.xlu0 %342, %v281
      %v344 = vpop.permute.xlu0 %343
      %347 = vset.pattern.permute.xlu0 0
      %348 = vperm.xlu0 %347, %v282
      %v349 = vpop.permute.xlu0 %348
      %352 = vset.pattern.permute.xlu0 0
      %353 = vperm.xlu0 %352, %v283
      %v354 = vpop.permute.xlu0 %353
      %357 = vset.pattern.permute.xlu0 0
      %358 = vperm.xlu0 %357, %v284
      %v359 = vpop.permute.xlu0 %358
      %362 = vset.pattern.permute.xlu0 0
      %363 = vperm.xlu0 %362, %v285
      %v364 = vpop.permute.xlu0 %363
      %367 = vset.pattern.permute.xlu0 0
      %368 = vperm.xlu0 %367, %v286
      %v369 = vpop.permute.xlu0 %368
      %372 = vset.pattern.permute.xlu0 0
      %373 = vperm.xlu0 %372, %v287
      %v374 = vpop.permute.xlu0 %373
      %377 = vset.pattern.permute.xlu0 0
      %378 = vperm.xlu0 %377, %v288
      %v379 = vpop.permute.xlu0 %378
      %382 = vset.pattern.permute.xlu0 0
      %383 = vperm.xlu0 %382, %v289
      %v384 = vpop.permute.xlu0 %383
      %387 = vset.pattern.permute.xlu0 0
      %388 = vperm.xlu0 %387, %v290
      %v389 = vpop.permute.xlu0 %388
      %392 = vset.pattern.permute.xlu0 0
      %393 = vperm.xlu0 %392, %v291
      %v394 = vpop.permute.xlu0 %393
      %397 = vset.pattern.permute.xlu0 0
      %398 = vperm.xlu0 %397, %v292
      %v399 = vpop.permute.xlu0 %398
      %402 = vset.pattern.permute.xlu0 0
      %403 = vperm.xlu0 %402, %v293
      %v404 = vpop.permute.xlu0 %403
      %407 = vset.pattern.permute.xlu0 0
      %408 = vperm.xlu0 %407, %v294
      %v409 = vpop.permute.xlu0 %408
      %412 = vset.pattern.permute.xlu0 0
      %413 = vperm.xlu0 %412, %v295
      %v414 = vpop.permute.xlu0 %413
      %417 = vset.pattern.permute.xlu0 0
      %418 = vperm.xlu0 %417, %v296
      %v419 = vpop.permute.xlu0 %418
      %422 = vset.pattern.permute.xlu0 0
      %423 = vperm.xlu0 %422, %v297
      %v424 = vpop.permute.xlu0 %423
      %427 = vset.pattern.permute.xlu0 0
      %428 = vperm.xlu0 %427, %v298
      %v429 = vpop.permute.xlu0 %428
      %432 = vset.pattern.permute.xlu0 0
      %433 = vperm.xlu0 %432, %v299
      %v434 = vpop.permute.xlu0 %433
      %437 = vset.pattern.permute.xlu0 0
      %438 = vperm.xlu0 %437, %v300
      %v439 = vpop.permute.xlu0 %438
      %442 = vset.pattern.permute.xlu0 0
      %443 = vperm.xlu0 %442, %v301
      %v444 = vpop.permute.xlu0 %443
      %447 = vset.pattern.permute.xlu0 0
      %448 = vperm.xlu0 %447, %v302
      %v449 = vpop.permute.xlu0 %448
      %452 = vset.pattern.permute.xlu0 0
      %453 = vperm.xlu0 %452, %v303
      %v454 = vpop.permute.xlu0 %453
      %457 = vset.pattern.permute.xlu0 0
      %458 = vperm.xlu0 %457, %v304
      %v459 = vpop.permute.xlu0 %458
      %462 = vset.pattern.permute.xlu0 0
      %463 = vperm.xlu0 %462, %v305
      %v464 = vpop.permute.xlu0 %463
      %v466 = vmul.f32 %v242, %v309
      %v467 = vmul.f32 %v273, %v314
      %v468 = vmul.f32 %v272, %v319
      %v469 = vmul.f32 %v271, %v324
      %v470 = vmul.f32 %v270, %v329
      %v471 = vmul.f32 %v269, %v334
      %v472 = vmul.f32 %v268, %v339
      %v473 = vmul.f32 %v267, %v344
      %v474 = vmul.f32 %v266, %v349
      %v475 = vmul.f32 %v265, %v354
      %v476 = vmul.f32 %v264, %v359
      %v477 = vmul.f32 %v263, %v364
      %v478 = vmul.f32 %v262, %v369
      %v479 = vmul.f32 %v261, %v374
      %v480 = vmul.f32 %v260, %v379
      %v481 = vmul.f32 %v259, %v384
      %v482 = vmul.f32 %v258, %v389
      %v483 = vmul.f32 %v257, %v394
      %v484 = vmul.f32 %v256, %v399
      %v485 = vmul.f32 %v255, %v404
      %v486 = vmul.f32 %v254, %v409
      %v487 = vmul.f32 %v253, %v414
      %v488 = vmul.f32 %v252, %v419
      %v489 = vmul.f32 %v251, %v424
      %v490 = vmul.f32 %v250, %v429
      %v491 = vmul.f32 %v249, %v434
      %v492 = vmul.f32 %v248, %v439
      %v493 = vmul.f32 %v247, %v444
      %v494 = vmul.f32 %v246, %v449
      %v495 = vmul.f32 %v245, %v454
      %v496 = vmul.f32 %v244, %v459
      %v497 = vmul.f32 %v243, %v464
      %v498 = vpack.c.bf16 %v466, %v466
      %v499 = vpack.c.bf16 %v467, %v467
      %v500 = vpack.c.bf16 %v468, %v468
      %v501 = vpack.c.bf16 %v469, %v469
      %v502 = vpack.c.bf16 %v470, %v470
      %v503 = vpack.c.bf16 %v471, %v471
      %v504 = vpack.c.bf16 %v472, %v472
      %v505 = vpack.c.bf16 %v473, %v473
      %v506 = vpack.c.bf16 %v474, %v474
      %v507 = vpack.c.bf16 %v475, %v475
      %v508 = vpack.c.bf16 %v476, %v476
      %v509 = vpack.c.bf16 %v477, %v477
      %v510 = vpack.c.bf16 %v478, %v478
      %v511 = vpack.c.bf16 %v479, %v479
      %v512 = vpack.c.bf16 %v480, %v480
      %v513 = vpack.c.bf16 %v481, %v481
      %v514 = vpack.c.bf16 %v482, %v482
      %v515 = vpack.c.bf16 %v483, %v483
      %v516 = vpack.c.bf16 %v484, %v484
      %v517 = vpack.c.bf16 %v485, %v485
      %v518 = vpack.c.bf16 %v486, %v486
      %v519 = vpack.c.bf16 %v487, %v487
      %v520 = vpack.c.bf16 %v488, %v488
      %v521 = vpack.c.bf16 %v489, %v489
      %v522 = vpack.c.bf16 %v490, %v490
      %v523 = vpack.c.bf16 %v491, %v491
      %v524 = vpack.c.bf16 %v492, %v492
      %v525 = vpack.c.bf16 %v493, %v493
      %v526 = vpack.c.bf16 %v494, %v494
      %v527 = vpack.c.bf16 %v495, %v495
      %v528 = vpack.c.bf16 %v496, %v496
      %v529 = vpack.c.bf16 %v497, %v497
      %vm530 = vcmask 60416
      %531 = vst.msk [vmem:[#allocation2] sm:$0xf] %vm530, %v498
      %532 = vst.msk [vmem:[#allocation2 + $0x4] sm:$0xf] %vm530, %v499
      %533 = vst.msk [vmem:[#allocation2 + $0x8] sm:$0xf] %vm530, %v500
      %534 = vst.msk [vmem:[#allocation2 + $0xc] sm:$0xf] %vm530, %v501
      %535 = vst.msk [vmem:[#allocation2 + $0x10] sm:$0xf] %vm530, %v502
      %536 = vst.msk [vmem:[#allocation2 + $0x14] sm:$0xf] %vm530, %v503
      %537 = vst.msk [vmem:[#allocation2 + $0x18] sm:$0xf] %vm530, %v504
      %538 = vst.msk [vmem:[#allocation2 + $0x1c] sm:$0xf] %vm530, %v505
      %539 = vst.msk [vmem:[#allocation2 + $0x20] sm:$0xf] %vm530, %v506
      %540 = vst.msk [vmem:[#allocation2 + $0x24] sm:$0xf] %vm530, %v507
      %541 = vst.msk [vmem:[#allocation2 + $0x28] sm:$0xf] %vm530, %v508
      %542 = vst.msk [vmem:[#allocation2 + $0x2c] sm:$0xf] %vm530, %v509
      %543 = vst.msk [vmem:[#allocation2 + $0x30] sm:$0xf] %vm530, %v510
      %544 = vst.msk [vmem:[#allocation2 + $0x34] sm:$0xf] %vm530, %v511
      %545 = vst.msk [vmem:[#allocation2 + $0x38] sm:$0xf] %vm530, %v512
      %546 = vst.msk [vmem:[#allocation2 + $0x3c] sm:$0xf] %vm530, %v513
      %547 = vst.msk [vmem:[#allocation2 + $0x40] sm:$0xf] %vm530, %v514
      %548 = vst.msk [vmem:[#allocation2 + $0x44] sm:$0xf] %vm530, %v515
      %549 = vst.msk [vmem:[#allocation2 + $0x48] sm:$0xf] %vm530, %v516
      %550 = vst.msk [vmem:[#allocation2 + $0x4c] sm:$0xf] %vm530, %v517
      %551 = vst.msk [vmem:[#allocation2 + $0x50] sm:$0xf] %vm530, %v518
      %552 = vst.msk [vmem:[#allocation2 + $0x54] sm:$0xf] %vm530, %v519
      %553 = vst.msk [vmem:[#allocation2 + $0x58] sm:$0xf] %vm530, %v520
      %554 = vst.msk [vmem:[#allocation2 + $0x5c] sm:$0xf] %vm530, %v521
      %555 = vst.msk [vmem:[#allocation2 + $0x60] sm:$0xf] %vm530, %v522
      %556 = vst.msk [vmem:[#allocation2 + $0x64] sm:$0xf] %vm530, %v523
      %557 = vst.msk [vmem:[#allocation2 + $0x68] sm:$0xf] %vm530, %v524
      %558 = vst.msk [vmem:[#allocation2 + $0x6c] sm:$0xf] %vm530, %v525
      %559 = vst.msk [vmem:[#allocation2 + $0x70] sm:$0xf] %vm530, %v526
      %560 = vst.msk [vmem:[#allocation2 + $0x74] sm:$0xf] %vm530, %v527
      %561 = vst.msk [vmem:[#allocation2 + $0x78] sm:$0xf] %vm530, %v528
      %562 = vst.msk [vmem:[#allocation2 + $0x7c] sm:$0xf] %vm530, %v529
      %v563 = vld [vmem:[%s2] sm:$0xff]
      %v564 = vld [vmem:[%s2 + $0x8] sm:$0xff]
      %v565 = vld [vmem:[%s2 + $0x10] sm:$0xff]
      %v566 = vld [vmem:[%s2 + $0x18] sm:$0xff]
      %v567 = vld [vmem:[%s2 + $0x20] sm:$0xff]
      %v568 = vld [vmem:[%s2 + $0x28] sm:$0xff]
      %v569 = vld [vmem:[%s2 + $0x30] sm:$0xff]
      %v570 = vld [vmem:[%s2 + $0x38] sm:$0xff]
      %v571 = vld [vmem:[%s2 + $0x40] sm:$0xff]
      %v572 = vld [vmem:[%s2 + $0x48] sm:$0xff]
      %v573 = vld [vmem:[%s2 + $0x50] sm:$0xff]
      %v574 = vld [vmem:[%s2 + $0x58] sm:$0xff]
      %v575 = vld [vmem:[%s2 + $0x60] sm:$0xff]
      %v576 = vld [vmem:[%s2 + $0x68] sm:$0xff]
      %v577 = vld [vmem:[%s2 + $0x70] sm:$0xff]
      %v578 = vld [vmem:[%s2 + $0x78] sm:$0xff]
      %v579 = vld [vmem:[%s2 + $0x80] sm:$0xff]
      %v580 = vld [vmem:[%s2 + $0x88] sm:$0xff]
      %v581 = vld [vmem:[%s2 + $0x90] sm:$0xff]
      %v582 = vld [vmem:[%s2 + $0x98] sm:$0xff]
      %v583 = vld [vmem:[%s2 + $0xa0] sm:$0xff]
      %v584 = vld [vmem:[%s2 + $0xa8] sm:$0xff]
      %v585 = vld [vmem:[%s2 + $0xb0] sm:$0xff]
      %v586 = vld [vmem:[%s2 + $0xb8] sm:$0xff]
      %v587 = vld [vmem:[%s2 + $0xc0] sm:$0xff]
      %v588 = vld [vmem:[%s2 + $0xc8] sm:$0xff]
      %v589 = vld [vmem:[%s2 + $0xd0] sm:$0xff]
      %v590 = vld [vmem:[%s2 + $0xd8] sm:$0xff]
      %v591 = vld [vmem:[%s2 + $0xe0] sm:$0xff]
      %v592 = vld [vmem:[%s2 + $0xe8] sm:$0xff]
      %v593 = vld [vmem:[%s2 + $0xf0] sm:$0xff]
      %v594 = vld [vmem:[%s2 + $0xf8] sm:$0xff]
      %596 = vset.pattern.permute.xlu0 1
      %597 = vperm.xlu0 %596, %v563
      %v598 = vpop.permute.xlu0 %597
      %601 = vset.pattern.permute.xlu0 1
      %602 = vperm.xlu0 %601, %v564
      %v603 = vpop.permute.xlu0 %602
      %606 = vset.pattern.permute.xlu0 1
      %607 = vperm.xlu0 %606, %v565
      %v608 = vpop.permute.xlu0 %607
      %611 = vset.pattern.permute.xlu0 1
      %612 = vperm.xlu0 %611, %v566
      %v613 = vpop.permute.xlu0 %612
      %616 = vset.pattern.permute.xlu0 1
      %617 = vperm.xlu0 %616, %v567
      %v618 = vpop.permute.xlu0 %617
      %621 = vset.pattern.permute.xlu0 1
      %622 = vperm.xlu0 %621, %v568
      %v623 = vpop.permute.xlu0 %622
      %626 = vset.pattern.permute.xlu0 1
      %627 = vperm.xlu0 %626, %v569
      %v628 = vpop.permute.xlu0 %627
      %631 = vset.pattern.permute.xlu0 1
      %632 = vperm.xlu0 %631, %v570
      %v633 = vpop.permute.xlu0 %632
      %636 = vset.pattern.permute.xlu0 1
      %637 = vperm.xlu0 %636, %v571
      %v638 = vpop.permute.xlu0 %637
      %641 = vset.pattern.permute.xlu0 1
      %642 = vperm.xlu0 %641, %v572
      %v643 = vpop.permute.xlu0 %642
      %646 = vset.pattern.permute.xlu0 1
      %647 = vperm.xlu0 %646, %v573
      %v648 = vpop.permute.xlu0 %647
      %651 = vset.pattern.permute.xlu0 1
      %652 = vperm.xlu0 %651, %v574
      %v653 = vpop.permute.xlu0 %652
      %656 = vset.pattern.permute.xlu0 1
      %657 = vperm.xlu0 %656, %v575
      %v658 = vpop.permute.xlu0 %657
      %661 = vset.pattern.permute.xlu0 1
      %662 = vperm.xlu0 %661, %v576
      %v663 = vpop.permute.xlu0 %662
      %666 = vset.pattern.permute.xlu0 1
      %667 = vperm.xlu0 %666, %v577
      %v668 = vpop.permute.xlu0 %667
      %671 = vset.pattern.permute.xlu0 1
      %672 = vperm.xlu0 %671, %v578
      %v673 = vpop.permute.xlu0 %672
      %676 = vset.pattern.permute.xlu0 1
      %677 = vperm.xlu0 %676, %v579
      %v678 = vpop.permute.xlu0 %677
      %681 = vset.pattern.permute.xlu0 1
      %682 = vperm.xlu0 %681, %v580
      %v683 = vpop.permute.xlu0 %682
      %686 = vset.pattern.permute.xlu0 1
      %687 = vperm.xlu0 %686, %v581
      %v688 = vpop.permute.xlu0 %687
      %691 = vset.pattern.permute.xlu0 1
      %692 = vperm.xlu0 %691, %v582
      %v693 = vpop.permute.xlu0 %692
      %696 = vset.pattern.permute.xlu0 1
      %697 = vperm.xlu0 %696, %v583
      %v698 = vpop.permute.xlu0 %697
      %701 = vset.pattern.permute.xlu0 1
      %702 = vperm.xlu0 %701, %v584
      %v703 = vpop.permute.xlu0 %702
      %706 = vset.pattern.permute.xlu0 1
      %707 = vperm.xlu0 %706, %v585
      %v708 = vpop.permute.xlu0 %707
      %711 = vset.pattern.permute.xlu0 1
      %712 = vperm.xlu0 %711, %v586
      %v713 = vpop.permute.xlu0 %712
      %716 = vset.pattern.permute.xlu0 1
      %717 = vperm.xlu0 %716, %v587
      %v718 = vpop.permute.xlu0 %717
      %721 = vset.pattern.permute.xlu0 1
      %722 = vperm.xlu0 %721, %v588
      %v723 = vpop.permute.xlu0 %722
      %726 = vset.pattern.permute.xlu0 1
      %727 = vperm.xlu0 %726, %v589
      %v728 = vpop.permute.xlu0 %727
      %731 = vset.pattern.permute.xlu0 1
      %732 = vperm.xlu0 %731, %v590
      %v733 = vpop.permute.xlu0 %732
      %736 = vset.pattern.permute.xlu0 1
      %737 = vperm.xlu0 %736, %v591
      %v738 = vpop.permute.xlu0 %737
      %741 = vset.pattern.permute.xlu0 1
      %742 = vperm.xlu0 %741, %v592
      %v743 = vpop.permute.xlu0 %742
      %746 = vset.pattern.permute.xlu0 1
      %747 = vperm.xlu0 %746, %v593
      %v748 = vpop.permute.xlu0 %747
      %751 = vset.pattern.permute.xlu0 1
      %752 = vperm.xlu0 %751, %v594
      %v753 = vpop.permute.xlu0 %752
      %v755 = vmul.f32 %v206, %v598
      %v756 = vmul.f32 %v175, %v603
      %v757 = vmul.f32 %v176, %v608
      %v758 = vmul.f32 %v177, %v613
      %v759 = vmul.f32 %v178, %v618
      %v760 = vmul.f32 %v179, %v623
      %v761 = vmul.f32 %v180, %v628
      %v762 = vmul.f32 %v181, %v633
      %v763 = vmul.f32 %v182, %v638
      %v764 = vmul.f32 %v183, %v643
      %v765 = vmul.f32 %v184, %v648
      %v766 = vmul.f32 %v185, %v653
      %v767 = vmul.f32 %v186, %v658
      %v768 = vmul.f32 %v187, %v663
      %v769 = vmul.f32 %v188, %v668
      %v770 = vmul.f32 %v189, %v673
      %v771 = vmul.f32 %v190, %v678
      %v772 = vmul.f32 %v191, %v683
      %v773 = vmul.f32 %v192, %v688
      %v774 = vmul.f32 %v193, %v693
      %v775 = vmul.f32 %v194, %v698
      %v776 = vmul.f32 %v195, %v703
      %v777 = vmul.f32 %v196, %v708
      %v778 = vmul.f32 %v197, %v713
      %v779 = vmul.f32 %v198, %v718
      %v780 = vmul.f32 %v199, %v723
      %v781 = vmul.f32 %v200, %v728
      %v782 = vmul.f32 %v201, %v733
      %v783 = vmul.f32 %v202, %v738
      %v784 = vmul.f32 %v203, %v743
      %v785 = vmul.f32 %v204, %v748
      %v786 = vmul.f32 %v205, %v753
      %v787 = vpack.c.bf16 %v755, %v755
      %v788 = vpack.c.bf16 %v756, %v756
      %v789 = vpack.c.bf16 %v757, %v757
      %v790 = vpack.c.bf16 %v758, %v758
      %v791 = vpack.c.bf16 %v759, %v759
      %v792 = vpack.c.bf16 %v760, %v760
      %v793 = vpack.c.bf16 %v761, %v761
      %v794 = vpack.c.bf16 %v762, %v762
      %v795 = vpack.c.bf16 %v763, %v763
      %v796 = vpack.c.bf16 %v764, %v764
      %v797 = vpack.c.bf16 %v765, %v765
      %v798 = vpack.c.bf16 %v766, %v766
      %v799 = vpack.c.bf16 %v767, %v767
      %v800 = vpack.c.bf16 %v768, %v768
      %v801 = vpack.c.bf16 %v769, %v769
      %v802 = vpack.c.bf16 %v770, %v770
      %v803 = vpack.c.bf16 %v771, %v771
      %v804 = vpack.c.bf16 %v772, %v772
      %v805 = vpack.c.bf16 %v773, %v773
      %v806 = vpack.c.bf16 %v774, %v774
      %v807 = vpack.c.bf16 %v775, %v775
      %v808 = vpack.c.bf16 %v776, %v776
      %v809 = vpack.c.bf16 %v777, %v777
      %v810 = vpack.c.bf16 %v778, %v778
      %v811 = vpack.c.bf16 %v779, %v779
      %v812 = vpack.c.bf16 %v780, %v780
      %v813 = vpack.c.bf16 %v781, %v781
      %v814 = vpack.c.bf16 %v782, %v782
      %v815 = vpack.c.bf16 %v783, %v783
      %v816 = vpack.c.bf16 %v784, %v784
      %v817 = vpack.c.bf16 %v785, %v785
      %v818 = vpack.c.bf16 %v786, %v786
      %851 = vrot.lane.b32.xlu0 %v787, 8
      %v852 = vpop.permute.xlu0 %851
      %853 = vrot.lane.b32.xlu0 %v788, 8
      %v854 = vpop.permute.xlu0 %853
      %855 = vrot.lane.b32.xlu0 %v789, 8
      %v856 = vpop.permute.xlu0 %855
      %857 = vrot.lane.b32.xlu0 %v790, 8
      %v858 = vpop.permute.xlu0 %857
      %859 = vrot.lane.b32.xlu0 %v791, 8
      %v860 = vpop.permute.xlu0 %859
      %861 = vrot.lane.b32.xlu0 %v792, 8
      %v862 = vpop.permute.xlu0 %861
      %863 = vrot.lane.b32.xlu0 %v793, 8
      %v864 = vpop.permute.xlu0 %863
      %865 = vrot.lane.b32.xlu0 %v794, 8
      %v866 = vpop.permute.xlu0 %865
      %867 = vrot.lane.b32.xlu0 %v795, 8
      %v868 = vpop.permute.xlu0 %867
      %869 = vrot.lane.b32.xlu0 %v796, 8
      %v870 = vpop.permute.xlu0 %869
      %871 = vrot.lane.b32.xlu0 %v797, 8
      %v872 = vpop.permute.xlu0 %871
      %873 = vrot.lane.b32.xlu0 %v798, 8
      %v874 = vpop.permute.xlu0 %873
      %875 = vrot.lane.b32.xlu0 %v799, 8
      %v876 = vpop.permute.xlu0 %875
      %877 = vrot.lane.b32.xlu0 %v800, 8
      %v878 = vpop.permute.xlu0 %877
      %879 = vrot.lane.b32.xlu0 %v801, 8
      %v880 = vpop.permute.xlu0 %879
      %881 = vrot.lane.b32.xlu0 %v802, 8
      %v882 = vpop.permute.xlu0 %881
      %883 = vrot.lane.b32.xlu0 %v803, 8
      %v884 = vpop.permute.xlu0 %883
      %885 = vrot.lane.b32.xlu0 %v804, 8
      %v886 = vpop.permute.xlu0 %885
      %887 = vrot.lane.b32.xlu0 %v805, 8
      %v888 = vpop.permute.xlu0 %887
      %889 = vrot.lane.b32.xlu0 %v806, 8
      %v890 = vpop.permute.xlu0 %889
      %891 = vrot.lane.b32.xlu0 %v807, 8
      %v892 = vpop.permute.xlu0 %891
      %893 = vrot.lane.b32.xlu0 %v808, 8
      %v894 = vpop.permute.xlu0 %893
      %895 = vrot.lane.b32.xlu0 %v809, 8
      %v896 = vpop.permute.xlu0 %895
      %897 = vrot.lane.b32.xlu0 %v810, 8
      %v898 = vpop.permute.xlu0 %897
      %899 = vrot.lane.b32.xlu0 %v811, 8
      %v900 = vpop.permute.xlu0 %899
      %901 = vrot.lane.b32.xlu0 %v812, 8
      %v902 = vpop.permute.xlu0 %901
      %903 = vrot.lane.b32.xlu0 %v813, 8
      %v904 = vpop.permute.xlu0 %903
      %905 = vrot.lane.b32.xlu0 %v814, 8
      %v906 = vpop.permute.xlu0 %905
      %907 = vrot.lane.b32.xlu0 %v815, 8
      %v908 = vpop.permute.xlu0 %907
      %909 = vrot.lane.b32.xlu0 %v816, 8
      %v910 = vpop.permute.xlu0 %909
      %911 = vrot.lane.b32.xlu0 %v817, 8
      %v912 = vpop.permute.xlu0 %911
      %913 = vrot.lane.b32.xlu0 %v818, 8
      %v914 = vpop.permute.xlu0 %913
      %vm947 = vcmask 126016
      %948 = vst.msk [vmem:[#allocation2] sm:$0xf] %vm947, %v852
      %949 = vst.msk [vmem:[#allocation2 + $0x4] sm:$0xf] %vm947, %v854
      %950 = vst.msk [vmem:[#allocation2 + $0x8] sm:$0xf] %vm947, %v856
      %951 = vst.msk [vmem:[#allocation2 + $0xc] sm:$0xf] %vm947, %v858
      %952 = vst.msk [vmem:[#allocation2 + $0x10] sm:$0xf] %vm947, %v860
      %953 = vst.msk [vmem:[#allocation2 + $0x14] sm:$0xf] %vm947, %v862
      %954 = vst.msk [vmem:[#allocation2 + $0x18] sm:$0xf] %vm947, %v864
      %955 = vst.msk [vmem:[#allocation2 + $0x1c] sm:$0xf] %vm947, %v866
      %956 = vst.msk [vmem:[#allocation2 + $0x20] sm:$0xf] %vm947, %v868
      %957 = vst.msk [vmem:[#allocation2 + $0x24] sm:$0xf] %vm947, %v870
      %958 = vst.msk [vmem:[#allocation2 + $0x28] sm:$0xf] %vm947, %v872
      %959 = vst.msk [vmem:[#allocation2 + $0x2c] sm:$0xf] %vm947, %v874
      %960 = vst.msk [vmem:[#allocation2 + $0x30] sm:$0xf] %vm947, %v876
      %961 = vst.msk [vmem:[#allocation2 + $0x34] sm:$0xf] %vm947, %v878
      %962 = vst.msk [vmem:[#allocation2 + $0x38] sm:$0xf] %vm947, %v880
      %963 = vst.msk [vmem:[#allocation2 + $0x3c] sm:$0xf] %vm947, %v882
      %964 = vst.msk [vmem:[#allocation2 + $0x40] sm:$0xf] %vm947, %v884
      %965 = vst.msk [vmem:[#allocation2 + $0x44] sm:$0xf] %vm947, %v886
      %966 = vst.msk [vmem:[#allocation2 + $0x48] sm:$0xf] %vm947, %v888
      %967 = vst.msk [vmem:[#allocation2 + $0x4c] sm:$0xf] %vm947, %v890
      %968 = vst.msk [vmem:[#allocation2 + $0x50] sm:$0xf] %vm947, %v892
      %969 = vst.msk [vmem:[#allocation2 + $0x54] sm:$0xf] %vm947, %v894
      %970 = vst.msk [vmem:[#allocation2 + $0x58] sm:$0xf] %vm947, %v896
      %971 = vst.msk [vmem:[#allocation2 + $0x5c] sm:$0xf] %vm947, %v898
      %972 = vst.msk [vmem:[#allocation2 + $0x60] sm:$0xf] %vm947, %v900
      %973 = vst.msk [vmem:[#allocation2 + $0x64] sm:$0xf] %vm947, %v902
      %974 = vst.msk [vmem:[#allocation2 + $0x68] sm:$0xf] %vm947, %v904
      %975 = vst.msk [vmem:[#allocation2 + $0x6c] sm:$0xf] %vm947, %v906
      %976 = vst.msk [vmem:[#allocation2 + $0x70] sm:$0xf] %vm947, %v908
      %977 = vst.msk [vmem:[#allocation2 + $0x74] sm:$0xf] %vm947, %v910
      %978 = vst.msk [vmem:[#allocation2 + $0x78] sm:$0xf] %vm947, %v912
      %979 = vst.msk [vmem:[#allocation2 + $0x7c] sm:$0xf] %vm947, %v914
      %v980 = vrot.slane %v175, 1
      %v981 = vrot.slane %v176, 1
      %v982 = vrot.slane %v177, 1
      %v983 = vrot.slane %v178, 1
      %v984 = vrot.slane %v179, 1
      %v985 = vrot.slane %v180, 1
      %v986 = vrot.slane %v181, 1
      %v987 = vrot.slane %v182, 1
      %v988 = vrot.slane %v183, 1
      %v989 = vrot.slane %v184, 1
      %v990 = vrot.slane %v185, 1
      %v991 = vrot.slane %v186, 1
      %v992 = vrot.slane %v187, 1
      %v993 = vrot.slane %v188, 1
      %v994 = vrot.slane %v189, 1
      %v995 = vrot.slane %v190, 1
      %v996 = vrot.slane %v191, 1
      %v997 = vrot.slane %v192, 1
      %v998 = vrot.slane %v193, 1
      %v999 = vrot.slane %v194, 1
      %v1000 = vrot.slane %v195, 1
      %v1001 = vrot.slane %v196, 1
      %v1002 = vrot.slane %v197, 1
      %v1003 = vrot.slane %v198, 1
      %v1004 = vrot.slane %v199, 1
      %v1005 = vrot.slane %v200, 1
      %v1006 = vrot.slane %v201, 1
      %v1007 = vrot.slane %v202, 1
      %v1008 = vrot.slane %v203, 1
      %v1009 = vrot.slane %v204, 1
      %v1010 = vrot.slane %v205, 1
      %v1011 = vrot.slane %v206, 1
      %vm1012 = vcmp.lt.s32.totalorder %v240, 7
      %v1013 = vsel %vm1012, %v1010, %v1011
      %v1014 = vsel %vm1012, %v1009, %v1010
      %v1015 = vsel %vm1012, %v1008, %v1009
      %v1016 = vsel %vm1012, %v1007, %v1008
      %v1017 = vsel %vm1012, %v1006, %v1007
      %v1018 = vsel %vm1012, %v1005, %v1006
      %v1019 = vsel %vm1012, %v1004, %v1005
      %v1020 = vsel %vm1012, %v1003, %v1004
      %v1021 = vsel %vm1012, %v1002, %v1003
      %v1022 = vsel %vm1012, %v1001, %v1002
      %v1023 = vsel %vm1012, %v1000, %v1001
      %v1024 = vsel %vm1012, %v999, %v1000
      %v1025 = vsel %vm1012, %v998, %v999
      %v1026 = vsel %vm1012, %v997, %v998
      %v1027 = vsel %vm1012, %v996, %v997
      %v1028 = vsel %vm1012, %v995, %v996
      %v1029 = vsel %vm1012, %v994, %v995
      %v1030 = vsel %vm1012, %v993, %v994
      %v1031 = vsel %vm1012, %v992, %v993
      %v1032 = vsel %vm1012, %v991, %v992
      %v1033 = vsel %vm1012, %v990, %v991
      %v1034 = vsel %vm1012, %v989, %v990
      %v1035 = vsel %vm1012, %v988, %v989
      %v1036 = vsel %vm1012, %v987, %v988
      %v1037 = vsel %vm1012, %v986, %v987
      %v1038 = vsel %vm1012, %v985, %v986
      %v1039 = vsel %vm1012, %v984, %v985
      %v1040 = vsel %vm1012, %v983, %v984
      %v1041 = vsel %vm1012, %v982, %v983
      %v1042 = vsel %vm1012, %v981, %v982
      %v1043 = vsel %vm1012, %v980, %v981
      %v1044 = vsel %vm1012, %v1011, %v980
      %v1045 = vld [vmem:[%s2] sm:$0xff]
      %v1046 = vld [vmem:[%s2 + $0x8] sm:$0xff]
      %v1047 = vld [vmem:[%s2 + $0x10] sm:$0xff]
      %v1048 = vld [vmem:[%s2 + $0x18] sm:$0xff]
      %v1049 = vld [vmem:[%s2 + $0x20] sm:$0xff]
      %v1050 = vld [vmem:[%s2 + $0x28] sm:$0xff]
      %v1051 = vld [vmem:[%s2 + $0x30] sm:$0xff]
      %v1052 = vld [vmem:[%s2 + $0x38] sm:$0xff]
      %v1053 = vld [vmem:[%s2 + $0x40] sm:$0xff]
      %v1054 = vld [vmem:[%s2 + $0x48] sm:$0xff]
      %v1055 = vld [vmem:[%s2 + $0x50] sm:$0xff]
      %v1056 = vld [vmem:[%s2 + $0x58] sm:$0xff]
      %v1057 = vld [vmem:[%s2 + $0x60] sm:$0xff]
      %v1058 = vld [vmem:[%s2 + $0x68] sm:$0xff]
      %v1059 = vld [vmem:[%s2 + $0x70] sm:$0xff]
      %v1060 = vld [vmem:[%s2 + $0x78] sm:$0xff]
      %v1061 = vld [vmem:[%s2 + $0x80] sm:$0xff]
      %v1062 = vld [vmem:[%s2 + $0x88] sm:$0xff]
      %v1063 = vld [vmem:[%s2 + $0x90] sm:$0xff]
      %v1064 = vld [vmem:[%s2 + $0x98] sm:$0xff]
      %v1065 = vld [vmem:[%s2 + $0xa0] sm:$0xff]
      %v1066 = vld [vmem:[%s2 + $0xa8] sm:$0xff]
      %v1067 = vld [vmem:[%s2 + $0xb0] sm:$0xff]
      %v1068 = vld [vmem:[%s2 + $0xb8] sm:$0xff]
      %v1069 = vld [vmem:[%s2 + $0xc0] sm:$0xff]
      %v1070 = vld [vmem:[%s2 + $0xc8] sm:$0xff]
      %v1071 = vld [vmem:[%s2 + $0xd0] sm:$0xff]
      %v1072 = vld [vmem:[%s2 + $0xd8] sm:$0xff]
      %v1073 = vld [vmem:[%s2 + $0xe0] sm:$0xff]
      %v1074 = vld [vmem:[%s2 + $0xe8] sm:$0xff]
      %v1075 = vld [vmem:[%s2 + $0xf0] sm:$0xff]
      %v1076 = vld [vmem:[%s2 + $0xf8] sm:$0xff]
      %1078 = vset.pattern.permute.xlu0 2
      %1079 = vperm.xlu0 %1078, %v1045
      %v1080 = vpop.permute.xlu0 %1079
      %1083 = vset.pattern.permute.xlu0 2
      %1084 = vperm.xlu0 %1083, %v1046
      %v1085 = vpop.permute.xlu0 %1084
      %1088 = vset.pattern.permute.xlu0 2
      %1089 = vperm.xlu0 %1088, %v1047
      %v1090 = vpop.permute.xlu0 %1089
      %1093 = vset.pattern.permute.xlu0 2
      %1094 = vperm.xlu0 %1093, %v1048
      %v1095 = vpop.permute.xlu0 %1094
      %1098 = vset.pattern.permute.xlu0 2
      %1099 = vperm.xlu0 %1098, %v1049
      %v1100 = vpop.permute.xlu0 %1099
      %1103 = vset.pattern.permute.xlu0 2
      %1104 = vperm.xlu0 %1103, %v1050
      %v1105 = vpop.permute.xlu0 %1104
      %1108 = vset.pattern.permute.xlu0 2
      %1109 = vperm.xlu0 %1108, %v1051
      %v1110 = vpop.permute.xlu0 %1109
      %1113 = vset.pattern.permute.xlu0 2
      %1114 = vperm.xlu0 %1113, %v1052
      %v1115 = vpop.permute.xlu0 %1114
      %1118 = vset.pattern.permute.xlu0 2
      %1119 = vperm.xlu0 %1118, %v1053
      %v1120 = vpop.permute.xlu0 %1119
      %1123 = vset.pattern.permute.xlu0 2
      %1124 = vperm.xlu0 %1123, %v1054
      %v1125 = vpop.permute.xlu0 %1124
      %1128 = vset.pattern.permute.xlu0 2
      %1129 = vperm.xlu0 %1128, %v1055
      %v1130 = vpop.permute.xlu0 %1129
      %1133 = vset.pattern.permute.xlu0 2
      %1134 = vperm.xlu0 %1133, %v1056
      %v1135 = vpop.permute.xlu0 %1134
      %1138 = vset.pattern.permute.xlu0 2
      %1139 = vperm.xlu0 %1138, %v1057
      %v1140 = vpop.permute.xlu0 %1139
      %1143 = vset.pattern.permute.xlu0 2
      %1144 = vperm.xlu0 %1143, %v1058
      %v1145 = vpop.permute.xlu0 %1144
      %1148 = vset.pattern.permute.xlu0 2
      %1149 = vperm.xlu0 %1148, %v1059
      %v1150 = vpop.permute.xlu0 %1149
      %1153 = vset.pattern.permute.xlu0 2
      %1154 = vperm.xlu0 %1153, %v1060
      %v1155 = vpop.permute.xlu0 %1154
      %1158 = vset.pattern.permute.xlu0 2
      %1159 = vperm.xlu0 %1158, %v1061
      %v1160 = vpop.permute.xlu0 %1159
      %1163 = vset.pattern.permute.xlu0 2
      %1164 = vperm.xlu0 %1163, %v1062
      %v1165 = vpop.permute.xlu0 %1164
      %1168 = vset.pattern.permute.xlu0 2
      %1169 = vperm.xlu0 %1168, %v1063
      %v1170 = vpop.permute.xlu0 %1169
      %1173 = vset.pattern.permute.xlu0 2
      %1174 = vperm.xlu0 %1173, %v1064
      %v1175 = vpop.permute.xlu0 %1174
      %1178 = vset.pattern.permute.xlu0 2
      %1179 = vperm.xlu0 %1178, %v1065
      %v1180 = vpop.permute.xlu0 %1179
      %1183 = vset.pattern.permute.xlu0 2
      %1184 = vperm.xlu0 %1183, %v1066
      %v1185 = vpop.permute.xlu0 %1184
      %1188 = vset.pattern.permute.xlu0 2
      %1189 = vperm.xlu0 %1188, %v1067
      %v1190 = vpop.permute.xlu0 %1189
      %1193 = vset.pattern.permute.xlu0 2
      %1194 = vperm.xlu0 %1193, %v1068
      %v1195 = vpop.permute.xlu0 %1194
      %1198 = vset.pattern.permute.xlu0 2
      %1199 = vperm.xlu0 %1198, %v1069
      %v1200 = vpop.permute.xlu0 %1199
      %1203 = vset.pattern.permute.xlu0 2
      %1204 = vperm.xlu0 %1203, %v1070
      %v1205 = vpop.permute.xlu0 %1204
      %1208 = vset.pattern.permute.xlu0 2
      %1209 = vperm.xlu0 %1208, %v1071
      %v1210 = vpop.permute.xlu0 %1209
      %1213 = vset.pattern.permute.xlu0 2
      %1214 = vperm.xlu0 %1213, %v1072
      %v1215 = vpop.permute.xlu0 %1214
      %1218 = vset.pattern.permute.xlu0 2
      %1219 = vperm.xlu0 %1218, %v1073
      %v1220 = vpop.permute.xlu0 %1219
      %1223 = vset.pattern.permute.xlu0 2
      %1224 = vperm.xlu0 %1223, %v1074
      %v1225 = vpop.permute.xlu0 %1224
      %1228 = vset.pattern.permute.xlu0 2
      %1229 = vperm.xlu0 %1228, %v1075
      %v1230 = vpop.permute.xlu0 %1229
      %1233 = vset.pattern.permute.xlu0 2
      %1234 = vperm.xlu0 %1233, %v1076
      %v1235 = vpop.permute.xlu0 %1234
      %v1237 = vmul.f32 %v1044, %v1080
      %v1238 = vmul.f32 %v1043, %v1085
      %v1239 = vmul.f32 %v1042, %v1090
      %v1240 = vmul.f32 %v1041, %v1095
      %v1241 = vmul.f32 %v1040, %v1100
      %v1242 = vmul.f32 %v1039, %v1105
      %v1243 = vmul.f32 %v1038, %v1110
      %v1244 = vmul.f32 %v1037, %v1115
      %v1245 = vmul.f32 %v1036, %v1120
      %v1246 = vmul.f32 %v1035, %v1125
      %v1247 = vmul.f32 %v1034, %v1130
      %v1248 = vmul.f32 %v1033, %v1135
      %v1249 = vmul.f32 %v1032, %v1140
      %v1250 = vmul.f32 %v1031, %v1145
      %v1251 = vmul.f32 %v1030, %v1150
      %v1252 = vmul.f32 %v1029, %v1155
      %v1253 = vmul.f32 %v1028, %v1160
      %v1254 = vmul.f32 %v1027, %v1165
      %v1255 = vmul.f32 %v1026, %v1170
      %v1256 = vmul.f32 %v1025, %v1175
      %v1257 = vmul.f32 %v1024, %v1180
      %v1258 = vmul.f32 %v1023, %v1185
      %v1259 = vmul.f32 %v1022, %v1190
      %v1260 = vmul.f32 %v1021, %v1195
      %v1261 = vmul.f32 %v1020, %v1200
      %v1262 = vmul.f32 %v1019, %v1205
      %v1263 = vmul.f32 %v1018, %v1210
      %v1264 = vmul.f32 %v1017, %v1215
      %v1265 = vmul.f32 %v1016, %v1220
      %v1266 = vmul.f32 %v1015, %v1225
      %v1267 = vmul.f32 %v1014, %v1230
      %v1268 = vmul.f32 %v1013, %v1235
      %v1269 = vpack.c.bf16 %v1237, %v1237
      %v1270 = vpack.c.bf16 %v1238, %v1238
      %v1271 = vpack.c.bf16 %v1239, %v1239
      %v1272 = vpack.c.bf16 %v1240, %v1240
      %v1273 = vpack.c.bf16 %v1241, %v1241
      %v1274 = vpack.c.bf16 %v1242, %v1242
      %v1275 = vpack.c.bf16 %v1243, %v1243
      %v1276 = vpack.c.bf16 %v1244, %v1244
      %v1277 = vpack.c.bf16 %v1245, %v1245
      %v1278 = vpack.c.bf16 %v1246, %v1246
      %v1279 = vpack.c.bf16 %v1247, %v1247
      %v1280 = vpack.c.bf16 %v1248, %v1248
      %v1281 = vpack.c.bf16 %v1249, %v1249
      %v1282 = vpack.c.bf16 %v1250, %v1250
      %v1283 = vpack.c.bf16 %v1251, %v1251
      %v1284 = vpack.c.bf16 %v1252, %v1252
      %v1285 = vpack.c.bf16 %v1253, %v1253
      %v1286 = vpack.c.bf16 %v1254, %v1254
      %v1287 = vpack.c.bf16 %v1255, %v1255
      %v1288 = vpack.c.bf16 %v1256, %v1256
      %v1289 = vpack.c.bf16 %v1257, %v1257
      %v1290 = vpack.c.bf16 %v1258, %v1258
      %v1291 = vpack.c.bf16 %v1259, %v1259
      %v1292 = vpack.c.bf16 %v1260, %v1260
      %v1293 = vpack.c.bf16 %v1261, %v1261
      %v1294 = vpack.c.bf16 %v1262, %v1262
      %v1295 = vpack.c.bf16 %v1263, %v1263
      %v1296 = vpack.c.bf16 %v1264, %v1264
      %v1297 = vpack.c.bf16 %v1265, %v1265
      %v1298 = vpack.c.bf16 %v1266, %v1266
      %v1299 = vpack.c.bf16 %v1267, %v1267
      %v1300 = vpack.c.bf16 %v1268, %v1268
      %1333 = vrot.lane.b32.xlu0 %v1269, 16
      %v1334 = vpop.permute.xlu0 %1333
      %1335 = vrot.lane.b32.xlu0 %v1270, 16
      %v1336 = vpop.permute.xlu0 %1335
      %1337 = vrot.lane.b32.xlu0 %v1271, 16
      %v1338 = vpop.permute.xlu0 %1337
      %1339 = vrot.lane.b32.xlu0 %v1272, 16
      %v1340 = vpop.permute.xlu0 %1339
      %1341 = vrot.lane.b32.xlu0 %v1273, 16
      %v1342 = vpop.permute.xlu0 %1341
      %1343 = vrot.lane.b32.xlu0 %v1274, 16
      %v1344 = vpop.permute.xlu0 %1343
      %1345 = vrot.lane.b32.xlu0 %v1275, 16
      %v1346 = vpop.permute.xlu0 %1345
      %1347 = vrot.lane.b32.xlu0 %v1276, 16
      %v1348 = vpop.permute.xlu0 %1347
      %1349 = vrot.lane.b32.xlu0 %v1277, 16
      %v1350 = vpop.permute.xlu0 %1349
      %1351 = vrot.lane.b32.xlu0 %v1278, 16
      %v1352 = vpop.permute.xlu0 %1351
      %1353 = vrot.lane.b32.xlu0 %v1279, 16
      %v1354 = vpop.permute.xlu0 %1353
      %1355 = vrot.lane.b32.xlu0 %v1280, 16
      %v1356 = vpop.permute.xlu0 %1355
      %1357 = vrot.lane.b32.xlu0 %v1281, 16
      %v1358 = vpop.permute.xlu0 %1357
      %1359 = vrot.lane.b32.xlu0 %v1282, 16
      %v1360 = vpop.permute.xlu0 %1359
      %1361 = vrot.lane.b32.xlu0 %v1283, 16
      %v1362 = vpop.permute.xlu0 %1361
      %1363 = vrot.lane.b32.xlu0 %v1284, 16
      %v1364 = vpop.permute.xlu0 %1363
      %1365 = vrot.lane.b32.xlu0 %v1285, 16
      %v1366 = vpop.permute.xlu0 %1365
      %1367 = vrot.lane.b32.xlu0 %v1286, 16
      %v1368 = vpop.permute.xlu0 %1367
      %1369 = vrot.lane.b32.xlu0 %v1287, 16
      %v1370 = vpop.permute.xlu0 %1369
      %1371 = vrot.lane.b32.xlu0 %v1288, 16
      %v1372 = vpop.permute.xlu0 %1371
      %1373 = vrot.lane.b32.xlu0 %v1289, 16
      %v1374 = vpop.permute.xlu0 %1373
      %1375 = vrot.lane.b32.xlu0 %v1290, 16
      %v1376 = vpop.permute.xlu0 %1375
      %1377 = vrot.lane.b32.xlu0 %v1291, 16
      %v1378 = vpop.permute.xlu0 %1377
      %1379 = vrot.lane.b32.xlu0 %v1292, 16
      %v1380 = vpop.permute.xlu0 %1379
      %1381 = vrot.lane.b32.xlu0 %v1293, 16
      %v1382 = vpop.permute.xlu0 %1381
      %1383 = vrot.lane.b32.xlu0 %v1294, 16
      %v1384 = vpop.permute.xlu0 %1383
      %1385 = vrot.lane.b32.xlu0 %v1295, 16
      %v1386 = vpop.permute.xlu0 %1385
      %1387 = vrot.lane.b32.xlu0 %v1296, 16
      %v1388 = vpop.permute.xlu0 %1387
      %1389 = vrot.lane.b32.xlu0 %v1297, 16
      %v1390 = vpop.permute.xlu0 %1389
      %1391 = vrot.lane.b32.xlu0 %v1298, 16
      %v1392 = vpop.permute.xlu0 %1391
      %1393 = vrot.lane.b32.xlu0 %v1299, 16
      %v1394 = vpop.permute.xlu0 %1393
      %1395 = vrot.lane.b32.xlu0 %v1300, 16
      %v1396 = vpop.permute.xlu0 %1395
      %vm1429 = vcmask 191616
      %1430 = vst.msk [vmem:[#allocation2] sm:$0xf] %vm1429, %v1334
      %1431 = vst.msk [vmem:[#allocation2 + $0x4] sm:$0xf] %vm1429, %v1336
      %1432 = vst.msk [vmem:[#allocation2 + $0x8] sm:$0xf] %vm1429, %v1338
      %1433 = vst.msk [vmem:[#allocation2 + $0xc] sm:$0xf] %vm1429, %v1340
      %1434 = vst.msk [vmem:[#allocation2 + $0x10] sm:$0xf] %vm1429, %v1342
      %1435 = vst.msk [vmem:[#allocation2 + $0x14] sm:$0xf] %vm1429, %v1344
      %1436 = vst.msk [vmem:[#allocation2 + $0x18] sm:$0xf] %vm1429, %v1346
      %1437 = vst.msk [vmem:[#allocation2 + $0x1c] sm:$0xf] %vm1429, %v1348
      %1438 = vst.msk [vmem:[#allocation2 + $0x20] sm:$0xf] %vm1429, %v1350
      %1439 = vst.msk [vmem:[#allocation2 + $0x24] sm:$0xf] %vm1429, %v1352
      %1440 = vst.msk [vmem:[#allocation2 + $0x28] sm:$0xf] %vm1429, %v1354
      %1441 = vst.msk [vmem:[#allocation2 + $0x2c] sm:$0xf] %vm1429, %v1356
      %1442 = vst.msk [vmem:[#allocation2 + $0x30] sm:$0xf] %vm1429, %v1358
      %1443 = vst.msk [vmem:[#allocation2 + $0x34] sm:$0xf] %vm1429, %v1360
      %1444 = vst.msk [vmem:[#allocation2 + $0x38] sm:$0xf] %vm1429, %v1362
      %1445 = vst.msk [vmem:[#allocation2 + $0x3c] sm:$0xf] %vm1429, %v1364
      %1446 = vst.msk [vmem:[#allocation2 + $0x40] sm:$0xf] %vm1429, %v1366
      %1447 = vst.msk [vmem:[#allocation2 + $0x44] sm:$0xf] %vm1429, %v1368
      %1448 = vst.msk [vmem:[#allocation2 + $0x48] sm:$0xf] %vm1429, %v1370
      %1449 = vst.msk [vmem:[#allocation2 + $0x4c] sm:$0xf] %vm1429, %v1372
      %1450 = vst.msk [vmem:[#allocation2 + $0x50] sm:$0xf] %vm1429, %v1374
      %1451 = vst.msk [vmem:[#allocation2 + $0x54] sm:$0xf] %vm1429, %v1376
      %1452 = vst.msk [vmem:[#allocation2 + $0x58] sm:$0xf] %vm1429, %v1378
      %1453 = vst.msk [vmem:[#allocation2 + $0x5c] sm:$0xf] %vm1429, %v1380
      %1454 = vst.msk [vmem:[#allocation2 + $0x60] sm:$0xf] %vm1429, %v1382
      %1455 = vst.msk [vmem:[#allocation2 + $0x64] sm:$0xf] %vm1429, %v1384
      %1456 = vst.msk [vmem:[#allocation2 + $0x68] sm:$0xf] %vm1429, %v1386
      %1457 = vst.msk [vmem:[#allocation2 + $0x6c] sm:$0xf] %vm1429, %v1388
      %1458 = vst.msk [vmem:[#allocation2 + $0x70] sm:$0xf] %vm1429, %v1390
      %1459 = vst.msk [vmem:[#allocation2 + $0x74] sm:$0xf] %vm1429, %v1392
      %1460 = vst.msk [vmem:[#allocation2 + $0x78] sm:$0xf] %vm1429, %v1394
      %1461 = vst.msk [vmem:[#allocation2 + $0x7c] sm:$0xf] %vm1429, %v1396
      %v1462 = vld [vmem:[%s2] sm:$0xff]
      %v1463 = vld [vmem:[%s2 + $0x8] sm:$0xff]
      %v1464 = vld [vmem:[%s2 + $0x10] sm:$0xff]
      %v1465 = vld [vmem:[%s2 + $0x18] sm:$0xff]
      %v1466 = vld [vmem:[%s2 + $0x20] sm:$0xff]
      %v1467 = vld [vmem:[%s2 + $0x28] sm:$0xff]
      %v1468 = vld [vmem:[%s2 + $0x30] sm:$0xff]
      %v1469 = vld [vmem:[%s2 + $0x38] sm:$0xff]
      %v1470 = vld [vmem:[%s2 + $0x40] sm:$0xff]
      %v1471 = vld [vmem:[%s2 + $0x48] sm:$0xff]
      %v1472 = vld [vmem:[%s2 + $0x50] sm:$0xff]
      %v1473 = vld [vmem:[%s2 + $0x58] sm:$0xff]
      %v1474 = vld [vmem:[%s2 + $0x60] sm:$0xff]
      %v1475 = vld [vmem:[%s2 + $0x68] sm:$0xff]
      %v1476 = vld [vmem:[%s2 + $0x70] sm:$0xff]
      %v1477 = vld [vmem:[%s2 + $0x78] sm:$0xff]
      %v1478 = vld [vmem:[%s2 + $0x80] sm:$0xff]
      %v1479 = vld [vmem:[%s2 + $0x88] sm:$0xff]
      %v1480 = vld [vmem:[%s2 + $0x90] sm:$0xff]
      %v1481 = vld [vmem:[%s2 + $0x98] sm:$0xff]
      %v1482 = vld [vmem:[%s2 + $0xa0] sm:$0xff]
      %v1483 = vld [vmem:[%s2 + $0xa8] sm:$0xff]
      %v1484 = vld [vmem:[%s2 + $0xb0] sm:$0xff]
      %v1485 = vld [vmem:[%s2 + $0xb8] sm:$0xff]
      %v1486 = vld [vmem:[%s2 + $0xc0] sm:$0xff]
      %v1487 = vld [vmem:[%s2 + $0xc8] sm:$0xff]
      %v1488 = vld [vmem:[%s2 + $0xd0] sm:$0xff]
      %v1489 = vld [vmem:[%s2 + $0xd8] sm:$0xff]
      %v1490 = vld [vmem:[%s2 + $0xe0] sm:$0xff]
      %v1491 = vld [vmem:[%s2 + $0xe8] sm:$0xff]
      %v1492 = vld [vmem:[%s2 + $0xf0] sm:$0xff]
      %v1493 = vld [vmem:[%s2 + $0xf8] sm:$0xff]
      %1495 = vset.pattern.permute.xlu0 3
      %1496 = vperm.xlu0 %1495, %v1462
      %v1497 = vpop.permute.xlu0 %1496
      %1500 = vset.pattern.permute.xlu0 3
      %1501 = vperm.xlu0 %1500, %v1463
      %v1502 = vpop.permute.xlu0 %1501
      %1505 = vset.pattern.permute.xlu0 3
      %1506 = vperm.xlu0 %1505, %v1464
      %v1507 = vpop.permute.xlu0 %1506
      %1510 = vset.pattern.permute.xlu0 3
      %1511 = vperm.xlu0 %1510, %v1465
      %v1512 = vpop.permute.xlu0 %1511
      %1515 = vset.pattern.permute.xlu0 3
      %1516 = vperm.xlu0 %1515, %v1466
      %v1517 = vpop.permute.xlu0 %1516
      %1520 = vset.pattern.permute.xlu0 3
      %1521 = vperm.xlu0 %1520, %v1467
      %v1522 = vpop.permute.xlu0 %1521
      %1525 = vset.pattern.permute.xlu0 3
      %1526 = vperm.xlu0 %1525, %v1468
      %v1527 = vpop.permute.xlu0 %1526
      %1530 = vset.pattern.permute.xlu0 3
      %1531 = vperm.xlu0 %1530, %v1469
      %v1532 = vpop.permute.xlu0 %1531
      %1535 = vset.pattern.permute.xlu0 3
      %1536 = vperm.xlu0 %1535, %v1470
      %v1537 = vpop.permute.xlu0 %1536
      %1540 = vset.pattern.permute.xlu0 3
      %1541 = vperm.xlu0 %1540, %v1471
      %v1542 = vpop.permute.xlu0 %1541
      %1545 = vset.pattern.permute.xlu0 3
      %1546 = vperm.xlu0 %1545, %v1472
      %v1547 = vpop.permute.xlu0 %1546
      %1550 = vset.pattern.permute.xlu0 3
      %1551 = vperm.xlu0 %1550, %v1473
      %v1552 = vpop.permute.xlu0 %1551
      %1555 = vset.pattern.permute.xlu0 3
      %1556 = vperm.xlu0 %1555, %v1474
      %v1557 = vpop.permute.xlu0 %1556
      %1560 = vset.pattern.permute.xlu0 3
      %1561 = vperm.xlu0 %1560, %v1475
      %v1562 = vpop.permute.xlu0 %1561
      %1565 = vset.pattern.permute.xlu0 3
      %1566 = vperm.xlu0 %1565, %v1476
      %v1567 = vpop.permute.xlu0 %1566
      %1570 = vset.pattern.permute.xlu0 3
      %1571 = vperm.xlu0 %1570, %v1477
      %v1572 = vpop.permute.xlu0 %1571
      %1575 = vset.pattern.permute.xlu0 3
      %1576 = vperm.xlu0 %1575, %v1478
      %v1577 = vpop.permute.xlu0 %1576
      %1580 = vset.pattern.permute.xlu0 3
      %1581 = vperm.xlu0 %1580, %v1479
      %v1582 = vpop.permute.xlu0 %1581
      %1585 = vset.pattern.permute.xlu0 3
      %1586 = vperm.xlu0 %1585, %v1480
      %v1587 = vpop.permute.xlu0 %1586
      %1590 = vset.pattern.permute.xlu0 3
      %1591 = vperm.xlu0 %1590, %v1481
      %v1592 = vpop.permute.xlu0 %1591
      %1595 = vset.pattern.permute.xlu0 3
      %1596 = vperm.xlu0 %1595, %v1482
      %v1597 = vpop.permute.xlu0 %1596
      %1600 = vset.pattern.permute.xlu0 3
      %1601 = vperm.xlu0 %1600, %v1483
      %v1602 = vpop.permute.xlu0 %1601
      %1605 = vset.pattern.permute.xlu0 3
      %1606 = vperm.xlu0 %1605, %v1484
      %v1607 = vpop.permute.xlu0 %1606
      %1610 = vset.pattern.permute.xlu0 3
      %1611 = vperm.xlu0 %1610, %v1485
      %v1612 = vpop.permute.xlu0 %1611
      %1615 = vset.pattern.permute.xlu0 3
      %1616 = vperm.xlu0 %1615, %v1486
      %v1617 = vpop.permute.xlu0 %1616
      %1620 = vset.pattern.permute.xlu0 3
      %1621 = vperm.xlu0 %1620, %v1487
      %v1622 = vpop.permute.xlu0 %1621
      %1625 = vset.pattern.permute.xlu0 3
      %1626 = vperm.xlu0 %1625, %v1488
      %v1627 = vpop.permute.xlu0 %1626
      %1630 = vset.pattern.permute.xlu0 3
      %1631 = vperm.xlu0 %1630, %v1489
      %v1632 = vpop.permute.xlu0 %1631
      %1635 = vset.pattern.permute.xlu0 3
      %1636 = vperm.xlu0 %1635, %v1490
      %v1637 = vpop.permute.xlu0 %1636
      %1640 = vset.pattern.permute.xlu0 3
      %1641 = vperm.xlu0 %1640, %v1491
      %v1642 = vpop.permute.xlu0 %1641
      %1645 = vset.pattern.permute.xlu0 3
      %1646 = vperm.xlu0 %1645, %v1492
      %v1647 = vpop.permute.xlu0 %1646
      %1650 = vset.pattern.permute.xlu0 3
      %1651 = vperm.xlu0 %1650, %v1493
      %v1652 = vpop.permute.xlu0 %1651
      %v1654 = vmul.f32 %v273, %v1497
      %v1655 = vmul.f32 %v272, %v1502
      %v1656 = vmul.f32 %v271, %v1507
      %v1657 = vmul.f32 %v270, %v1512
      %v1658 = vmul.f32 %v269, %v1517
      %v1659 = vmul.f32 %v268, %v1522
      %v1660 = vmul.f32 %v267, %v1527
      %v1661 = vmul.f32 %v266, %v1532
      %v1662 = vmul.f32 %v265, %v1537
      %v1663 = vmul.f32 %v264, %v1542
      %v1664 = vmul.f32 %v263, %v1547
      %v1665 = vmul.f32 %v262, %v1552
      %v1666 = vmul.f32 %v261, %v1557
      %v1667 = vmul.f32 %v260, %v1562
      %v1668 = vmul.f32 %v259, %v1567
      %v1669 = vmul.f32 %v258, %v1572
      %v1670 = vmul.f32 %v257, %v1577
      %v1671 = vmul.f32 %v256, %v1582
      %v1672 = vmul.f32 %v255, %v1587
      %v1673 = vmul.f32 %v254, %v1592
      %v1674 = vmul.f32 %v253, %v1597
      %v1675 = vmul.f32 %v252, %v1602
      %v1676 = vmul.f32 %v251, %v1607
      %v1677 = vmul.f32 %v250, %v1612
      %v1678 = vmul.f32 %v249, %v1617
      %v1679 = vmul.f32 %v248, %v1622
      %v1680 = vmul.f32 %v247, %v1627
      %v1681 = vmul.f32 %v246, %v1632
      %v1682 = vmul.f32 %v245, %v1637
      %v1683 = vmul.f32 %v244, %v1642
      %v1684 = vmul.f32 %v243, %v1647
      %v1685 = vmul.f32 %v242, %v1652
      %v1686 = vpack.c.bf16 %v1654, %v1654
      %v1687 = vpack.c.bf16 %v1655, %v1655
      %v1688 = vpack.c.bf16 %v1656, %v1656
      %v1689 = vpack.c.bf16 %v1657, %v1657
      %v1690 = vpack.c.bf16 %v1658, %v1658
      %v1691 = vpack.c.bf16 %v1659, %v1659
      %v1692 = vpack.c.bf16 %v1660, %v1660
      %v1693 = vpack.c.bf16 %v1661, %v1661
      %v1694 = vpack.c.bf16 %v1662, %v1662
      %v1695 = vpack.c.bf16 %v1663, %v1663
      %v1696 = vpack.c.bf16 %v1664, %v1664
      %v1697 = vpack.c.bf16 %v1665, %v1665
      %v1698 = vpack.c.bf16 %v1666, %v1666
      %v1699 = vpack.c.bf16 %v1667, %v1667
      %v1700 = vpack.c.bf16 %v1668, %v1668
      %v1701 = vpack.c.bf16 %v1669, %v1669
      %v1702 = vpack.c.bf16 %v1670, %v1670
      %v1703 = vpack.c.bf16 %v1671, %v1671
      %v1704 = vpack.c.bf16 %v1672, %v1672
      %v1705 = vpack.c.bf16 %v1673, %v1673
      %v1706 = vpack.c.bf16 %v1674, %v1674
      %v1707 = vpack.c.bf16 %v1675, %v1675
      %v1708 = vpack.c.bf16 %v1676, %v1676
      %v1709 = vpack.c.bf16 %v1677, %v1677
      %v1710 = vpack.c.bf16 %v1678, %v1678
      %v1711 = vpack.c.bf16 %v1679, %v1679
      %v1712 = vpack.c.bf16 %v1680, %v1680
      %v1713 = vpack.c.bf16 %v1681, %v1681
      %v1714 = vpack.c.bf16 %v1682, %v1682
      %v1715 = vpack.c.bf16 %v1683, %v1683
      %v1716 = vpack.c.bf16 %v1684, %v1684
      %v1717 = vpack.c.bf16 %v1685, %v1685
      %1750 = vrot.lane.b32.xlu0 %v1686, 24
      %v1751 = vpop.permute.xlu0 %1750
      %1752 = vrot.lane.b32.xlu0 %v1687, 24
      %v1753 = vpop.permute.xlu0 %1752
      %1754 = vrot.lane.b32.xlu0 %v1688, 24
      %v1755 = vpop.permute.xlu0 %1754
      %1756 = vrot.lane.b32.xlu0 %v1689, 24
      %v1757 = vpop.permute.xlu0 %1756
      %1758 = vrot.lane.b32.xlu0 %v1690, 24
      %v1759 = vpop.permute.xlu0 %1758
      %1760 = vrot.lane.b32.xlu0 %v1691, 24
      %v1761 = vpop.permute.xlu0 %1760
      %1762 = vrot.lane.b32.xlu0 %v1692, 24
      %v1763 = vpop.permute.xlu0 %1762
      %1764 = vrot.lane.b32.xlu0 %v1693, 24
      %v1765 = vpop.permute.xlu0 %1764
      %1766 = vrot.lane.b32.xlu0 %v1694, 24
      %v1767 = vpop.permute.xlu0 %1766
      %1768 = vrot.lane.b32.xlu0 %v1695, 24
      %v1769 = vpop.permute.xlu0 %1768
      %1770 = vrot.lane.b32.xlu0 %v1696, 24
      %v1771 = vpop.permute.xlu0 %1770
      %1772 = vrot.lane.b32.xlu0 %v1697, 24
      %v1773 = vpop.permute.xlu0 %1772
      %1774 = vrot.lane.b32.xlu0 %v1698, 24
      %v1775 = vpop.permute.xlu0 %1774
      %1776 = vrot.lane.b32.xlu0 %v1699, 24
      %v1777 = vpop.permute.xlu0 %1776
      %1778 = vrot.lane.b32.xlu0 %v1700, 24
      %v1779 = vpop.permute.xlu0 %1778
      %1780 = vrot.lane.b32.xlu0 %v1701, 24
      %v1781 = vpop.permute.xlu0 %1780
      %1782 = vrot.lane.b32.xlu0 %v1702, 24
      %v1783 = vpop.permute.xlu0 %1782
      %1784 = vrot.lane.b32.xlu0 %v1703, 24
      %v1785 = vpop.permute.xlu0 %1784
      %1786 = vrot.lane.b32.xlu0 %v1704, 24
      %v1787 = vpop.permute.xlu0 %1786
      %1788 = vrot.lane.b32.xlu0 %v1705, 24
      %v1789 = vpop.permute.xlu0 %1788
      %1790 = vrot.lane.b32.xlu0 %v1706, 24
      %v1791 = vpop.permute.xlu0 %1790
      %1792 = vrot.lane.b32.xlu0 %v1707, 24
      %v1793 = vpop.permute.xlu0 %1792
      %1794 = vrot.lane.b32.xlu0 %v1708, 24
      %v1795 = vpop.permute.xlu0 %1794
      %1796 = vrot.lane.b32.xlu0 %v1709, 24
      %v1797 = vpop.permute.xlu0 %1796
      %1798 = vrot.lane.b32.xlu0 %v1710, 24
      %v1799 = vpop.permute.xlu0 %1798
      %1800 = vrot.lane.b32.xlu0 %v1711, 24
      %v1801 = vpop.permute.xlu0 %1800
      %1802 = vrot.lane.b32.xlu0 %v1712, 24
      %v1803 = vpop.permute.xlu0 %1802
      %1804 = vrot.lane.b32.xlu0 %v1713, 24
      %v1805 = vpop.permute.xlu0 %1804
      %1806 = vrot.lane.b32.xlu0 %v1714, 24
      %v1807 = vpop.permute.xlu0 %1806
      %1808 = vrot.lane.b32.xlu0 %v1715, 24
      %v1809 = vpop.permute.xlu0 %1808
      %1810 = vrot.lane.b32.xlu0 %v1716, 24
      %v1811 = vpop.permute.xlu0 %1810
      %1812 = vrot.lane.b32.xlu0 %v1717, 24
      %v1813 = vpop.permute.xlu0 %1812
      %vm1846 = vcmask 257216
      %1847 = vst.msk [vmem:[#allocation2] sm:$0xf] %vm1846, %v1751
      %1848 = vst.msk [vmem:[#allocation2 + $0x4] sm:$0xf] %vm1846, %v1753
      %1849 = vst.msk [vmem:[#allocation2 + $0x8] sm:$0xf] %vm1846, %v1755
      %1850 = vst.msk [vmem:[#allocation2 + $0xc] sm:$0xf] %vm1846, %v1757
      %1851 = vst.msk [vmem:[#allocation2 + $0x10] sm:$0xf] %vm1846, %v1759
      %1852 = vst.msk [vmem:[#allocation2 + $0x14] sm:$0xf] %vm1846, %v1761
      %1853 = vst.msk [vmem:[#allocation2 + $0x18] sm:$0xf] %vm1846, %v1763
      %1854 = vst.msk [vmem:[#allocation2 + $0x1c] sm:$0xf] %vm1846, %v1765
      %1855 = vst.msk [vmem:[#allocation2 + $0x20] sm:$0xf] %vm1846, %v1767
      %1856 = vst.msk [vmem:[#allocation2 + $0x24] sm:$0xf] %vm1846, %v1769
      %1857 = vst.msk [vmem:[#allocation2 + $0x28] sm:$0xf] %vm1846, %v1771
      %1858 = vst.msk [vmem:[#allocation2 + $0x2c] sm:$0xf] %vm1846, %v1773
      %1859 = vst.msk [vmem:[#allocation2 + $0x30] sm:$0xf] %vm1846, %v1775
      %1860 = vst.msk [vmem:[#allocation2 + $0x34] sm:$0xf] %vm1846, %v1777
      %1861 = vst.msk [vmem:[#allocation2 + $0x38] sm:$0xf] %vm1846, %v1779
      %1862 = vst.msk [vmem:[#allocation2 + $0x3c] sm:$0xf] %vm1846, %v1781
      %1863 = vst.msk [vmem:[#allocation2 + $0x40] sm:$0xf] %vm1846, %v1783
      %1864 = vst.msk [vmem:[#allocation2 + $0x44] sm:$0xf] %vm1846, %v1785
      %1865 = vst.msk [vmem:[#allocation2 + $0x48] sm:$0xf] %vm1846, %v1787
      %1866 = vst.msk [vmem:[#allocation2 + $0x4c] sm:$0xf] %vm1846, %v1789
      %1867 = vst.msk [vmem:[#allocation2 + $0x50] sm:$0xf] %vm1846, %v1791
      %1868 = vst.msk [vmem:[#allocation2 + $0x54] sm:$0xf] %vm1846, %v1793
      %1869 = vst.msk [vmem:[#allocation2 + $0x58] sm:$0xf] %vm1846, %v1795
      %1870 = vst.msk [vmem:[#allocation2 + $0x5c] sm:$0xf] %vm1846, %v1797
      %1871 = vst.msk [vmem:[#allocation2 + $0x60] sm:$0xf] %vm1846, %v1799
      %1872 = vst.msk [vmem:[#allocation2 + $0x64] sm:$0xf] %vm1846, %v1801
      %1873 = vst.msk [vmem:[#allocation2 + $0x68] sm:$0xf] %vm1846, %v1803
      %1874 = vst.msk [vmem:[#allocation2 + $0x6c] sm:$0xf] %vm1846, %v1805
      %1875 = vst.msk [vmem:[#allocation2 + $0x70] sm:$0xf] %vm1846, %v1807
      %1876 = vst.msk [vmem:[#allocation2 + $0x74] sm:$0xf] %vm1846, %v1809
      %1877 = vst.msk [vmem:[#allocation2 + $0x78] sm:$0xf] %vm1846, %v1811
      %1878 = vst.msk [vmem:[#allocation2 + $0x7c] sm:$0xf] %vm1846, %v1813
      %v1879 = vpack.c.bf16 %v175, %v175
      %v1880 = vpack.c.bf16 %v176, %v176
      %v1881 = vpack.c.bf16 %v177, %v177
      %v1882 = vpack.c.bf16 %v178, %v178
      %v1883 = vpack.c.bf16 %v179, %v179
      %v1884 = vpack.c.bf16 %v180, %v180
      %v1885 = vpack.c.bf16 %v181, %v181
      %v1886 = vpack.c.bf16 %v182, %v182
      %v1887 = vpack.c.bf16 %v183, %v183
      %v1888 = vpack.c.bf16 %v184, %v184
      %v1889 = vpack.c.bf16 %v185, %v185
      %v1890 = vpack.c.bf16 %v186, %v186
      %v1891 = vpack.c.bf16 %v187, %v187
      %v1892 = vpack.c.bf16 %v188, %v188
      %v1893 = vpack.c.bf16 %v189, %v189
      %v1894 = vpack.c.bf16 %v190, %v190
      %v1895 = vpack.c.bf16 %v191, %v191
      %v1896 = vpack.c.bf16 %v192, %v192
      %v1897 = vpack.c.bf16 %v193, %v193
      %v1898 = vpack.c.bf16 %v194, %v194
      %v1899 = vpack.c.bf16 %v195, %v195
      %v1900 = vpack.c.bf16 %v196, %v196
      %v1901 = vpack.c.bf16 %v197, %v197
      %v1902 = vpack.c.bf16 %v198, %v198
      %v1903 = vpack.c.bf16 %v199, %v199
      %v1904 = vpack.c.bf16 %v200, %v200
      %v1905 = vpack.c.bf16 %v201, %v201
      %v1906 = vpack.c.bf16 %v202, %v202
      %v1907 = vpack.c.bf16 %v203, %v203
      %v1908 = vpack.c.bf16 %v204, %v204
      %v1909 = vpack.c.bf16 %v205, %v205
      %v1910 = vpack.c.bf16 %v206, %v206
      %1943 = vrot.lane.b32.xlu0 %v1879, 32
      %v1944 = vpop.permute.xlu0 %1943
      %1945 = vrot.lane.b32.xlu0 %v1880, 32
      %v1946 = vpop.permute.xlu0 %1945
      %1947 = vrot.lane.b32.xlu0 %v1881, 32
      %v1948 = vpop.permute.xlu0 %1947
      %1949 = vrot.lane.b32.xlu0 %v1882, 32
      %v1950 = vpop.permute.xlu0 %1949
      %1951 = vrot.lane.b32.xlu0 %v1883, 32
      %v1952 = vpop.permute.xlu0 %1951
      %1953 = vrot.lane.b32.xlu0 %v1884, 32
      %v1954 = vpop.permute.xlu0 %1953
      %1955 = vrot.lane.b32.xlu0 %v1885, 32
      %v1956 = vpop.permute.xlu0 %1955
      %1957 = vrot.lane.b32.xlu0 %v1886, 32
      %v1958 = vpop.permute.xlu0 %1957
      %1959 = vrot.lane.b32.xlu0 %v1887, 32
      %v1960 = vpop.permute.xlu0 %1959
      %1961 = vrot.lane.b32.xlu0 %v1888, 32
      %v1962 = vpop.permute.xlu0 %1961
      %1963 = vrot.lane.b32.xlu0 %v1889, 32
      %v1964 = vpop.permute.xlu0 %1963
      %1965 = vrot.lane.b32.xlu0 %v1890, 32
      %v1966 = vpop.permute.xlu0 %1965
      %1967 = vrot.lane.b32.xlu0 %v1891, 32
      %v1968 = vpop.permute.xlu0 %1967
      %1969 = vrot.lane.b32.xlu0 %v1892, 32
      %v1970 = vpop.permute.xlu0 %1969
      %1971 = vrot.lane.b32.xlu0 %v1893, 32
      %v1972 = vpop.permute.xlu0 %1971
      %1973 = vrot.lane.b32.xlu0 %v1894, 32
      %v1974 = vpop.permute.xlu0 %1973
      %1975 = vrot.lane.b32.xlu0 %v1895, 32
      %v1976 = vpop.permute.xlu0 %1975
      %1977 = vrot.lane.b32.xlu0 %v1896, 32
      %v1978 = vpop.permute.xlu0 %1977
      %1979 = vrot.lane.b32.xlu0 %v1897, 32
      %v1980 = vpop.permute.xlu0 %1979
      %1981 = vrot.lane.b32.xlu0 %v1898, 32
      %v1982 = vpop.permute.xlu0 %1981
      %1983 = vrot.lane.b32.xlu0 %v1899, 32
      %v1984 = vpop.permute.xlu0 %1983
      %1985 = vrot.lane.b32.xlu0 %v1900, 32
      %v1986 = vpop.permute.xlu0 %1985
      %1987 = vrot.lane.b32.xlu0 %v1901, 32
      %v1988 = vpop.permute.xlu0 %1987
      %1989 = vrot.lane.b32.xlu0 %v1902, 32
      %v1990 = vpop.permute.xlu0 %1989
      %1991 = vrot.lane.b32.xlu0 %v1903, 32
      %v1992 = vpop.permute.xlu0 %1991
      %1993 = vrot.lane.b32.xlu0 %v1904, 32
      %v1994 = vpop.permute.xlu0 %1993
      %1995 = vrot.lane.b32.xlu0 %v1905, 32
      %v1996 = vpop.permute.xlu0 %1995
      %1997 = vrot.lane.b32.xlu0 %v1906, 32
      %v1998 = vpop.permute.xlu0 %1997
      %1999 = vrot.lane.b32.xlu0 %v1907, 32
      %v2000 = vpop.permute.xlu0 %1999
      %2001 = vrot.lane.b32.xlu0 %v1908, 32
      %v2002 = vpop.permute.xlu0 %2001
      %2003 = vrot.lane.b32.xlu0 %v1909, 32
      %v2004 = vpop.permute.xlu0 %2003
      %2005 = vrot.lane.b32.xlu0 %v1910, 32
      %v2006 = vpop.permute.xlu0 %2005
      %vm2039 = vcmask 322816
      %2040 = vst.msk [vmem:[#allocation2] sm:$0xf] %vm2039, %v1944
      %2041 = vst.msk [vmem:[#allocation2 + $0x4] sm:$0xf] %vm2039, %v1946
      %2042 = vst.msk [vmem:[#allocation2 + $0x8] sm:$0xf] %vm2039, %v1948
      %2043 = vst.msk [vmem:[#allocation2 + $0xc] sm:$0xf] %vm2039, %v1950
      %2044 = vst.msk [vmem:[#allocation2 + $0x10] sm:$0xf] %vm2039, %v1952
      %2045 = vst.msk [vmem:[#allocation2 + $0x14] sm:$0xf] %vm2039, %v1954
      %2046 = vst.msk [vmem:[#allocation2 + $0x18] sm:$0xf] %vm2039, %v1956
      %2047 = vst.msk [vmem:[#allocation2 + $0x1c] sm:$0xf] %vm2039, %v1958
      %2048 = vst.msk [vmem:[#allocation2 + $0x20] sm:$0xf] %vm2039, %v1960
      %2049 = vst.msk [vmem:[#allocation2 + $0x24] sm:$0xf] %vm2039, %v1962
      %2050 = vst.msk [vmem:[#allocation2 + $0x28] sm:$0xf] %vm2039, %v1964
      %2051 = vst.msk [vmem:[#allocation2 + $0x2c] sm:$0xf] %vm2039, %v1966
      %2052 = vst.msk [vmem:[#allocation2 + $0x30] sm:$0xf] %vm2039, %v1968
      %2053 = vst.msk [vmem:[#allocation2 + $0x34] sm:$0xf] %vm2039, %v1970
      %2054 = vst.msk [vmem:[#allocation2 + $0x38] sm:$0xf] %vm2039, %v1972
      %2055 = vst.msk [vmem:[#allocation2 + $0x3c] sm:$0xf] %vm2039, %v1974
      %2056 = vst.msk [vmem:[#allocation2 + $0x40] sm:$0xf] %vm2039, %v1976
      %2057 = vst.msk [vmem:[#allocation2 + $0x44] sm:$0xf] %vm2039, %v1978
      %2058 = vst.msk [vmem:[#allocation2 + $0x48] sm:$0xf] %vm2039, %v1980
      %2059 = vst.msk [vmem:[#allocation2 + $0x4c] sm:$0xf] %vm2039, %v1982
      %2060 = vst.msk [vmem:[#allocation2 + $0x50] sm:$0xf] %vm2039, %v1984
      %2061 = vst.msk [vmem:[#allocation2 + $0x54] sm:$0xf] %vm2039, %v1986
      %2062 = vst.msk [vmem:[#allocation2 + $0x58] sm:$0xf] %vm2039, %v1988
      %2063 = vst.msk [vmem:[#allocation2 + $0x5c] sm:$0xf] %vm2039, %v1990
      %2064 = vst.msk [vmem:[#allocation2 + $0x60] sm:$0xf] %vm2039, %v1992
      %2065 = vst.msk [vmem:[#allocation2 + $0x64] sm:$0xf] %vm2039, %v1994
      %2066 = vst.msk [vmem:[#allocation2 + $0x68] sm:$0xf] %vm2039, %v1996
      %2067 = vst.msk [vmem:[#allocation2 + $0x6c] sm:$0xf] %vm2039, %v1998
      %2068 = vst.msk [vmem:[#allocation2 + $0x70] sm:$0xf] %vm2039, %v2000
      %2069 = vst.msk [vmem:[#allocation2 + $0x74] sm:$0xf] %vm2039, %v2002
      %2070 = vst.msk [vmem:[#allocation2 + $0x78] sm:$0xf] %vm2039, %v2004
      %2071 = vst.msk [vmem:[#allocation2 + $0x7c] sm:$0xf] %vm2039, %v2006
      %v2072 = vld [vmem:[%s2] sm:$0xff]
      %v2073 = vld [vmem:[%s2 + $0x8] sm:$0xff]
      %v2074 = vld [vmem:[%s2 + $0x10] sm:$0xff]
      %v2075 = vld [vmem:[%s2 + $0x18] sm:$0xff]
      %v2076 = vld [vmem:[%s2 + $0x20] sm:$0xff]
      %v2077 = vld [vmem:[%s2 + $0x28] sm:$0xff]
      %v2078 = vld [vmem:[%s2 + $0x30] sm:$0xff]
      %v2079 = vld [vmem:[%s2 + $0x38] sm:$0xff]
      %v2080 = vld [vmem:[%s2 + $0x40] sm:$0xff]
      %v2081 = vld [vmem:[%s2 + $0x48] sm:$0xff]
      %v2082 = vld [vmem:[%s2 + $0x50] sm:$0xff]
      %v2083 = vld [vmem:[%s2 + $0x58] sm:$0xff]
      %v2084 = vld [vmem:[%s2 + $0x60] sm:$0xff]
      %v2085 = vld [vmem:[%s2 + $0x68] sm:$0xff]
      %v2086 = vld [vmem:[%s2 + $0x70] sm:$0xff]
      %v2087 = vld [vmem:[%s2 + $0x78] sm:$0xff]
      %v2088 = vld [vmem:[%s2 + $0x80] sm:$0xff]
      %v2089 = vld [vmem:[%s2 + $0x88] sm:$0xff]
      %v2090 = vld [vmem:[%s2 + $0x90] sm:$0xff]
      %v2091 = vld [vmem:[%s2 + $0x98] sm:$0xff]
      %v2092 = vld [vmem:[%s2 + $0xa0] sm:$0xff]
      %v2093 = vld [vmem:[%s2 + $0xa8] sm:$0xff]
      %v2094 = vld [vmem:[%s2 + $0xb0] sm:$0xff]
      %v2095 = vld [vmem:[%s2 + $0xb8] sm:$0xff]
      %v2096 = vld [vmem:[%s2 + $0xc0] sm:$0xff]
      %v2097 = vld [vmem:[%s2 + $0xc8] sm:$0xff]
      %v2098 = vld [vmem:[%s2 + $0xd0] sm:$0xff]
      %v2099 = vld [vmem:[%s2 + $0xd8] sm:$0xff]
      %v2100 = vld [vmem:[%s2 + $0xe0] sm:$0xff]
      %v2101 = vld [vmem:[%s2 + $0xe8] sm:$0xff]
      %v2102 = vld [vmem:[%s2 + $0xf0] sm:$0xff]
      %v2103 = vld [vmem:[%s2 + $0xf8] sm:$0xff]
      %2105 = vset.pattern.permute.xlu0 5
      %2106 = vperm.xlu0 %2105, %v2072
      %v2107 = vpop.permute.xlu0 %2106
      %2110 = vset.pattern.permute.xlu0 5
      %2111 = vperm.xlu0 %2110, %v2073
      %v2112 = vpop.permute.xlu0 %2111
      %2115 = vset.pattern.permute.xlu0 5
      %2116 = vperm.xlu0 %2115, %v2074
      %v2117 = vpop.permute.xlu0 %2116
      %2120 = vset.pattern.permute.xlu0 5
      %2121 = vperm.xlu0 %2120, %v2075
      %v2122 = vpop.permute.xlu0 %2121
      %2125 = vset.pattern.permute.xlu0 5
      %2126 = vperm.xlu0 %2125, %v2076
      %v2127 = vpop.permute.xlu0 %2126
      %2130 = vset.pattern.permute.xlu0 5
      %2131 = vperm.xlu0 %2130, %v2077
      %v2132 = vpop.permute.xlu0 %2131
      %2135 = vset.pattern.permute.xlu0 5
      %2136 = vperm.xlu0 %2135, %v2078
      %v2137 = vpop.permute.xlu0 %2136
      %2140 = vset.pattern.permute.xlu0 5
      %2141 = vperm.xlu0 %2140, %v2079
      %v2142 = vpop.permute.xlu0 %2141
      %2145 = vset.pattern.permute.xlu0 5
      %2146 = vperm.xlu0 %2145, %v2080
      %v2147 = vpop.permute.xlu0 %2146
      %2150 = vset.pattern.permute.xlu0 5
      %2151 = vperm.xlu0 %2150, %v2081
      %v2152 = vpop.permute.xlu0 %2151
      %2155 = vset.pattern.permute.xlu0 5
      %2156 = vperm.xlu0 %2155, %v2082
      %v2157 = vpop.permute.xlu0 %2156
      %2160 = vset.pattern.permute.xlu0 5
      %2161 = vperm.xlu0 %2160, %v2083
      %v2162 = vpop.permute.xlu0 %2161
      %2165 = vset.pattern.permute.xlu0 5
      %2166 = vperm.xlu0 %2165, %v2084
      %v2167 = vpop.permute.xlu0 %2166
      %2170 = vset.pattern.permute.xlu0 5
      %2171 = vperm.xlu0 %2170, %v2085
      %v2172 = vpop.permute.xlu0 %2171
      %2175 = vset.pattern.permute.xlu0 5
      %2176 = vperm.xlu0 %2175, %v2086
      %v2177 = vpop.permute.xlu0 %2176
      %2180 = vset.pattern.permute.xlu0 5
      %2181 = vperm.xlu0 %2180, %v2087
      %v2182 = vpop.permute.xlu0 %2181
      %2185 = vset.pattern.permute.xlu0 5
      %2186 = vperm.xlu0 %2185, %v2088
      %v2187 = vpop.permute.xlu0 %2186
      %2190 = vset.pattern.permute.xlu0 5
      %2191 = vperm.xlu0 %2190, %v2089
      %v2192 = vpop.permute.xlu0 %2191
      %2195 = vset.pattern.permute.xlu0 5
      %2196 = vperm.xlu0 %2195, %v2090
      %v2197 = vpop.permute.xlu0 %2196
      %2200 = vset.pattern.permute.xlu0 5
      %2201 = vperm.xlu0 %2200, %v2091
      %v2202 = vpop.permute.xlu0 %2201
      %2205 = vset.pattern.permute.xlu0 5
      %2206 = vperm.xlu0 %2205, %v2092
      %v2207 = vpop.permute.xlu0 %2206
      %2210 = vset.pattern.permute.xlu0 5
      %2211 = vperm.xlu0 %2210, %v2093
      %v2212 = vpop.permute.xlu0 %2211
      %2215 = vset.pattern.permute.xlu0 5
      %2216 = vperm.xlu0 %2215, %v2094
      %v2217 = vpop.permute.xlu0 %2216
      %2220 = vset.pattern.permute.xlu0 5
      %2221 = vperm.xlu0 %2220, %v2095
      %v2222 = vpop.permute.xlu0 %2221
      %2225 = vset.pattern.permute.xlu0 5
      %2226 = vperm.xlu0 %2225, %v2096
      %v2227 = vpop.permute.xlu0 %2226
      %2230 = vset.pattern.permute.xlu0 5
      %2231 = vperm.xlu0 %2230, %v2097
      %v2232 = vpop.permute.xlu0 %2231
      %2235 = vset.pattern.permute.xlu0 5
      %2236 = vperm.xlu0 %2235, %v2098
      %v2237 = vpop.permute.xlu0 %2236
      %2240 = vset.pattern.permute.xlu0 5
      %2241 = vperm.xlu0 %2240, %v2099
      %v2242 = vpop.permute.xlu0 %2241
      %2245 = vset.pattern.permute.xlu0 5
      %2246 = vperm.xlu0 %2245, %v2100
      %v2247 = vpop.permute.xlu0 %2246
      %2250 = vset.pattern.permute.xlu0 5
      %2251 = vperm.xlu0 %2250, %v2101
      %v2252 = vpop.permute.xlu0 %2251
      %2255 = vset.pattern.permute.xlu0 5
      %2256 = vperm.xlu0 %2255, %v2102
      %v2257 = vpop.permute.xlu0 %2256
      %2260 = vset.pattern.permute.xlu0 5
      %2261 = vperm.xlu0 %2260, %v2103
      %v2262 = vpop.permute.xlu0 %2261
      %v2264 = vmul.f32 %v1043, %v2107
      %v2265 = vmul.f32 %v1042, %v2112
      %v2266 = vmul.f32 %v1041, %v2117
      %v2267 = vmul.f32 %v1040, %v2122
      %v2268 = vmul.f32 %v1039, %v2127
      %v2269 = vmul.f32 %v1038, %v2132
      %v2270 = vmul.f32 %v1037, %v2137
      %v2271 = vmul.f32 %v1036, %v2142
      %v2272 = vmul.f32 %v1035, %v2147
      %v2273 = vmul.f32 %v1034, %v2152
      %v2274 = vmul.f32 %v1033, %v2157
      %v2275 = vmul.f32 %v1032, %v2162
      %v2276 = vmul.f32 %v1031, %v2167
      %v2277 = vmul.f32 %v1030, %v2172
      %v2278 = vmul.f32 %v1029, %v2177
      %v2279 = vmul.f32 %v1028, %v2182
      %v2280 = vmul.f32 %v1027, %v2187
      %v2281 = vmul.f32 %v1026, %v2192
      %v2282 = vmul.f32 %v1025, %v2197
      %v2283 = vmul.f32 %v1024, %v2202
      %v2284 = vmul.f32 %v1023, %v2207
      %v2285 = vmul.f32 %v1022, %v2212
      %v2286 = vmul.f32 %v1021, %v2217
      %v2287 = vmul.f32 %v1020, %v2222
      %v2288 = vmul.f32 %v1019, %v2227
      %v2289 = vmul.f32 %v1018, %v2232
      %v2290 = vmul.f32 %v1017, %v2237
      %v2291 = vmul.f32 %v1016, %v2242
      %v2292 = vmul.f32 %v1015, %v2247
      %v2293 = vmul.f32 %v1014, %v2252
      %v2294 = vmul.f32 %v1013, %v2257
      %v2295 = vmul.f32 %v1044, %v2262
      %v2296 = vpack.c.bf16 %v2264, %v2264
      %v2297 = vpack.c.bf16 %v2265, %v2265
      %v2298 = vpack.c.bf16 %v2266, %v2266
      %v2299 = vpack.c.bf16 %v2267, %v2267
      %v2300 = vpack.c.bf16 %v2268, %v2268
      %v2301 = vpack.c.bf16 %v2269, %v2269
      %v2302 = vpack.c.bf16 %v2270, %v2270
      %v2303 = vpack.c.bf16 %v2271, %v2271
      %v2304 = vpack.c.bf16 %v2272, %v2272
      %v2305 = vpack.c.bf16 %v2273, %v2273
      %v2306 = vpack.c.bf16 %v2274, %v2274
      %v2307 = vpack.c.bf16 %v2275, %v2275
      %v2308 = vpack.c.bf16 %v2276, %v2276
      %v2309 = vpack.c.bf16 %v2277, %v2277
      %v2310 = vpack.c.bf16 %v2278, %v2278
      %v2311 = vpack.c.bf16 %v2279, %v2279
      %v2312 = vpack.c.bf16 %v2280, %v2280
      %v2313 = vpack.c.bf16 %v2281, %v2281
      %v2314 = vpack.c.bf16 %v2282, %v2282
      %v2315 = vpack.c.bf16 %v2283, %v2283
      %v2316 = vpack.c.bf16 %v2284, %v2284
      %v2317 = vpack.c.bf16 %v2285, %v2285
      %v2318 = vpack.c.bf16 %v2286, %v2286
      %v2319 = vpack.c.bf16 %v2287, %v2287
      %v2320 = vpack.c.bf16 %v2288, %v2288
      %v2321 = vpack.c.bf16 %v2289, %v2289
      %v2322 = vpack.c.bf16 %v2290, %v2290
      %v2323 = vpack.c.bf16 %v2291, %v2291
      %v2324 = vpack.c.bf16 %v2292, %v2292
      %v2325 = vpack.c.bf16 %v2293, %v2293
      %v2326 = vpack.c.bf16 %v2294, %v2294
      %v2327 = vpack.c.bf16 %v2295, %v2295
      %2360 = vrot.lane.b32.xlu0 %v2296, 40
      %v2361 = vpop.permute.xlu0 %2360
      %2362 = vrot.lane.b32.xlu0 %v2297, 40
      %v2363 = vpop.permute.xlu0 %2362
      %2364 = vrot.lane.b32.xlu0 %v2298, 40
      %v2365 = vpop.permute.xlu0 %2364
      %2366 = vrot.lane.b32.xlu0 %v2299, 40
      %v2367 = vpop.permute.xlu0 %2366
      %2368 = vrot.lane.b32.xlu0 %v2300, 40
      %v2369 = vpop.permute.xlu0 %2368
      %2370 = vrot.lane.b32.xlu0 %v2301, 40
      %v2371 = vpop.permute.xlu0 %2370
      %2372 = vrot.lane.b32.xlu0 %v2302, 40
      %v2373 = vpop.permute.xlu0 %2372
      %2374 = vrot.lane.b32.xlu0 %v2303, 40
      %v2375 = vpop.permute.xlu0 %2374
      %2376 = vrot.lane.b32.xlu0 %v2304, 40
      %v2377 = vpop.permute.xlu0 %2376
      %2378 = vrot.lane.b32.xlu0 %v2305, 40
      %v2379 = vpop.permute.xlu0 %2378
      %2380 = vrot.lane.b32.xlu0 %v2306, 40
      %v2381 = vpop.permute.xlu0 %2380
      %2382 = vrot.lane.b32.xlu0 %v2307, 40
      %v2383 = vpop.permute.xlu0 %2382
      %2384 = vrot.lane.b32.xlu0 %v2308, 40
      %v2385 = vpop.permute.xlu0 %2384
      %2386 = vrot.lane.b32.xlu0 %v2309, 40
      %v2387 = vpop.permute.xlu0 %2386
      %2388 = vrot.lane.b32.xlu0 %v2310, 40
      %v2389 = vpop.permute.xlu0 %2388
      %2390 = vrot.lane.b32.xlu0 %v2311, 40
      %v2391 = vpop.permute.xlu0 %2390
      %2392 = vrot.lane.b32.xlu0 %v2312, 40
      %v2393 = vpop.permute.xlu0 %2392
      %2394 = vrot.lane.b32.xlu0 %v2313, 40
      %v2395 = vpop.permute.xlu0 %2394
      %2396 = vrot.lane.b32.xlu0 %v2314, 40
      %v2397 = vpop.permute.xlu0 %2396
      %2398 = vrot.lane.b32.xlu0 %v2315, 40
      %v2399 = vpop.permute.xlu0 %2398
      %2400 = vrot.lane.b32.xlu0 %v2316, 40
      %v2401 = vpop.permute.xlu0 %2400
      %2402 = vrot.lane.b32.xlu0 %v2317, 40
      %v2403 = vpop.permute.xlu0 %2402
      %2404 = vrot.lane.b32.xlu0 %v2318, 40
      %v2405 = vpop.permute.xlu0 %2404
      %2406 = vrot.lane.b32.xlu0 %v2319, 40
      %v2407 = vpop.permute.xlu0 %2406
      %2408 = vrot.lane.b32.xlu0 %v2320, 40
      %v2409 = vpop.permute.xlu0 %2408
      %2410 = vrot.lane.b32.xlu0 %v2321, 40
      %v2411 = vpop.permute.xlu0 %2410
      %2412 = vrot.lane.b32.xlu0 %v2322, 40
      %v2413 = vpop.permute.xlu0 %2412
      %2414 = vrot.lane.b32.xlu0 %v2323, 40
      %v2415 = vpop.permute.xlu0 %2414
      %2416 = vrot.lane.b32.xlu0 %v2324, 40
      %v2417 = vpop.permute.xlu0 %2416
      %2418 = vrot.lane.b32.xlu0 %v2325, 40
      %v2419 = vpop.permute.xlu0 %2418
      %2420 = vrot.lane.b32.xlu0 %v2326, 40
      %v2421 = vpop.permute.xlu0 %2420
      %2422 = vrot.lane.b32.xlu0 %v2327, 40
      %v2423 = vpop.permute.xlu0 %2422
      %vm2456 = vcmask 388416
      %2457 = vst.msk [vmem:[#allocation2] sm:$0xf] %vm2456, %v2361
      %2458 = vst.msk [vmem:[#allocation2 + $0x4] sm:$0xf] %vm2456, %v2363
      %2459 = vst.msk [vmem:[#allocation2 + $0x8] sm:$0xf] %vm2456, %v2365
      %2460 = vst.msk [vmem:[#allocation2 + $0xc] sm:$0xf] %vm2456, %v2367
      %2461 = vst.msk [vmem:[#allocation2 + $0x10] sm:$0xf] %vm2456, %v2369
      %2462 = vst.msk [vmem:[#allocation2 + $0x14] sm:$0xf] %vm2456, %v2371
      %2463 = vst.msk [vmem:[#allocation2 + $0x18] sm:$0xf] %vm2456, %v2373
      %2464 = vst.msk [vmem:[#allocation2 + $0x1c] sm:$0xf] %vm2456, %v2375
      %2465 = vst.msk [vmem:[#allocation2 + $0x20] sm:$0xf] %vm2456, %v2377
      %2466 = vst.msk [vmem:[#allocation2 + $0x24] sm:$0xf] %vm2456, %v2379
      %2467 = vst.msk [vmem:[#allocation2 + $0x28] sm:$0xf] %vm2456, %v2381
      %2468 = vst.msk [vmem:[#allocation2 + $0x2c] sm:$0xf] %vm2456, %v2383
      %2469 = vst.msk [vmem:[#allocation2 + $0x30] sm:$0xf] %vm2456, %v2385
      %2470 = vst.msk [vmem:[#allocation2 + $0x34] sm:$0xf] %vm2456, %v2387
      %2471 = vst.msk [vmem:[#allocation2 + $0x38] sm:$0xf] %vm2456, %v2389
      %2472 = vst.msk [vmem:[#allocation2 + $0x3c] sm:$0xf] %vm2456, %v2391
      %2473 = vst.msk [vmem:[#allocation2 + $0x40] sm:$0xf] %vm2456, %v2393
      %2474 = vst.msk [vmem:[#allocation2 + $0x44] sm:$0xf] %vm2456, %v2395
      %2475 = vst.msk [vmem:[#allocation2 + $0x48] sm:$0xf] %vm2456, %v2397
      %2476 = vst.msk [vmem:[#allocation2 + $0x4c] sm:$0xf] %vm2456, %v2399
      %2477 = vst.msk [vmem:[#allocation2 + $0x50] sm:$0xf] %vm2456, %v2401
      %2478 = vst.msk [vmem:[#allocation2 + $0x54] sm:$0xf] %vm2456, %v2403
      %2479 = vst.msk [vmem:[#allocation2 + $0x58] sm:$0xf] %vm2456, %v2405
      %2480 = vst.msk [vmem:[#allocation2 + $0x5c] sm:$0xf] %vm2456, %v2407
      %2481 = vst.msk [vmem:[#allocation2 + $0x60] sm:$0xf] %vm2456, %v2409
      %2482 = vst.msk [vmem:[#allocation2 + $0x64] sm:$0xf] %vm2456, %v2411
      %2483 = vst.msk [vmem:[#allocation2 + $0x68] sm:$0xf] %vm2456, %v2413
      %2484 = vst.msk [vmem:[#allocation2 + $0x6c] sm:$0xf] %vm2456, %v2415
      %2485 = vst.msk [vmem:[#allocation2 + $0x70] sm:$0xf] %vm2456, %v2417
      %2486 = vst.msk [vmem:[#allocation2 + $0x74] sm:$0xf] %vm2456, %v2419
      %2487 = vst.msk [vmem:[#allocation2 + $0x78] sm:$0xf] %vm2456, %v2421
      %2488 = vst.msk [vmem:[#allocation2 + $0x7c] sm:$0xf] %vm2456, %v2423
      %v2489 = vld [vmem:[%s2] sm:$0xff]
      %v2490 = vld [vmem:[%s2 + $0x8] sm:$0xff]
      %v2491 = vld [vmem:[%s2 + $0x10] sm:$0xff]
      %v2492 = vld [vmem:[%s2 + $0x18] sm:$0xff]
      %v2493 = vld [vmem:[%s2 + $0x20] sm:$0xff]
      %v2494 = vld [vmem:[%s2 + $0x28] sm:$0xff]
      %v2495 = vld [vmem:[%s2 + $0x30] sm:$0xff]
      %v2496 = vld [vmem:[%s2 + $0x38] sm:$0xff]
      %v2497 = vld [vmem:[%s2 + $0x40] sm:$0xff]
      %v2498 = vld [vmem:[%s2 + $0x48] sm:$0xff]
      %v2499 = vld [vmem:[%s2 + $0x50] sm:$0xff]
      %v2500 = vld [vmem:[%s2 + $0x58] sm:$0xff]
      %v2501 = vld [vmem:[%s2 + $0x60] sm:$0xff]
      %v2502 = vld [vmem:[%s2 + $0x68] sm:$0xff]
      %v2503 = vld [vmem:[%s2 + $0x70] sm:$0xff]
      %v2504 = vld [vmem:[%s2 + $0x78] sm:$0xff]
      %v2505 = vld [vmem:[%s2 + $0x80] sm:$0xff]
      %v2506 = vld [vmem:[%s2 + $0x88] sm:$0xff]
      %v2507 = vld [vmem:[%s2 + $0x90] sm:$0xff]
      %v2508 = vld [vmem:[%s2 + $0x98] sm:$0xff]
      %v2509 = vld [vmem:[%s2 + $0xa0] sm:$0xff]
      %v2510 = vld [vmem:[%s2 + $0xa8] sm:$0xff]
      %v2511 = vld [vmem:[%s2 + $0xb0] sm:$0xff]
      %v2512 = vld [vmem:[%s2 + $0xb8] sm:$0xff]
      %v2513 = vld [vmem:[%s2 + $0xc0] sm:$0xff]
      %v2514 = vld [vmem:[%s2 + $0xc8] sm:$0xff]
      %v2515 = vld [vmem:[%s2 + $0xd0] sm:$0xff]
      %v2516 = vld [vmem:[%s2 + $0xd8] sm:$0xff]
      %v2517 = vld [vmem:[%s2 + $0xe0] sm:$0xff]
      %v2518 = vld [vmem:[%s2 + $0xe8] sm:$0xff]
      %v2519 = vld [vmem:[%s2 + $0xf0] sm:$0xff]
      %v2520 = vld [vmem:[%s2 + $0xf8] sm:$0xff]
      %2522 = vset.pattern.permute.xlu0 6
      %2523 = vperm.xlu0 %2522, %v2489
      %v2524 = vpop.permute.xlu0 %2523
      %2527 = vset.pattern.permute.xlu0 6
      %2528 = vperm.xlu0 %2527, %v2490
      %v2529 = vpop.permute.xlu0 %2528
      %2532 = vset.pattern.permute.xlu0 6
      %2533 = vperm.xlu0 %2532, %v2491
      %v2534 = vpop.permute.xlu0 %2533
      %2537 = vset.pattern.permute.xlu0 6
      %2538 = vperm.xlu0 %2537, %v2492
      %v2539 = vpop.permute.xlu0 %2538
      %2542 = vset.pattern.permute.xlu0 6
      %2543 = vperm.xlu0 %2542, %v2493
      %v2544 = vpop.permute.xlu0 %2543
      %2547 = vset.pattern.permute.xlu0 6
      %2548 = vperm.xlu0 %2547, %v2494
      %v2549 = vpop.permute.xlu0 %2548
      %2552 = vset.pattern.permute.xlu0 6
      %2553 = vperm.xlu0 %2552, %v2495
      %v2554 = vpop.permute.xlu0 %2553
      %2557 = vset.pattern.permute.xlu0 6
      %2558 = vperm.xlu0 %2557, %v2496
      %v2559 = vpop.permute.xlu0 %2558
      %2562 = vset.pattern.permute.xlu0 6
      %2563 = vperm.xlu0 %2562, %v2497
      %v2564 = vpop.permute.xlu0 %2563
      %2567 = vset.pattern.permute.xlu0 6
      %2568 = vperm.xlu0 %2567, %v2498
      %v2569 = vpop.permute.xlu0 %2568
      %2572 = vset.pattern.permute.xlu0 6
      %2573 = vperm.xlu0 %2572, %v2499
      %v2574 = vpop.permute.xlu0 %2573
      %2577 = vset.pattern.permute.xlu0 6
      %2578 = vperm.xlu0 %2577, %v2500
      %v2579 = vpop.permute.xlu0 %2578
      %2582 = vset.pattern.permute.xlu0 6
      %2583 = vperm.xlu0 %2582, %v2501
      %v2584 = vpop.permute.xlu0 %2583
      %2587 = vset.pattern.permute.xlu0 6
      %2588 = vperm.xlu0 %2587, %v2502
      %v2589 = vpop.permute.xlu0 %2588
      %2592 = vset.pattern.permute.xlu0 6
      %2593 = vperm.xlu0 %2592, %v2503
      %v2594 = vpop.permute.xlu0 %2593
      %2597 = vset.pattern.permute.xlu0 6
      %2598 = vperm.xlu0 %2597, %v2504
      %v2599 = vpop.permute.xlu0 %2598
      %2602 = vset.pattern.permute.xlu0 6
      %2603 = vperm.xlu0 %2602, %v2505
      %v2604 = vpop.permute.xlu0 %2603
      %2607 = vset.pattern.permute.xlu0 6
      %2608 = vperm.xlu0 %2607, %v2506
      %v2609 = vpop.permute.xlu0 %2608
      %2612 = vset.pattern.permute.xlu0 6
      %2613 = vperm.xlu0 %2612, %v2507
      %v2614 = vpop.permute.xlu0 %2613
      %2617 = vset.pattern.permute.xlu0 6
      %2618 = vperm.xlu0 %2617, %v2508
      %v2619 = vpop.permute.xlu0 %2618
      %2622 = vset.pattern.permute.xlu0 6
      %2623 = vperm.xlu0 %2622, %v2509
      %v2624 = vpop.permute.xlu0 %2623
      %2627 = vset.pattern.permute.xlu0 6
      %2628 = vperm.xlu0 %2627, %v2510
      %v2629 = vpop.permute.xlu0 %2628
      %2632 = vset.pattern.permute.xlu0 6
      %2633 = vperm.xlu0 %2632, %v2511
      %v2634 = vpop.permute.xlu0 %2633
      %2637 = vset.pattern.permute.xlu0 6
      %2638 = vperm.xlu0 %2637, %v2512
      %v2639 = vpop.permute.xlu0 %2638
      %2642 = vset.pattern.permute.xlu0 6
      %2643 = vperm.xlu0 %2642, %v2513
      %v2644 = vpop.permute.xlu0 %2643
      %2647 = vset.pattern.permute.xlu0 6
      %2648 = vperm.xlu0 %2647, %v2514
      %v2649 = vpop.permute.xlu0 %2648
      %2652 = vset.pattern.permute.xlu0 6
      %2653 = vperm.xlu0 %2652, %v2515
      %v2654 = vpop.permute.xlu0 %2653
      %2657 = vset.pattern.permute.xlu0 6
      %2658 = vperm.xlu0 %2657, %v2516
      %v2659 = vpop.permute.xlu0 %2658
      %2662 = vset.pattern.permute.xlu0 6
      %2663 = vperm.xlu0 %2662, %v2517
      %v2664 = vpop.permute.xlu0 %2663
      %2667 = vset.pattern.permute.xlu0 6
      %2668 = vperm.xlu0 %2667, %v2518
      %v2669 = vpop.permute.xlu0 %2668
      %2672 = vset.pattern.permute.xlu0 6
      %2673 = vperm.xlu0 %2672, %v2519
      %v2674 = vpop.permute.xlu0 %2673
      %2677 = vset.pattern.permute.xlu0 6
      %2678 = vperm.xlu0 %2677, %v2520
      %v2679 = vpop.permute.xlu0 %2678
      %v2681 = vmul.f32 %v272, %v2524
      %v2682 = vmul.f32 %v271, %v2529
      %v2683 = vmul.f32 %v270, %v2534
      %v2684 = vmul.f32 %v269, %v2539
      %v2685 = vmul.f32 %v268, %v2544
      %v2686 = vmul.f32 %v267, %v2549
      %v2687 = vmul.f32 %v266, %v2554
      %v2688 = vmul.f32 %v265, %v2559
      %v2689 = vmul.f32 %v264, %v2564
      %v2690 = vmul.f32 %v263, %v2569
      %v2691 = vmul.f32 %v262, %v2574
      %v2692 = vmul.f32 %v261, %v2579
      %v2693 = vmul.f32 %v260, %v2584
      %v2694 = vmul.f32 %v259, %v2589
      %v2695 = vmul.f32 %v258, %v2594
      %v2696 = vmul.f32 %v257, %v2599
      %v2697 = vmul.f32 %v256, %v2604
      %v2698 = vmul.f32 %v255, %v2609
      %v2699 = vmul.f32 %v254, %v2614
      %v2700 = vmul.f32 %v253, %v2619
      %v2701 = vmul.f32 %v252, %v2624
      %v2702 = vmul.f32 %v251, %v2629
      %v2703 = vmul.f32 %v250, %v2634
      %v2704 = vmul.f32 %v249, %v2639
      %v2705 = vmul.f32 %v248, %v2644
      %v2706 = vmul.f32 %v247, %v2649
      %v2707 = vmul.f32 %v246, %v2654
      %v2708 = vmul.f32 %v245, %v2659
      %v2709 = vmul.f32 %v244, %v2664
      %v2710 = vmul.f32 %v243, %v2669
      %v2711 = vmul.f32 %v242, %v2674
      %v2712 = vmul.f32 %v273, %v2679
      %v2713 = vpack.c.bf16 %v2681, %v2681
      %v2714 = vpack.c.bf16 %v2682, %v2682
      %v2715 = vpack.c.bf16 %v2683, %v2683
      %v2716 = vpack.c.bf16 %v2684, %v2684
      %v2717 = vpack.c.bf16 %v2685, %v2685
      %v2718 = vpack.c.bf16 %v2686, %v2686
      %v2719 = vpack.c.bf16 %v2687, %v2687
      %v2720 = vpack.c.bf16 %v2688, %v2688
      %v2721 = vpack.c.bf16 %v2689, %v2689
      %v2722 = vpack.c.bf16 %v2690, %v2690
      %v2723 = vpack.c.bf16 %v2691, %v2691
      %v2724 = vpack.c.bf16 %v2692, %v2692
      %v2725 = vpack.c.bf16 %v2693, %v2693
      %v2726 = vpack.c.bf16 %v2694, %v2694
      %v2727 = vpack.c.bf16 %v2695, %v2695
      %v2728 = vpack.c.bf16 %v2696, %v2696
      %v2729 = vpack.c.bf16 %v2697, %v2697
      %v2730 = vpack.c.bf16 %v2698, %v2698
      %v2731 = vpack.c.bf16 %v2699, %v2699
      %v2732 = vpack.c.bf16 %v2700, %v2700
      %v2733 = vpack.c.bf16 %v2701, %v2701
      %v2734 = vpack.c.bf16 %v2702, %v2702
      %v2735 = vpack.c.bf16 %v2703, %v2703
      %v2736 = vpack.c.bf16 %v2704, %v2704
      %v2737 = vpack.c.bf16 %v2705, %v2705
      %v2738 = vpack.c.bf16 %v2706, %v2706
      %v2739 = vpack.c.bf16 %v2707, %v2707
      %v2740 = vpack.c.bf16 %v2708, %v2708
      %v2741 = vpack.c.bf16 %v2709, %v2709
      %v2742 = vpack.c.bf16 %v2710, %v2710
      %v2743 = vpack.c.bf16 %v2711, %v2711
      %v2744 = vpack.c.bf16 %v2712, %v2712
      %2777 = vrot.lane.b32.xlu0 %v2713, 48
      %v2778 = vpop.permute.xlu0 %2777
      %2779 = vrot.lane.b32.xlu0 %v2714, 48
      %v2780 = vpop.permute.xlu0 %2779
      %2781 = vrot.lane.b32.xlu0 %v2715, 48
      %v2782 = vpop.permute.xlu0 %2781
      %2783 = vrot.lane.b32.xlu0 %v2716, 48
      %v2784 = vpop.permute.xlu0 %2783
      %2785 = vrot.lane.b32.xlu0 %v2717, 48
      %v2786 = vpop.permute.xlu0 %2785
      %2787 = vrot.lane.b32.xlu0 %v2718, 48
      %v2788 = vpop.permute.xlu0 %2787
      %2789 = vrot.lane.b32.xlu0 %v2719, 48
      %v2790 = vpop.permute.xlu0 %2789
      %2791 = vrot.lane.b32.xlu0 %v2720, 48
      %v2792 = vpop.permute.xlu0 %2791
      %2793 = vrot.lane.b32.xlu0 %v2721, 48
      %v2794 = vpop.permute.xlu0 %2793
      %2795 = vrot.lane.b32.xlu0 %v2722, 48
      %v2796 = vpop.permute.xlu0 %2795
      %2797 = vrot.lane.b32.xlu0 %v2723, 48
      %v2798 = vpop.permute.xlu0 %2797
      %2799 = vrot.lane.b32.xlu0 %v2724, 48
      %v2800 = vpop.permute.xlu0 %2799
      %2801 = vrot.lane.b32.xlu0 %v2725, 48
      %v2802 = vpop.permute.xlu0 %2801
      %2803 = vrot.lane.b32.xlu0 %v2726, 48
      %v2804 = vpop.permute.xlu0 %2803
      %2805 = vrot.lane.b32.xlu0 %v2727, 48
      %v2806 = vpop.permute.xlu0 %2805
      %2807 = vrot.lane.b32.xlu0 %v2728, 48
      %v2808 = vpop.permute.xlu0 %2807
      %2809 = vrot.lane.b32.xlu0 %v2729, 48
      %v2810 = vpop.permute.xlu0 %2809
      %2811 = vrot.lane.b32.xlu0 %v2730, 48
      %v2812 = vpop.permute.xlu0 %2811
      %2813 = vrot.lane.b32.xlu0 %v2731, 48
      %v2814 = vpop.permute.xlu0 %2813
      %2815 = vrot.lane.b32.xlu0 %v2732, 48
      %v2816 = vpop.permute.xlu0 %2815
      %2817 = vrot.lane.b32.xlu0 %v2733, 48
      %v2818 = vpop.permute.xlu0 %2817
      %2819 = vrot.lane.b32.xlu0 %v2734, 48
      %v2820 = vpop.permute.xlu0 %2819
      %2821 = vrot.lane.b32.xlu0 %v2735, 48
      %v2822 = vpop.permute.xlu0 %2821
      %2823 = vrot.lane.b32.xlu0 %v2736, 48
      %v2824 = vpop.permute.xlu0 %2823
      %2825 = vrot.lane.b32.xlu0 %v2737, 48
      %v2826 = vpop.permute.xlu0 %2825
      %2827 = vrot.lane.b32.xlu0 %v2738, 48
      %v2828 = vpop.permute.xlu0 %2827
      %2829 = vrot.lane.b32.xlu0 %v2739, 48
      %v2830 = vpop.permute.xlu0 %2829
      %2831 = vrot.lane.b32.xlu0 %v2740, 48
      %v2832 = vpop.permute.xlu0 %2831
      %2833 = vrot.lane.b32.xlu0 %v2741, 48
      %v2834 = vpop.permute.xlu0 %2833
      %2835 = vrot.lane.b32.xlu0 %v2742, 48
      %v2836 = vpop.permute.xlu0 %2835
      %2837 = vrot.lane.b32.xlu0 %v2743, 48
      %v2838 = vpop.permute.xlu0 %2837
      %2839 = vrot.lane.b32.xlu0 %v2744, 48
      %v2840 = vpop.permute.xlu0 %2839
      %vm2873 = vcmask 454016
      %2874 = vst.msk [vmem:[#allocation2] sm:$0xf] %vm2873, %v2778
      %2875 = vst.msk [vmem:[#allocation2 + $0x4] sm:$0xf] %vm2873, %v2780
      %2876 = vst.msk [vmem:[#allocation2 + $0x8] sm:$0xf] %vm2873, %v2782
      %2877 = vst.msk [vmem:[#allocation2 + $0xc] sm:$0xf] %vm2873, %v2784
      %2878 = vst.msk [vmem:[#allocation2 + $0x10] sm:$0xf] %vm2873, %v2786
      %2879 = vst.msk [vmem:[#allocation2 + $0x14] sm:$0xf] %vm2873, %v2788
      %2880 = vst.msk [vmem:[#allocation2 + $0x18] sm:$0xf] %vm2873, %v2790
      %2881 = vst.msk [vmem:[#allocation2 + $0x1c] sm:$0xf] %vm2873, %v2792
      %2882 = vst.msk [vmem:[#allocation2 + $0x20] sm:$0xf] %vm2873, %v2794
      %2883 = vst.msk [vmem:[#allocation2 + $0x24] sm:$0xf] %vm2873, %v2796
      %2884 = vst.msk [vmem:[#allocation2 + $0x28] sm:$0xf] %vm2873, %v2798
      %2885 = vst.msk [vmem:[#allocation2 + $0x2c] sm:$0xf] %vm2873, %v2800
      %2886 = vst.msk [vmem:[#allocation2 + $0x30] sm:$0xf] %vm2873, %v2802
      %2887 = vst.msk [vmem:[#allocation2 + $0x34] sm:$0xf] %vm2873, %v2804
      %2888 = vst.msk [vmem:[#allocation2 + $0x38] sm:$0xf] %vm2873, %v2806
      %2889 = vst.msk [vmem:[#allocation2 + $0x3c] sm:$0xf] %vm2873, %v2808
      %2890 = vst.msk [vmem:[#allocation2 + $0x40] sm:$0xf] %vm2873, %v2810
      %2891 = vst.msk [vmem:[#allocation2 + $0x44] sm:$0xf] %vm2873, %v2812
      %2892 = vst.msk [vmem:[#allocation2 + $0x48] sm:$0xf] %vm2873, %v2814
      %2893 = vst.msk [vmem:[#allocation2 + $0x4c] sm:$0xf] %vm2873, %v2816
      %2894 = vst.msk [vmem:[#allocation2 + $0x50] sm:$0xf] %vm2873, %v2818
      %2895 = vst.msk [vmem:[#allocation2 + $0x54] sm:$0xf] %vm2873, %v2820
      %2896 = vst.msk [vmem:[#allocation2 + $0x58] sm:$0xf] %vm2873, %v2822
      %2897 = vst.msk [vmem:[#allocation2 + $0x5c] sm:$0xf] %vm2873, %v2824
      %2898 = vst.msk [vmem:[#allocation2 + $0x60] sm:$0xf] %vm2873, %v2826
      %2899 = vst.msk [vmem:[#allocation2 + $0x64] sm:$0xf] %vm2873, %v2828
      %2900 = vst.msk [vmem:[#allocation2 + $0x68] sm:$0xf] %vm2873, %v2830
      %2901 = vst.msk [vmem:[#allocation2 + $0x6c] sm:$0xf] %vm2873, %v2832
      %2902 = vst.msk [vmem:[#allocation2 + $0x70] sm:$0xf] %vm2873, %v2834
      %2903 = vst.msk [vmem:[#allocation2 + $0x74] sm:$0xf] %vm2873, %v2836
      %2904 = vst.msk [vmem:[#allocation2 + $0x78] sm:$0xf] %vm2873, %v2838
      %2905 = vst.msk [vmem:[#allocation2 + $0x7c] sm:$0xf] %vm2873, %v2840
      %v2906 = vld [vmem:[%s2] sm:$0xff]
      %v2907 = vld [vmem:[%s2 + $0x8] sm:$0xff]
      %v2908 = vld [vmem:[%s2 + $0x10] sm:$0xff]
      %v2909 = vld [vmem:[%s2 + $0x18] sm:$0xff]
      %v2910 = vld [vmem:[%s2 + $0x20] sm:$0xff]
      %v2911 = vld [vmem:[%s2 + $0x28] sm:$0xff]
      %v2912 = vld [vmem:[%s2 + $0x30] sm:$0xff]
      %v2913 = vld [vmem:[%s2 + $0x38] sm:$0xff]
      %v2914 = vld [vmem:[%s2 + $0x40] sm:$0xff]
      %v2915 = vld [vmem:[%s2 + $0x48] sm:$0xff]
      %v2916 = vld [vmem:[%s2 + $0x50] sm:$0xff]
      %v2917 = vld [vmem:[%s2 + $0x58] sm:$0xff]
      %v2918 = vld [vmem:[%s2 + $0x60] sm:$0xff]
      %v2919 = vld [vmem:[%s2 + $0x68] sm:$0xff]
      %v2920 = vld [vmem:[%s2 + $0x70] sm:$0xff]
      %v2921 = vld [vmem:[%s2 + $0x78] sm:$0xff]
      %v2922 = vld [vmem:[%s2 + $0x80] sm:$0xff]
      %v2923 = vld [vmem:[%s2 + $0x88] sm:$0xff]
      %v2924 = vld [vmem:[%s2 + $0x90] sm:$0xff]
      %v2925 = vld [vmem:[%s2 + $0x98] sm:$0xff]
      %v2926 = vld [vmem:[%s2 + $0xa0] sm:$0xff]
      %v2927 = vld [vmem:[%s2 + $0xa8] sm:$0xff]
      %v2928 = vld [vmem:[%s2 + $0xb0] sm:$0xff]
      %v2929 = vld [vmem:[%s2 + $0xb8] sm:$0xff]
      %v2930 = vld [vmem:[%s2 + $0xc0] sm:$0xff]
      %v2931 = vld [vmem:[%s2 + $0xc8] sm:$0xff]
      %v2932 = vld [vmem:[%s2 + $0xd0] sm:$0xff]
      %v2933 = vld [vmem:[%s2 + $0xd8] sm:$0xff]
      %v2934 = vld [vmem:[%s2 + $0xe0] sm:$0xff]
      %v2935 = vld [vmem:[%s2 + $0xe8] sm:$0xff]
      %v2936 = vld [vmem:[%s2 + $0xf0] sm:$0xff]
      %v2937 = vld [vmem:[%s2 + $0xf8] sm:$0xff]
      %2939 = vset.pattern.permute.xlu0 7
      %2940 = vperm.xlu0 %2939, %v2906
      %v2941 = vpop.permute.xlu0 %2940
      %2944 = vset.pattern.permute.xlu0 7
      %2945 = vperm.xlu0 %2944, %v2907
      %v2946 = vpop.permute.xlu0 %2945
      %2949 = vset.pattern.permute.xlu0 7
      %2950 = vperm.xlu0 %2949, %v2908
      %v2951 = vpop.permute.xlu0 %2950
      %2954 = vset.pattern.permute.xlu0 7
      %2955 = vperm.xlu0 %2954, %v2909
      %v2956 = vpop.permute.xlu0 %2955
      %2959 = vset.pattern.permute.xlu0 7
      %2960 = vperm.xlu0 %2959, %v2910
      %v2961 = vpop.permute.xlu0 %2960
      %2964 = vset.pattern.permute.xlu0 7
      %2965 = vperm.xlu0 %2964, %v2911
      %v2966 = vpop.permute.xlu0 %2965
      %2969 = vset.pattern.permute.xlu0 7
      %2970 = vperm.xlu0 %2969, %v2912
      %v2971 = vpop.permute.xlu0 %2970
      %2974 = vset.pattern.permute.xlu0 7
      %2975 = vperm.xlu0 %2974, %v2913
      %v2976 = vpop.permute.xlu0 %2975
      %2979 = vset.pattern.permute.xlu0 7
      %2980 = vperm.xlu0 %2979, %v2914
      %v2981 = vpop.permute.xlu0 %2980
      %2984 = vset.pattern.permute.xlu0 7
      %2985 = vperm.xlu0 %2984, %v2915
      %v2986 = vpop.permute.xlu0 %2985
      %2989 = vset.pattern.permute.xlu0 7
      %2990 = vperm.xlu0 %2989, %v2916
      %v2991 = vpop.permute.xlu0 %2990
      %2994 = vset.pattern.permute.xlu0 7
      %2995 = vperm.xlu0 %2994, %v2917
      %v2996 = vpop.permute.xlu0 %2995
      %2999 = vset.pattern.permute.xlu0 7
      %3000 = vperm.xlu0 %2999, %v2918
      %v3001 = vpop.permute.xlu0 %3000
      %3004 = vset.pattern.permute.xlu0 7
      %3005 = vperm.xlu0 %3004, %v2919
      %v3006 = vpop.permute.xlu0 %3005
      %3009 = vset.pattern.permute.xlu0 7
      %3010 = vperm.xlu0 %3009, %v2920
      %v3011 = vpop.permute.xlu0 %3010
      %3014 = vset.pattern.permute.xlu0 7
      %3015 = vperm.xlu0 %3014, %v2921
      %v3016 = vpop.permute.xlu0 %3015
      %3019 = vset.pattern.permute.xlu0 7
      %3020 = vperm.xlu0 %3019, %v2922
      %v3021 = vpop.permute.xlu0 %3020
      %3024 = vset.pattern.permute.xlu0 7
      %3025 = vperm.xlu0 %3024, %v2923
      %v3026 = vpop.permute.xlu0 %3025
      %3029 = vset.pattern.permute.xlu0 7
      %3030 = vperm.xlu0 %3029, %v2924
      %v3031 = vpop.permute.xlu0 %3030
      %3034 = vset.pattern.permute.xlu0 7
      %3035 = vperm.xlu0 %3034, %v2925
      %v3036 = vpop.permute.xlu0 %3035
      %3039 = vset.pattern.permute.xlu0 7
      %3040 = vperm.xlu0 %3039, %v2926
      %v3041 = vpop.permute.xlu0 %3040
      %3044 = vset.pattern.permute.xlu0 7
      %3045 = vperm.xlu0 %3044, %v2927
      %v3046 = vpop.permute.xlu0 %3045
      %3049 = vset.pattern.permute.xlu0 7
      %3050 = vperm.xlu0 %3049, %v2928
      %v3051 = vpop.permute.xlu0 %3050
      %3054 = vset.pattern.permute.xlu0 7
      %3055 = vperm.xlu0 %3054, %v2929
      %v3056 = vpop.permute.xlu0 %3055
      %3059 = vset.pattern.permute.xlu0 7
      %3060 = vperm.xlu0 %3059, %v2930
      %v3061 = vpop.permute.xlu0 %3060
      %3064 = vset.pattern.permute.xlu0 7
      %3065 = vperm.xlu0 %3064, %v2931
      %v3066 = vpop.permute.xlu0 %3065
      %3069 = vset.pattern.permute.xlu0 7
      %3070 = vperm.xlu0 %3069, %v2932
      %v3071 = vpop.permute.xlu0 %3070
      %3074 = vset.pattern.permute.xlu0 7
      %3075 = vperm.xlu0 %3074, %v2933
      %v3076 = vpop.permute.xlu0 %3075
      %3079 = vset.pattern.permute.xlu0 7
      %3080 = vperm.xlu0 %3079, %v2934
      %v3081 = vpop.permute.xlu0 %3080
      %3084 = vset.pattern.permute.xlu0 7
      %3085 = vperm.xlu0 %3084, %v2935
      %v3086 = vpop.permute.xlu0 %3085
      %3089 = vset.pattern.permute.xlu0 7
      %3090 = vperm.xlu0 %3089, %v2936
      %v3091 = vpop.permute.xlu0 %3090
      %3094 = vset.pattern.permute.xlu0 7
      %3095 = vperm.xlu0 %3094, %v2937
      %v3096 = vpop.permute.xlu0 %3095
      %v3098 = vmul.f32 %v176, %v2941
      %v3099 = vmul.f32 %v177, %v2946
      %v3100 = vmul.f32 %v178, %v2951
      %v3101 = vmul.f32 %v179, %v2956
      %v3102 = vmul.f32 %v180, %v2961
      %v3103 = vmul.f32 %v181, %v2966
      %v3104 = vmul.f32 %v182, %v2971
      %v3105 = vmul.f32 %v183, %v2976
      %v3106 = vmul.f32 %v184, %v2981
      %v3107 = vmul.f32 %v185, %v2986
      %v3108 = vmul.f32 %v186, %v2991
      %v3109 = vmul.f32 %v187, %v2996
      %v3110 = vmul.f32 %v188, %v3001
      %v3111 = vmul.f32 %v189, %v3006
      %v3112 = vmul.f32 %v190, %v3011
      %v3113 = vmul.f32 %v191, %v3016
      %v3114 = vmul.f32 %v192, %v3021
      %v3115 = vmul.f32 %v193, %v3026
      %v3116 = vmul.f32 %v194, %v3031
      %v3117 = vmul.f32 %v195, %v3036
      %v3118 = vmul.f32 %v196, %v3041
      %v3119 = vmul.f32 %v197, %v3046
      %v3120 = vmul.f32 %v198, %v3051
      %v3121 = vmul.f32 %v199, %v3056
      %v3122 = vmul.f32 %v200, %v3061
      %v3123 = vmul.f32 %v201, %v3066
      %v3124 = vmul.f32 %v202, %v3071
      %v3125 = vmul.f32 %v203, %v3076
      %v3126 = vmul.f32 %v204, %v3081
      %v3127 = vmul.f32 %v205, %v3086
      %v3128 = vmul.f32 %v206, %v3091
      %v3129 = vmul.f32 %v175, %v3096
      %v3130 = vpack.c.bf16 %v3098, %v3098
      %v3131 = vpack.c.bf16 %v3099, %v3099
      %v3132 = vpack.c.bf16 %v3100, %v3100
      %v3133 = vpack.c.bf16 %v3101, %v3101
      %v3134 = vpack.c.bf16 %v3102, %v3102
      %v3135 = vpack.c.bf16 %v3103, %v3103
      %v3136 = vpack.c.bf16 %v3104, %v3104
      %v3137 = vpack.c.bf16 %v3105, %v3105
      %v3138 = vpack.c.bf16 %v3106, %v3106
      %v3139 = vpack.c.bf16 %v3107, %v3107
      %v3140 = vpack.c.bf16 %v3108, %v3108
      %v3141 = vpack.c.bf16 %v3109, %v3109
      %v3142 = vpack.c.bf16 %v3110, %v3110
      %v3143 = vpack.c.bf16 %v3111, %v3111
      %v3144 = vpack.c.bf16 %v3112, %v3112
      %v3145 = vpack.c.bf16 %v3113, %v3113
      %v3146 = vpack.c.bf16 %v3114, %v3114
      %v3147 = vpack.c.bf16 %v3115, %v3115
      %v3148 = vpack.c.bf16 %v3116, %v3116
      %v3149 = vpack.c.bf16 %v3117, %v3117
      %v3150 = vpack.c.bf16 %v3118, %v3118
      %v3151 = vpack.c.bf16 %v3119, %v3119
      %v3152 = vpack.c.bf16 %v3120, %v3120
      %v3153 = vpack.c.bf16 %v3121, %v3121
      %v3154 = vpack.c.bf16 %v3122, %v3122
      %v3155 = vpack.c.bf16 %v3123, %v3123
      %v3156 = vpack.c.bf16 %v3124, %v3124
      %v3157 = vpack.c.bf16 %v3125, %v3125
      %v3158 = vpack.c.bf16 %v3126, %v3126
      %v3159 = vpack.c.bf16 %v3127, %v3127
      %v3160 = vpack.c.bf16 %v3128, %v3128
      %v3161 = vpack.c.bf16 %v3129, %v3129
      %3194 = vrot.lane.b32.xlu0 %v3130, 56
      %v3195 = vpop.permute.xlu0 %3194
      %3196 = vrot.lane.b32.xlu0 %v3131, 56
      %v3197 = vpop.permute.xlu0 %3196
      %3198 = vrot.lane.b32.xlu0 %v3132, 56
      %v3199 = vpop.permute.xlu0 %3198
      %3200 = vrot.lane.b32.xlu0 %v3133, 56
      %v3201 = vpop.permute.xlu0 %3200
      %3202 = vrot.lane.b32.xlu0 %v3134, 56
      %v3203 = vpop.permute.xlu0 %3202
      %3204 = vrot.lane.b32.xlu0 %v3135, 56
      %v3205 = vpop.permute.xlu0 %3204
      %3206 = vrot.lane.b32.xlu0 %v3136, 56
      %v3207 = vpop.permute.xlu0 %3206
      %3208 = vrot.lane.b32.xlu0 %v3137, 56
      %v3209 = vpop.permute.xlu0 %3208
      %3210 = vrot.lane.b32.xlu0 %v3138, 56
      %v3211 = vpop.permute.xlu0 %3210
      %3212 = vrot.lane.b32.xlu0 %v3139, 56
      %v3213 = vpop.permute.xlu0 %3212
      %3214 = vrot.lane.b32.xlu0 %v3140, 56
      %v3215 = vpop.permute.xlu0 %3214
      %3216 = vrot.lane.b32.xlu0 %v3141, 56
      %v3217 = vpop.permute.xlu0 %3216
      %3218 = vrot.lane.b32.xlu0 %v3142, 56
      %v3219 = vpop.permute.xlu0 %3218
      %3220 = vrot.lane.b32.xlu0 %v3143, 56
      %v3221 = vpop.permute.xlu0 %3220
      %3222 = vrot.lane.b32.xlu0 %v3144, 56
      %v3223 = vpop.permute.xlu0 %3222
      %3224 = vrot.lane.b32.xlu0 %v3145, 56
      %v3225 = vpop.permute.xlu0 %3224
      %3226 = vrot.lane.b32.xlu0 %v3146, 56
      %v3227 = vpop.permute.xlu0 %3226
      %3228 = vrot.lane.b32.xlu0 %v3147, 56
      %v3229 = vpop.permute.xlu0 %3228
      %3230 = vrot.lane.b32.xlu0 %v3148, 56
      %v3231 = vpop.permute.xlu0 %3230
      %3232 = vrot.lane.b32.xlu0 %v3149, 56
      %v3233 = vpop.permute.xlu0 %3232
      %3234 = vrot.lane.b32.xlu0 %v3150, 56
      %v3235 = vpop.permute.xlu0 %3234
      %3236 = vrot.lane.b32.xlu0 %v3151, 56
      %v3237 = vpop.permute.xlu0 %3236
      %3238 = vrot.lane.b32.xlu0 %v3152, 56
      %v3239 = vpop.permute.xlu0 %3238
      %3240 = vrot.lane.b32.xlu0 %v3153, 56
      %v3241 = vpop.permute.xlu0 %3240
      %3242 = vrot.lane.b32.xlu0 %v3154, 56
      %v3243 = vpop.permute.xlu0 %3242
      %3244 = vrot.lane.b32.xlu0 %v3155, 56
      %v3245 = vpop.permute.xlu0 %3244
      %3246 = vrot.lane.b32.xlu0 %v3156, 56
      %v3247 = vpop.permute.xlu0 %3246
      %3248 = vrot.lane.b32.xlu0 %v3157, 56
      %v3249 = vpop.permute.xlu0 %3248
      %3250 = vrot.lane.b32.xlu0 %v3158, 56
      %v3251 = vpop.permute.xlu0 %3250
      %3252 = vrot.lane.b32.xlu0 %v3159, 56
      %v3253 = vpop.permute.xlu0 %3252
      %3254 = vrot.lane.b32.xlu0 %v3160, 56
      %v3255 = vpop.permute.xlu0 %3254
      %3256 = vrot.lane.b32.xlu0 %v3161, 56
      %v3257 = vpop.permute.xlu0 %3256
      %vm3290 = vcmask 519616
      %3291 = vst.msk [vmem:[#allocation2] sm:$0xf] %vm3290, %v3195
      %3292 = vst.msk [vmem:[#allocation2 + $0x4] sm:$0xf] %vm3290, %v3197
      %3293 = vst.msk [vmem:[#allocation2 + $0x8] sm:$0xf] %vm3290, %v3199
      %3294 = vst.msk [vmem:[#allocation2 + $0xc] sm:$0xf] %vm3290, %v3201
      %3295 = vst.msk [vmem:[#allocation2 + $0x10] sm:$0xf] %vm3290, %v3203
      %3296 = vst.msk [vmem:[#allocation2 + $0x14] sm:$0xf] %vm3290, %v3205
      %3297 = vst.msk [vmem:[#allocation2 + $0x18] sm:$0xf] %vm3290, %v3207
      %3298 = vst.msk [vmem:[#allocation2 + $0x1c] sm:$0xf] %vm3290, %v3209
      %3299 = vst.msk [vmem:[#allocation2 + $0x20] sm:$0xf] %vm3290, %v3211
      %3300 = vst.msk [vmem:[#allocation2 + $0x24] sm:$0xf] %vm3290, %v3213
      %3301 = vst.msk [vmem:[#allocation2 + $0x28] sm:$0xf] %vm3290, %v3215
      %3302 = vst.msk [vmem:[#allocation2 + $0x2c] sm:$0xf] %vm3290, %v3217
      %3303 = vst.msk [vmem:[#allocation2 + $0x30] sm:$0xf] %vm3290, %v3219
      %3304 = vst.msk [vmem:[#allocation2 + $0x34] sm:$0xf] %vm3290, %v3221
      %3305 = vst.msk [vmem:[#allocation2 + $0x38] sm:$0xf] %vm3290, %v3223
      %3306 = vst.msk [vmem:[#allocation2 + $0x3c] sm:$0xf] %vm3290, %v3225
      %3307 = vst.msk [vmem:[#allocation2 + $0x40] sm:$0xf] %vm3290, %v3227
      %3308 = vst.msk [vmem:[#allocation2 + $0x44] sm:$0xf] %vm3290, %v3229
      %3309 = vst.msk [vmem:[#allocation2 + $0x48] sm:$0xf] %vm3290, %v3231
      %3310 = vst.msk [vmem:[#allocation2 + $0x4c] sm:$0xf] %vm3290, %v3233
      %3311 = vst.msk [vmem:[#allocation2 + $0x50] sm:$0xf] %vm3290, %v3235
      %3312 = vst.msk [vmem:[#allocation2 + $0x54] sm:$0xf] %vm3290, %v3237
      %3313 = vst.msk [vmem:[#allocation2 + $0x58] sm:$0xf] %vm3290, %v3239
      %3314 = vst.msk [vmem:[#allocation2 + $0x5c] sm:$0xf] %vm3290, %v3241
      %3315 = vst.msk [vmem:[#allocation2 + $0x60] sm:$0xf] %vm3290, %v3243
      %3316 = vst.msk [vmem:[#allocation2 + $0x64] sm:$0xf] %vm3290, %v3245
      %3317 = vst.msk [vmem:[#allocation2 + $0x68] sm:$0xf] %vm3290, %v3247
      %3318 = vst.msk [vmem:[#allocation2 + $0x6c] sm:$0xf] %vm3290, %v3249
      %3319 = vst.msk [vmem:[#allocation2 + $0x70] sm:$0xf] %vm3290, %v3251
      %3320 = vst.msk [vmem:[#allocation2 + $0x74] sm:$0xf] %vm3290, %v3253
      %3321 = vst.msk [vmem:[#allocation2 + $0x78] sm:$0xf] %vm3290, %v3255
      %3322 = vst.msk [vmem:[#allocation2 + $0x7c] sm:$0xf] %vm3290, %v3257
      %v3323 = vld [vmem:[%s2] sm:$0xff]
      %v3324 = vld [vmem:[%s2 + $0x8] sm:$0xff]
      %v3325 = vld [vmem:[%s2 + $0x10] sm:$0xff]
      %v3326 = vld [vmem:[%s2 + $0x18] sm:$0xff]
      %v3327 = vld [vmem:[%s2 + $0x20] sm:$0xff]
      %v3328 = vld [vmem:[%s2 + $0x28] sm:$0xff]
      %v3329 = vld [vmem:[%s2 + $0x30] sm:$0xff]
      %v3330 = vld [vmem:[%s2 + $0x38] sm:$0xff]
      %v3331 = vld [vmem:[%s2 + $0x40] sm:$0xff]
      %v3332 = vld [vmem:[%s2 + $0x48] sm:$0xff]
      %v3333 = vld [vmem:[%s2 + $0x50] sm:$0xff]
      %v3334 = vld [vmem:[%s2 + $0x58] sm:$0xff]
      %v3335 = vld [vmem:[%s2 + $0x60] sm:$0xff]
      %v3336 = vld [vmem:[%s2 + $0x68] sm:$0xff]
      %v3337 = vld [vmem:[%s2 + $0x70] sm:$0xff]
      %v3338 = vld [vmem:[%s2 + $0x78] sm:$0xff]
      %v3339 = vld [vmem:[%s2 + $0x80] sm:$0xff]
      %v3340 = vld [vmem:[%s2 + $0x88] sm:$0xff]
      %v3341 = vld [vmem:[%s2 + $0x90] sm:$0xff]
      %v3342 = vld [vmem:[%s2 + $0x98] sm:$0xff]
      %v3343 = vld [vmem:[%s2 + $0xa0] sm:$0xff]
      %v3344 = vld [vmem:[%s2 + $0xa8] sm:$0xff]
      %v3345 = vld [vmem:[%s2 + $0xb0] sm:$0xff]
      %v3346 = vld [vmem:[%s2 + $0xb8] sm:$0xff]
      %v3347 = vld [vmem:[%s2 + $0xc0] sm:$0xff]
      %v3348 = vld [vmem:[%s2 + $0xc8] sm:$0xff]
      %v3349 = vld [vmem:[%s2 + $0xd0] sm:$0xff]
      %v3350 = vld [vmem:[%s2 + $0xd8] sm:$0xff]
      %v3351 = vld [vmem:[%s2 + $0xe0] sm:$0xff]
      %v3352 = vld [vmem:[%s2 + $0xe8] sm:$0xff]
      %v3353 = vld [vmem:[%s2 + $0xf0] sm:$0xff]
      %v3354 = vld [vmem:[%s2 + $0xf8] sm:$0xff]
      %3356 = vset.pattern.permute.xlu0 8
      %3357 = vperm.xlu0 %3356, %v3323
      %v3358 = vpop.permute.xlu0 %3357
      %3361 = vset.pattern.permute.xlu0 8
      %3362 = vperm.xlu0 %3361, %v3324
      %v3363 = vpop.permute.xlu0 %3362
      %3366 = vset.pattern.permute.xlu0 8
      %3367 = vperm.xlu0 %3366, %v3325
      %v3368 = vpop.permute.xlu0 %3367
      %3371 = vset.pattern.permute.xlu0 8
      %3372 = vperm.xlu0 %3371, %v3326
      %v3373 = vpop.permute.xlu0 %3372
      %3376 = vset.pattern.permute.xlu0 8
      %3377 = vperm.xlu0 %3376, %v3327
      %v3378 = vpop.permute.xlu0 %3377
      %3381 = vset.pattern.permute.xlu0 8
      %3382 = vperm.xlu0 %3381, %v3328
      %v3383 = vpop.permute.xlu0 %3382
      %3386 = vset.pattern.permute.xlu0 8
      %3387 = vperm.xlu0 %3386, %v3329
      %v3388 = vpop.permute.xlu0 %3387
      %3391 = vset.pattern.permute.xlu0 8
      %3392 = vperm.xlu0 %3391, %v3330
      %v3393 = vpop.permute.xlu0 %3392
      %3396 = vset.pattern.permute.xlu0 8
      %3397 = vperm.xlu0 %3396, %v3331
      %v3398 = vpop.permute.xlu0 %3397
      %3401 = vset.pattern.permute.xlu0 8
      %3402 = vperm.xlu0 %3401, %v3332
      %v3403 = vpop.permute.xlu0 %3402
      %3406 = vset.pattern.permute.xlu0 8
      %3407 = vperm.xlu0 %3406, %v3333
      %v3408 = vpop.permute.xlu0 %3407
      %3411 = vset.pattern.permute.xlu0 8
      %3412 = vperm.xlu0 %3411, %v3334
      %v3413 = vpop.permute.xlu0 %3412
      %3416 = vset.pattern.permute.xlu0 8
      %3417 = vperm.xlu0 %3416, %v3335
      %v3418 = vpop.permute.xlu0 %3417
      %3421 = vset.pattern.permute.xlu0 8
      %3422 = vperm.xlu0 %3421, %v3336
      %v3423 = vpop.permute.xlu0 %3422
      %3426 = vset.pattern.permute.xlu0 8
      %3427 = vperm.xlu0 %3426, %v3337
      %v3428 = vpop.permute.xlu0 %3427
      %3431 = vset.pattern.permute.xlu0 8
      %3432 = vperm.xlu0 %3431, %v3338
      %v3433 = vpop.permute.xlu0 %3432
      %3436 = vset.pattern.permute.xlu0 8
      %3437 = vperm.xlu0 %3436, %v3339
      %v3438 = vpop.permute.xlu0 %3437
      %3441 = vset.pattern.permute.xlu0 8
      %3442 = vperm.xlu0 %3441, %v3340
      %v3443 = vpop.permute.xlu0 %3442
      %3446 = vset.pattern.permute.xlu0 8
      %3447 = vperm.xlu0 %3446, %v3341
      %v3448 = vpop.permute.xlu0 %3447
      %3451 = vset.pattern.permute.xlu0 8
      %3452 = vperm.xlu0 %3451, %v3342
      %v3453 = vpop.permute.xlu0 %3452
      %3456 = vset.pattern.permute.xlu0 8
      %3457 = vperm.xlu0 %3456, %v3343
      %v3458 = vpop.permute.xlu0 %3457
      %3461 = vset.pattern.permute.xlu0 8
      %3462 = vperm.xlu0 %3461, %v3344
      %v3463 = vpop.permute.xlu0 %3462
      %3466 = vset.pattern.permute.xlu0 8
      %3467 = vperm.xlu0 %3466, %v3345
      %v3468 = vpop.permute.xlu0 %3467
      %3471 = vset.pattern.permute.xlu0 8
      %3472 = vperm.xlu0 %3471, %v3346
      %v3473 = vpop.permute.xlu0 %3472
      %3476 = vset.pattern.permute.xlu0 8
      %3477 = vperm.xlu0 %3476, %v3347
      %v3478 = vpop.permute.xlu0 %3477
      %3481 = vset.pattern.permute.xlu0 8
      %3482 = vperm.xlu0 %3481, %v3348
      %v3483 = vpop.permute.xlu0 %3482
      %3486 = vset.pattern.permute.xlu0 8
      %3487 = vperm.xlu0 %3486, %v3349
      %v3488 = vpop.permute.xlu0 %3487
      %3491 = vset.pattern.permute.xlu0 8
      %3492 = vperm.xlu0 %3491, %v3350
      %v3493 = vpop.permute.xlu0 %3492
      %3496 = vset.pattern.permute.xlu0 8
      %3497 = vperm.xlu0 %3496, %v3351
      %v3498 = vpop.permute.xlu0 %3497
      %3501 = vset.pattern.permute.xlu0 8
      %3502 = vperm.xlu0 %3501, %v3352
      %v3503 = vpop.permute.xlu0 %3502
      %3506 = vset.pattern.permute.xlu0 8
      %3507 = vperm.xlu0 %3506, %v3353
      %v3508 = vpop.permute.xlu0 %3507
      %3511 = vset.pattern.permute.xlu0 8
      %3512 = vperm.xlu0 %3511, %v3354
      %v3513 = vpop.permute.xlu0 %3512
      %v3515 = vmul.f32 %v1042, %v3358
      %v3516 = vmul.f32 %v1041, %v3363
      %v3517 = vmul.f32 %v1040, %v3368
      %v3518 = vmul.f32 %v1039, %v3373
      %v3519 = vmul.f32 %v1038, %v3378
      %v3520 = vmul.f32 %v1037, %v3383
      %v3521 = vmul.f32 %v1036, %v3388
      %v3522 = vmul.f32 %v1035, %v3393
      %v3523 = vmul.f32 %v1034, %v3398
      %v3524 = vmul.f32 %v1033, %v3403
      %v3525 = vmul.f32 %v1032, %v3408
      %v3526 = vmul.f32 %v1031, %v3413
      %v3527 = vmul.f32 %v1030, %v3418
      %v3528 = vmul.f32 %v1029, %v3423
      %v3529 = vmul.f32 %v1028, %v3428
      %v3530 = vmul.f32 %v1027, %v3433
      %v3531 = vmul.f32 %v1026, %v3438
      %v3532 = vmul.f32 %v1025, %v3443
      %v3533 = vmul.f32 %v1024, %v3448
      %v3534 = vmul.f32 %v1023, %v3453
      %v3535 = vmul.f32 %v1022, %v3458
      %v3536 = vmul.f32 %v1021, %v3463
      %v3537 = vmul.f32 %v1020, %v3468
      %v3538 = vmul.f32 %v1019, %v3473
      %v3539 = vmul.f32 %v1018, %v3478
      %v3540 = vmul.f32 %v1017, %v3483
      %v3541 = vmul.f32 %v1016, %v3488
      %v3542 = vmul.f32 %v1015, %v3493
      %v3543 = vmul.f32 %v1014, %v3498
      %v3544 = vmul.f32 %v1013, %v3503
      %v3545 = vmul.f32 %v1044, %v3508
      %v3546 = vmul.f32 %v1043, %v3513
      %v3547 = vpack.c.bf16 %v3515, %v3515
      %v3548 = vpack.c.bf16 %v3516, %v3516
      %v3549 = vpack.c.bf16 %v3517, %v3517
      %v3550 = vpack.c.bf16 %v3518, %v3518
      %v3551 = vpack.c.bf16 %v3519, %v3519
      %v3552 = vpack.c.bf16 %v3520, %v3520
      %v3553 = vpack.c.bf16 %v3521, %v3521
      %v3554 = vpack.c.bf16 %v3522, %v3522
      %v3555 = vpack.c.bf16 %v3523, %v3523
      %v3556 = vpack.c.bf16 %v3524, %v3524
      %v3557 = vpack.c.bf16 %v3525, %v3525
      %v3558 = vpack.c.bf16 %v3526, %v3526
      %v3559 = vpack.c.bf16 %v3527, %v3527
      %v3560 = vpack.c.bf16 %v3528, %v3528
      %v3561 = vpack.c.bf16 %v3529, %v3529
      %v3562 = vpack.c.bf16 %v3530, %v3530
      %v3563 = vpack.c.bf16 %v3531, %v3531
      %v3564 = vpack.c.bf16 %v3532, %v3532
      %v3565 = vpack.c.bf16 %v3533, %v3533
      %v3566 = vpack.c.bf16 %v3534, %v3534
      %v3567 = vpack.c.bf16 %v3535, %v3535
      %v3568 = vpack.c.bf16 %v3536, %v3536
      %v3569 = vpack.c.bf16 %v3537, %v3537
      %v3570 = vpack.c.bf16 %v3538, %v3538
      %v3571 = vpack.c.bf16 %v3539, %v3539
      %v3572 = vpack.c.bf16 %v3540, %v3540
      %v3573 = vpack.c.bf16 %v3541, %v3541
      %v3574 = vpack.c.bf16 %v3542, %v3542
      %v3575 = vpack.c.bf16 %v3543, %v3543
      %v3576 = vpack.c.bf16 %v3544, %v3544
      %v3577 = vpack.c.bf16 %v3545, %v3545
      %v3578 = vpack.c.bf16 %v3546, %v3546
      %3611 = vrot.lane.b32.xlu0 %v3547, 64
      %v3612 = vpop.permute.xlu0 %3611
      %3613 = vrot.lane.b32.xlu0 %v3548, 64
      %v3614 = vpop.permute.xlu0 %3613
      %3615 = vrot.lane.b32.xlu0 %v3549, 64
      %v3616 = vpop.permute.xlu0 %3615
      %3617 = vrot.lane.b32.xlu0 %v3550, 64
      %v3618 = vpop.permute.xlu0 %3617
      %3619 = vrot.lane.b32.xlu0 %v3551, 64
      %v3620 = vpop.permute.xlu0 %3619
      %3621 = vrot.lane.b32.xlu0 %v3552, 64
      %v3622 = vpop.permute.xlu0 %3621
      %3623 = vrot.lane.b32.xlu0 %v3553, 64
      %v3624 = vpop.permute.xlu0 %3623
      %3625 = vrot.lane.b32.xlu0 %v3554, 64
      %v3626 = vpop.permute.xlu0 %3625
      %3627 = vrot.lane.b32.xlu0 %v3555, 64
      %v3628 = vpop.permute.xlu0 %3627
      %3629 = vrot.lane.b32.xlu0 %v3556, 64
      %v3630 = vpop.permute.xlu0 %3629
      %3631 = vrot.lane.b32.xlu0 %v3557, 64
      %v3632 = vpop.permute.xlu0 %3631
      %3633 = vrot.lane.b32.xlu0 %v3558, 64
      %v3634 = vpop.permute.xlu0 %3633
      %3635 = vrot.lane.b32.xlu0 %v3559, 64
      %v3636 = vpop.permute.xlu0 %3635
      %3637 = vrot.lane.b32.xlu0 %v3560, 64
      %v3638 = vpop.permute.xlu0 %3637
      %3639 = vrot.lane.b32.xlu0 %v3561, 64
      %v3640 = vpop.permute.xlu0 %3639
      %3641 = vrot.lane.b32.xlu0 %v3562, 64
      %v3642 = vpop.permute.xlu0 %3641
      %3643 = vrot.lane.b32.xlu0 %v3563, 64
      %v3644 = vpop.permute.xlu0 %3643
      %3645 = vrot.lane.b32.xlu0 %v3564, 64
      %v3646 = vpop.permute.xlu0 %3645
      %3647 = vrot.lane.b32.xlu0 %v3565, 64
      %v3648 = vpop.permute.xlu0 %3647
      %3649 = vrot.lane.b32.xlu0 %v3566, 64
      %v3650 = vpop.permute.xlu0 %3649
      %3651 = vrot.lane.b32.xlu0 %v3567, 64
      %v3652 = vpop.permute.xlu0 %3651
      %3653 = vrot.lane.b32.xlu0 %v3568, 64
      %v3654 = vpop.permute.xlu0 %3653
      %3655 = vrot.lane.b32.xlu0 %v3569, 64
      %v3656 = vpop.permute.xlu0 %3655
      %3657 = vrot.lane.b32.xlu0 %v3570, 64
      %v3658 = vpop.permute.xlu0 %3657
      %3659 = vrot.lane.b32.xlu0 %v3571, 64
      %v3660 = vpop.permute.xlu0 %3659
      %3661 = vrot.lane.b32.xlu0 %v3572, 64
      %v3662 = vpop.permute.xlu0 %3661
      %3663 = vrot.lane.b32.xlu0 %v3573, 64
      %v3664 = vpop.permute.xlu0 %3663
      %3665 = vrot.lane.b32.xlu0 %v3574, 64
      %v3666 = vpop.permute.xlu0 %3665
      %3667 = vrot.lane.b32.xlu0 %v3575, 64
      %v3668 = vpop.permute.xlu0 %3667
      %3669 = vrot.lane.b32.xlu0 %v3576, 64
      %v3670 = vpop.permute.xlu0 %3669
      %3671 = vrot.lane.b32.xlu0 %v3577, 64
      %v3672 = vpop.permute.xlu0 %3671
      %3673 = vrot.lane.b32.xlu0 %v3578, 64
      %v3674 = vpop.permute.xlu0 %3673
      %vm3707 = vcmask 585216
      %3708 = vst.msk [vmem:[#allocation2] sm:$0xf] %vm3707, %v3612
      %3709 = vst.msk [vmem:[#allocation2 + $0x4] sm:$0xf] %vm3707, %v3614
      %3710 = vst.msk [vmem:[#allocation2 + $0x8] sm:$0xf] %vm3707, %v3616
      %3711 = vst.msk [vmem:[#allocation2 + $0xc] sm:$0xf] %vm3707, %v3618
      %3712 = vst.msk [vmem:[#allocation2 + $0x10] sm:$0xf] %vm3707, %v3620
      %3713 = vst.msk [vmem:[#allocation2 + $0x14] sm:$0xf] %vm3707, %v3622
      %3714 = vst.msk [vmem:[#allocation2 + $0x18] sm:$0xf] %vm3707, %v3624
      %3715 = vst.msk [vmem:[#allocation2 + $0x1c] sm:$0xf] %vm3707, %v3626
      %3716 = vst.msk [vmem:[#allocation2 + $0x20] sm:$0xf] %vm3707, %v3628
      %3717 = vst.msk [vmem:[#allocation2 + $0x24] sm:$0xf] %vm3707, %v3630
      %3718 = vst.msk [vmem:[#allocation2 + $0x28] sm:$0xf] %vm3707, %v3632
      %3719 = vst.msk [vmem:[#allocation2 + $0x2c] sm:$0xf] %vm3707, %v3634
      %3720 = vst.msk [vmem:[#allocation2 + $0x30] sm:$0xf] %vm3707, %v3636
      %3721 = vst.msk [vmem:[#allocation2 + $0x34] sm:$0xf] %vm3707, %v3638
      %3722 = vst.msk [vmem:[#allocation2 + $0x38] sm:$0xf] %vm3707, %v3640
      %3723 = vst.msk [vmem:[#allocation2 + $0x3c] sm:$0xf] %vm3707, %v3642
      %3724 = vst.msk [vmem:[#allocation2 + $0x40] sm:$0xf] %vm3707, %v3644
      %3725 = vst.msk [vmem:[#allocation2 + $0x44] sm:$0xf] %vm3707, %v3646
      %3726 = vst.msk [vmem:[#allocation2 + $0x48] sm:$0xf] %vm3707, %v3648
      %3727 = vst.msk [vmem:[#allocation2 + $0x4c] sm:$0xf] %vm3707, %v3650
      %3728 = vst.msk [vmem:[#allocation2 + $0x50] sm:$0xf] %vm3707, %v3652
      %3729 = vst.msk [vmem:[#allocation2 + $0x54] sm:$0xf] %vm3707, %v3654
      %3730 = vst.msk [vmem:[#allocation2 + $0x58] sm:$0xf] %vm3707, %v3656
      %3731 = vst.msk [vmem:[#allocation2 + $0x5c] sm:$0xf] %vm3707, %v3658
      %3732 = vst.msk [vmem:[#allocation2 + $0x60] sm:$0xf] %vm3707, %v3660
      %3733 = vst.msk [vmem:[#allocation2 + $0x64] sm:$0xf] %vm3707, %v3662
      %3734 = vst.msk [vmem:[#allocation2 + $0x68] sm:$0xf] %vm3707, %v3664
      %3735 = vst.msk [vmem:[#allocation2 + $0x6c] sm:$0xf] %vm3707, %v3666
      %3736 = vst.msk [vmem:[#allocation2 + $0x70] sm:$0xf] %vm3707, %v3668
      %3737 = vst.msk [vmem:[#allocation2 + $0x74] sm:$0xf] %vm3707, %v3670
      %3738 = vst.msk [vmem:[#allocation2 + $0x78] sm:$0xf] %vm3707, %v3672
      %3739 = vst.msk [vmem:[#allocation2 + $0x7c] sm:$0xf] %vm3707, %v3674
      %v3740 = vld [vmem:[%s2] sm:$0xff]
      %v3741 = vld [vmem:[%s2 + $0x8] sm:$0xff]
      %v3742 = vld [vmem:[%s2 + $0x10] sm:$0xff]
      %v3743 = vld [vmem:[%s2 + $0x18] sm:$0xff]
      %v3744 = vld [vmem:[%s2 + $0x20] sm:$0xff]
      %v3745 = vld [vmem:[%s2 + $0x28] sm:$0xff]
      %v3746 = vld [vmem:[%s2 + $0x30] sm:$0xff]
      %v3747 = vld [vmem:[%s2 + $0x38] sm:$0xff]
      %v3748 = vld [vmem:[%s2 + $0x40] sm:$0xff]
      %v3749 = vld [vmem:[%s2 + $0x48] sm:$0xff]
      %v3750 = vld [vmem:[%s2 + $0x50] sm:$0xff]
      %v3751 = vld [vmem:[%s2 + $0x58] sm:$0xff]
      %v3752 = vld [vmem:[%s2 + $0x60] sm:$0xff]
      %v3753 = vld [vmem:[%s2 + $0x68] sm:$0xff]
      %v3754 = vld [vmem:[%s2 + $0x70] sm:$0xff]
      %v3755 = vld [vmem:[%s2 + $0x78] sm:$0xff]
      %v3756 = vld [vmem:[%s2 + $0x80] sm:$0xff]
      %v3757 = vld [vmem:[%s2 + $0x88] sm:$0xff]
      %v3758 = vld [vmem:[%s2 + $0x90] sm:$0xff]
      %v3759 = vld [vmem:[%s2 + $0x98] sm:$0xff]
      %v3760 = vld [vmem:[%s2 + $0xa0] sm:$0xff]
      %v3761 = vld [vmem:[%s2 + $0xa8] sm:$0xff]
      %v3762 = vld [vmem:[%s2 + $0xb0] sm:$0xff]
      %v3763 = vld [vmem:[%s2 + $0xb8] sm:$0xff]
      %v3764 = vld [vmem:[%s2 + $0xc0] sm:$0xff]
      %v3765 = vld [vmem:[%s2 + $0xc8] sm:$0xff]
      %v3766 = vld [vmem:[%s2 + $0xd0] sm:$0xff]
      %v3767 = vld [vmem:[%s2 + $0xd8] sm:$0xff]
      %v3768 = vld [vmem:[%s2 + $0xe0] sm:$0xff]
      %v3769 = vld [vmem:[%s2 + $0xe8] sm:$0xff]
      %v3770 = vld [vmem:[%s2 + $0xf0] sm:$0xff]
      %v3771 = vld [vmem:[%s2 + $0xf8] sm:$0xff]
      %v3772 = vpack.c.bf16 %v3740, %v3740
      %v3773 = vpack.c.bf16 %v3741, %v3741
      %v3774 = vpack.c.bf16 %v3742, %v3742
      %v3775 = vpack.c.bf16 %v3743, %v3743
      %v3776 = vpack.c.bf16 %v3744, %v3744
      %v3777 = vpack.c.bf16 %v3745, %v3745
      %v3778 = vpack.c.bf16 %v3746, %v3746
      %v3779 = vpack.c.bf16 %v3747, %v3747
      %v3780 = vpack.c.bf16 %v3748, %v3748
      %v3781 = vpack.c.bf16 %v3749, %v3749
      %v3782 = vpack.c.bf16 %v3750, %v3750
      %v3783 = vpack.c.bf16 %v3751, %v3751
      %v3784 = vpack.c.bf16 %v3752, %v3752
      %v3785 = vpack.c.bf16 %v3753, %v3753
      %v3786 = vpack.c.bf16 %v3754, %v3754
      %v3787 = vpack.c.bf16 %v3755, %v3755
      %v3788 = vpack.c.bf16 %v3756, %v3756
      %v3789 = vpack.c.bf16 %v3757, %v3757
      %v3790 = vpack.c.bf16 %v3758, %v3758
      %v3791 = vpack.c.bf16 %v3759, %v3759
      %v3792 = vpack.c.bf16 %v3760, %v3760
      %v3793 = vpack.c.bf16 %v3761, %v3761
      %v3794 = vpack.c.bf16 %v3762, %v3762
      %v3795 = vpack.c.bf16 %v3763, %v3763
      %v3796 = vpack.c.bf16 %v3764, %v3764
      %v3797 = vpack.c.bf16 %v3765, %v3765
      %v3798 = vpack.c.bf16 %v3766, %v3766
      %v3799 = vpack.c.bf16 %v3767, %v3767
      %v3800 = vpack.c.bf16 %v3768, %v3768
      %v3801 = vpack.c.bf16 %v3769, %v3769
      %v3802 = vpack.c.bf16 %v3770, %v3770
      %v3803 = vpack.c.bf16 %v3771, %v3771
      %3836 = vrot.lane.b32.xlu0 %v3772, 72
      %v3837 = vpop.permute.xlu0 %3836
      %3838 = vrot.lane.b32.xlu0 %v3773, 72
      %v3839 = vpop.permute.xlu0 %3838
      %3840 = vrot.lane.b32.xlu0 %v3774, 72
      %v3841 = vpop.permute.xlu0 %3840
      %3842 = vrot.lane.b32.xlu0 %v3775, 72
      %v3843 = vpop.permute.xlu0 %3842
      %3844 = vrot.lane.b32.xlu0 %v3776, 72
      %v3845 = vpop.permute.xlu0 %3844
      %3846 = vrot.lane.b32.xlu0 %v3777, 72
      %v3847 = vpop.permute.xlu0 %3846
      %3848 = vrot.lane.b32.xlu0 %v3778, 72
      %v3849 = vpop.permute.xlu0 %3848
      %3850 = vrot.lane.b32.xlu0 %v3779, 72
      %v3851 = vpop.permute.xlu0 %3850
      %3852 = vrot.lane.b32.xlu0 %v3780, 72
      %v3853 = vpop.permute.xlu0 %3852
      %3854 = vrot.lane.b32.xlu0 %v3781, 72
      %v3855 = vpop.permute.xlu0 %3854
      %3856 = vrot.lane.b32.xlu0 %v3782, 72
      %v3857 = vpop.permute.xlu0 %3856
      %3858 = vrot.lane.b32.xlu0 %v3783, 72
      %v3859 = vpop.permute.xlu0 %3858
      %3860 = vrot.lane.b32.xlu0 %v3784, 72
      %v3861 = vpop.permute.xlu0 %3860
      %3862 = vrot.lane.b32.xlu0 %v3785, 72
      %v3863 = vpop.permute.xlu0 %3862
      %3864 = vrot.lane.b32.xlu0 %v3786, 72
      %v3865 = vpop.permute.xlu0 %3864
      %3866 = vrot.lane.b32.xlu0 %v3787, 72
      %v3867 = vpop.permute.xlu0 %3866
      %3868 = vrot.lane.b32.xlu0 %v3788, 72
      %v3869 = vpop.permute.xlu0 %3868
      %3870 = vrot.lane.b32.xlu0 %v3789, 72
      %v3871 = vpop.permute.xlu0 %3870
      %3872 = vrot.lane.b32.xlu0 %v3790, 72
      %v3873 = vpop.permute.xlu0 %3872
      %3874 = vrot.lane.b32.xlu0 %v3791, 72
      %v3875 = vpop.permute.xlu0 %3874
      %3876 = vrot.lane.b32.xlu0 %v3792, 72
      %v3877 = vpop.permute.xlu0 %3876
      %3878 = vrot.lane.b32.xlu0 %v3793, 72
      %v3879 = vpop.permute.xlu0 %3878
      %3880 = vrot.lane.b32.xlu0 %v3794, 72
      %v3881 = vpop.permute.xlu0 %3880
      %3882 = vrot.lane.b32.xlu0 %v3795, 72
      %v3883 = vpop.permute.xlu0 %3882
      %3884 = vrot.lane.b32.xlu0 %v3796, 72
      %v3885 = vpop.permute.xlu0 %3884
      %3886 = vrot.lane.b32.xlu0 %v3797, 72
      %v3887 = vpop.permute.xlu0 %3886
      %3888 = vrot.lane.b32.xlu0 %v3798, 72
      %v3889 = vpop.permute.xlu0 %3888
      %3890 = vrot.lane.b32.xlu0 %v3799, 72
      %v3891 = vpop.permute.xlu0 %3890
      %3892 = vrot.lane.b32.xlu0 %v3800, 72
      %v3893 = vpop.permute.xlu0 %3892
      %3894 = vrot.lane.b32.xlu0 %v3801, 72
      %v3895 = vpop.permute.xlu0 %3894
      %3896 = vrot.lane.b32.xlu0 %v3802, 72
      %v3897 = vpop.permute.xlu0 %3896
      %3898 = vrot.lane.b32.xlu0 %v3803, 72
      %v3899 = vpop.permute.xlu0 %3898
      %vm3932 = vcmask 716352
      %3933 = vst.msk [vmem:[#allocation2] sm:$0xf] %vm3932, %v3837
      %3934 = vst.msk [vmem:[#allocation2 + $0x4] sm:$0xf] %vm3932, %v3839
      %3935 = vst.msk [vmem:[#allocation2 + $0x8] sm:$0xf] %vm3932, %v3841
      %3936 = vst.msk [vmem:[#allocation2 + $0xc] sm:$0xf] %vm3932, %v3843
      %3937 = vst.msk [vmem:[#allocation2 + $0x10] sm:$0xf] %vm3932, %v3845
      %3938 = vst.msk [vmem:[#allocation2 + $0x14] sm:$0xf] %vm3932, %v3847
      %3939 = vst.msk [vmem:[#allocation2 + $0x18] sm:$0xf] %vm3932, %v3849
      %3940 = vst.msk [vmem:[#allocation2 + $0x1c] sm:$0xf] %vm3932, %v3851
      %3941 = vst.msk [vmem:[#allocation2 + $0x20] sm:$0xf] %vm3932, %v3853
      %3942 = vst.msk [vmem:[#allocation2 + $0x24] sm:$0xf] %vm3932, %v3855
      %3943 = vst.msk [vmem:[#allocation2 + $0x28] sm:$0xf] %vm3932, %v3857
      %3944 = vst.msk [vmem:[#allocation2 + $0x2c] sm:$0xf] %vm3932, %v3859
      %3945 = vst.msk [vmem:[#allocation2 + $0x30] sm:$0xf] %vm3932, %v3861
      %3946 = vst.msk [vmem:[#allocation2 + $0x34] sm:$0xf] %vm3932, %v3863
      %3947 = vst.msk [vmem:[#allocation2 + $0x38] sm:$0xf] %vm3932, %v3865
      %3948 = vst.msk [vmem:[#allocation2 + $0x3c] sm:$0xf] %vm3932, %v3867
      %3949 = vst.msk [vmem:[#allocation2 + $0x40] sm:$0xf] %vm3932, %v3869
      %3950 = vst.msk [vmem:[#allocation2 + $0x44] sm:$0xf] %vm3932, %v3871
      %3951 = vst.msk [vmem:[#allocation2 + $0x48] sm:$0xf] %vm3932, %v3873
      %3952 = vst.msk [vmem:[#allocation2 + $0x4c] sm:$0xf] %vm3932, %v3875
      %3953 = vst.msk [vmem:[#allocation2 + $0x50] sm:$0xf] %vm3932, %v3877
      %3954 = vst.msk [vmem:[#allocation2 + $0x54] sm:$0xf] %vm3932, %v3879
      %3955 = vst.msk [vmem:[#allocation2 + $0x58] sm:$0xf] %vm3932, %v3881
      %3956 = vst.msk [vmem:[#allocation2 + $0x5c] sm:$0xf] %vm3932, %v3883
      %3957 = vst.msk [vmem:[#allocation2 + $0x60] sm:$0xf] %vm3932, %v3885
      %3958 = vst.msk [vmem:[#allocation2 + $0x64] sm:$0xf] %vm3932, %v3887
      %3959 = vst.msk [vmem:[#allocation2 + $0x68] sm:$0xf] %vm3932, %v3889
      %3960 = vst.msk [vmem:[#allocation2 + $0x6c] sm:$0xf] %vm3932, %v3891
      %3961 = vst.msk [vmem:[#allocation2 + $0x70] sm:$0xf] %vm3932, %v3893
      %3962 = vst.msk [vmem:[#allocation2 + $0x74] sm:$0xf] %vm3932, %v3895
      %3963 = vst.msk [vmem:[#allocation2 + $0x78] sm:$0xf] %vm3932, %v3897
      %3964 = vst.msk [vmem:[#allocation2 + $0x7c] sm:$0xf] %vm3932, %v3899
      %v3965 = vld [vmem:[#allocation2] sm:$0xf]
      %v3966 = vld [vmem:[#allocation2 + $0x4] sm:$0xf]
      %v3967 = vld [vmem:[#allocation2 + $0x8] sm:$0xf]
      %v3968 = vld [vmem:[#allocation2 + $0xc] sm:$0xf]
      %v3969 = vld [vmem:[#allocation2 + $0x10] sm:$0xf]
      %v3970 = vld [vmem:[#allocation2 + $0x14] sm:$0xf]
      %v3971 = vld [vmem:[#allocation2 + $0x18] sm:$0xf]
      %v3972 = vld [vmem:[#allocation2 + $0x1c] sm:$0xf]
      %v3973 = vld [vmem:[#allocation2 + $0x20] sm:$0xf]
      %v3974 = vld [vmem:[#allocation2 + $0x24] sm:$0xf]
      %v3975 = vld [vmem:[#allocation2 + $0x28] sm:$0xf]
      %v3976 = vld [vmem:[#allocation2 + $0x2c] sm:$0xf]
      %v3977 = vld [vmem:[#allocation2 + $0x30] sm:$0xf]
      %v3978 = vld [vmem:[#allocation2 + $0x34] sm:$0xf]
      %v3979 = vld [vmem:[#allocation2 + $0x38] sm:$0xf]
      %v3980 = vld [vmem:[#allocation2 + $0x3c] sm:$0xf]
      %v3981 = vld [vmem:[#allocation2 + $0x40] sm:$0xf]
      %v3982 = vld [vmem:[#allocation2 + $0x44] sm:$0xf]
      %v3983 = vld [vmem:[#allocation2 + $0x48] sm:$0xf]
      %v3984 = vld [vmem:[#allocation2 + $0x4c] sm:$0xf]
      %v3985 = vld [vmem:[#allocation2 + $0x50] sm:$0xf]
      %v3986 = vld [vmem:[#allocation2 + $0x54] sm:$0xf]
      %v3987 = vld [vmem:[#allocation2 + $0x58] sm:$0xf]
      %v3988 = vld [vmem:[#allocation2 + $0x5c] sm:$0xf]
      %v3989 = vld [vmem:[#allocation2 + $0x60] sm:$0xf]
      %v3990 = vld [vmem:[#allocation2 + $0x64] sm:$0xf]
      %v3991 = vld [vmem:[#allocation2 + $0x68] sm:$0xf]
      %v3992 = vld [vmem:[#allocation2 + $0x6c] sm:$0xf]
      %v3993 = vld [vmem:[#allocation2 + $0x70] sm:$0xf]
      %v3994 = vld [vmem:[#allocation2 + $0x74] sm:$0xf]
      %v3995 = vld [vmem:[#allocation2 + $0x78] sm:$0xf]
      %v3996 = vld [vmem:[#allocation2 + $0x7c] sm:$0xf]
      %v3997 = vld [vmem:[%s1] sm:$0xf]
      %v3998 = vld [vmem:[%s1 + $0x4] sm:$0xf]
      %v3999 = vld [vmem:[%s1 + $0x8] sm:$0xf]
      %v4000 = vld [vmem:[%s1 + $0xc] sm:$0xf]
      %v4001 = vld [vmem:[%s1 + $0x10] sm:$0xf]
      %v4002 = vld [vmem:[%s1 + $0x14] sm:$0xf]
      %v4003 = vld [vmem:[%s1 + $0x18] sm:$0xf]
      %v4004 = vld [vmem:[%s1 + $0x1c] sm:$0xf]
      %v4005 = vld [vmem:[%s1 + $0x20] sm:$0xf]
      %v4006 = vld [vmem:[%s1 + $0x24] sm:$0xf]
      %v4007 = vld [vmem:[%s1 + $0x28] sm:$0xf]
      %v4040 = vunpack.c.l.b16 %v3965
      %v4041 = vunpack.c.l.b16 %v3966
      %v4042 = vunpack.c.l.b16 %v3967
      %v4043 = vunpack.c.l.b16 %v3968
      %v4044 = vunpack.c.l.b16 %v3969
      %v4045 = vunpack.c.l.b16 %v3970
      %v4046 = vunpack.c.l.b16 %v3971
      %v4047 = vunpack.c.l.b16 %v3972
      %v4048 = vunpack.c.l.b16 %v3973
      %v4049 = vunpack.c.l.b16 %v3974
      %v4050 = vunpack.c.l.b16 %v3975
      %v4051 = vunpack.c.l.b16 %v3976
      %v4052 = vunpack.c.l.b16 %v3977
      %v4053 = vunpack.c.l.b16 %v3978
      %v4054 = vunpack.c.l.b16 %v3979
      %v4055 = vunpack.c.l.b16 %v3980
      %v4056 = vunpack.c.l.b16 %v3981
      %v4057 = vunpack.c.l.b16 %v3982
      %v4058 = vunpack.c.l.b16 %v3983
      %v4059 = vunpack.c.l.b16 %v3984
      %v4060 = vunpack.c.l.b16 %v3985
      %v4061 = vunpack.c.l.b16 %v3986
      %v4062 = vunpack.c.l.b16 %v3987
      %v4063 = vunpack.c.l.b16 %v3988
      %v4064 = vunpack.c.l.b16 %v3989
      %v4065 = vunpack.c.l.b16 %v3990
      %v4066 = vunpack.c.l.b16 %v3991
      %v4067 = vunpack.c.l.b16 %v3992
      %v4068 = vunpack.c.l.b16 %v3993
      %v4069 = vunpack.c.l.b16 %v3994
      %v4070 = vunpack.c.l.b16 %v3995
      %v4071 = vunpack.c.l.b16 %v3996
      %v4072 = vpack.c.b16 %v4041, %v4040
      %v4073 = vpack.c.b16 %v4043, %v4042
      %v4074 = vpack.c.b16 %v4045, %v4044
      %v4075 = vpack.c.b16 %v4047, %v4046
      %v4076 = vpack.c.b16 %v4049, %v4048
      %v4077 = vpack.c.b16 %v4051, %v4050
      %v4078 = vpack.c.b16 %v4053, %v4052
      %v4079 = vpack.c.b16 %v4055, %v4054
      %v4080 = vpack.c.b16 %v4057, %v4056
      %v4081 = vpack.c.b16 %v4059, %v4058
      %v4082 = vpack.c.b16 %v4061, %v4060
      %v4083 = vpack.c.b16 %v4063, %v4062
      %v4084 = vpack.c.b16 %v4065, %v4064
      %v4085 = vpack.c.b16 %v4067, %v4066
      %v4086 = vpack.c.b16 %v4069, %v4068
      %v4087 = vpack.c.b16 %v4071, %v4070
      %v4099 = vunpack.c.l.b16 %v3997
      %v4100 = vunpack.c.l.b16 %v3998
      %v4101 = vunpack.c.l.b16 %v3999
      %v4102 = vunpack.c.l.b16 %v4000
      %v4103 = vunpack.c.l.b16 %v4001
      %v4104 = vunpack.c.l.b16 %v4002
      %v4105 = vunpack.c.l.b16 %v4003
      %v4106 = vunpack.c.l.b16 %v4004
      %v4107 = vunpack.c.l.b16 %v4005
      %v4108 = vunpack.c.l.b16 %v4006
      %v4109 = vunpack.c.l.b16 %v4007
      %v4110 = vpack.c.b16 %v4100, %v4099
      %v4111 = vpack.c.b16 %v4102, %v4101
      %v4112 = vpack.c.b16 %v4104, %v4103
      %v4113 = vpack.c.b16 %v4106, %v4105
      %v4114 = vpack.c.b16 %v4108, %v4107
      %v4115 = vpack.c.b16 %v4109, %v4109
      %vm4121 = vcmask 719872
      %v4123 = vsel %vm4121, %v4072, 0
      %v4126 = vsel %vm4121, %v4073, 0
      %v4129 = vsel %vm4121, %v4074, 0
      %v4132 = vsel %vm4121, %v4075, 0
      %v4135 = vsel %vm4121, %v4076, 0
      %v4138 = vsel %vm4121, %v4077, 0
      %v4141 = vsel %vm4121, %v4078, 0
      %v4144 = vsel %vm4121, %v4079, 0
      %v4147 = vsel %vm4121, %v4080, 0
      %v4150 = vsel %vm4121, %v4081, 0
      %v4153 = vsel %vm4121, %v4082, 0
      %v4156 = vsel %vm4121, %v4083, 0
      %v4159 = vsel %vm4121, %v4084, 0
      %v4162 = vsel %vm4121, %v4085, 0
      %v4165 = vsel %vm4121, %v4086, 0
      %v4168 = vsel %vm4121, %v4087, 0
      %vm4170 = vcmask 1043456
      %v4172 = vsel %vm4170, %v4115, 0
      %4174 = vmatpush.bf16.msra.mxu0 0
      %4175 = vmatpush.bf16.msra.mxu0 0
      %4176 = vmatpush.bf16.msra.mxu0 %v4172
      %4177 = vmatpush.bf16.msra.mxu0 %v4114
      %4178 = vmatpush.bf16.msra.mxu0 %v4113
      %4179 = vmatpush.bf16.msra.mxu0 %v4112
      %4180 = vmatpush.bf16.msra.mxu0 %v4111
      %4181 = vmatpush.bf16.msra.mxu0 %v4110
      %4182 = vmatmul.bf16.gmra.mxu0 %v4123
      %v4183 = vpop.f32.mrf.mxu0
      %v4184 = vadd.f32 0.0, %v4183
      %v4185 = vpop.f32.mrf.mxu0
      %v4186 = vadd.f32 0.0, %v4185
      %4187 = vmatmul.bf16.gmra.mxu0 %v4126
      %v4188 = vpop.f32.mrf.mxu0
      %v4189 = vadd.f32 0.0, %v4188
      %v4190 = vpop.f32.mrf.mxu0
      %v4191 = vadd.f32 0.0, %v4190
      %4192 = vmatmul.bf16.gmra.mxu0 %v4129
      %v4193 = vpop.f32.mrf.mxu0
      %v4194 = vadd.f32 0.0, %v4193
      %v4195 = vpop.f32.mrf.mxu0
      %v4196 = vadd.f32 0.0, %v4195
      %4197 = vmatmul.bf16.gmra.mxu0 %v4132
      %v4198 = vpop.f32.mrf.mxu0
      %v4199 = vadd.f32 0.0, %v4198
      %v4200 = vpop.f32.mrf.mxu0
      %v4201 = vadd.f32 0.0, %v4200
      %4202 = vmatmul.bf16.gmra.mxu0 %v4135
      %v4203 = vpop.f32.mrf.mxu0
      %v4204 = vadd.f32 0.0, %v4203
      %v4205 = vpop.f32.mrf.mxu0
      %v4206 = vadd.f32 0.0, %v4205
      %4207 = vmatmul.bf16.gmra.mxu0 %v4138
      %v4208 = vpop.f32.mrf.mxu0
      %v4209 = vadd.f32 0.0, %v4208
      %v4210 = vpop.f32.mrf.mxu0
      %v4211 = vadd.f32 0.0, %v4210
      %4212 = vmatmul.bf16.gmra.mxu0 %v4141
      %v4213 = vpop.f32.mrf.mxu0
      %v4214 = vadd.f32 0.0, %v4213
      %v4215 = vpop.f32.mrf.mxu0
      %v4216 = vadd.f32 0.0, %v4215
      %4217 = vmatmul.bf16.gmra.mxu0 %v4144
      %v4218 = vpop.f32.mrf.mxu0
      %v4219 = vadd.f32 0.0, %v4218
      %v4220 = vpop.f32.mrf.mxu0
      %v4221 = vadd.f32 0.0, %v4220
      %4222 = vmatmul.bf16.gmra.mxu0 %v4147
      %v4223 = vpop.f32.mrf.mxu0
      %v4224 = vadd.f32 0.0, %v4223
      %v4225 = vpop.f32.mrf.mxu0
      %v4226 = vadd.f32 0.0, %v4225
      %4227 = vmatmul.bf16.gmra.mxu0 %v4150
      %v4228 = vpop.f32.mrf.mxu0
      %v4229 = vadd.f32 0.0, %v4228
      %v4230 = vpop.f32.mrf.mxu0
      %v4231 = vadd.f32 0.0, %v4230
      %4232 = vmatmul.bf16.gmra.mxu0 %v4153
      %v4233 = vpop.f32.mrf.mxu0
      %v4234 = vadd.f32 0.0, %v4233
      %v4235 = vpop.f32.mrf.mxu0
      %v4236 = vadd.f32 0.0, %v4235
      %4237 = vmatmul.bf16.gmra.mxu0 %v4156
      %v4238 = vpop.f32.mrf.mxu0
      %v4239 = vadd.f32 0.0, %v4238
      %v4240 = vpop.f32.mrf.mxu0
      %v4241 = vadd.f32 0.0, %v4240
      %4242 = vmatmul.bf16.gmra.mxu0 %v4159
      %v4243 = vpop.f32.mrf.mxu0
      %v4244 = vadd.f32 0.0, %v4243
      %v4245 = vpop.f32.mrf.mxu0
      %v4246 = vadd.f32 0.0, %v4245
      %4247 = vmatmul.bf16.gmra.mxu0 %v4162
      %v4248 = vpop.f32.mrf.mxu0
      %v4249 = vadd.f32 0.0, %v4248
      %v4250 = vpop.f32.mrf.mxu0
      %v4251 = vadd.f32 0.0, %v4250
      %4252 = vmatmul.bf16.gmra.mxu0 %v4165
      %v4253 = vpop.f32.mrf.mxu0
      %v4254 = vadd.f32 0.0, %v4253
      %v4255 = vpop.f32.mrf.mxu0
      %v4256 = vadd.f32 0.0, %v4255
      %4257 = vmatmul.bf16.gmra.mxu0 %v4168
      %v4258 = vpop.f32.mrf.mxu0
      %v4259 = vadd.f32 0.0, %v4258
      %v4260 = vpop.f32.mrf.mxu0
      %v4261 = vadd.f32 0.0, %v4260
      %4262 = vdwg.mxu0
      %vm4263 = vcmask 64512
      %4264 = vst.msk [vmem:[%s172] sm:$0xff] %vm4263, %v4184
      %4265 = vst.msk [vmem:[%s172 + $0x8] sm:$0xff] %vm4263, %v4186
      %4266 = vst.msk [vmem:[%s172 + $0x10] sm:$0xff] %vm4263, %v4189
      %4267 = vst.msk [vmem:[%s172 + $0x18] sm:$0xff] %vm4263, %v4191
      %4268 = vst.msk [vmem:[%s172 + $0x20] sm:$0xff] %vm4263, %v4194
      %4269 = vst.msk [vmem:[%s172 + $0x28] sm:$0xff] %vm4263, %v4196
      %4270 = vst.msk [vmem:[%s172 + $0x30] sm:$0xff] %vm4263, %v4199
      %4271 = vst.msk [vmem:[%s172 + $0x38] sm:$0xff] %vm4263, %v4201
      %4272 = vst.msk [vmem:[%s172 + $0x40] sm:$0xff] %vm4263, %v4204
      %4273 = vst.msk [vmem:[%s172 + $0x48] sm:$0xff] %vm4263, %v4206
      %4274 = vst.msk [vmem:[%s172 + $0x50] sm:$0xff] %vm4263, %v4209
      %4275 = vst.msk [vmem:[%s172 + $0x58] sm:$0xff] %vm4263, %v4211
      %4276 = vst.msk [vmem:[%s172 + $0x60] sm:$0xff] %vm4263, %v4214
      %4277 = vst.msk [vmem:[%s172 + $0x68] sm:$0xff] %vm4263, %v4216
      %4278 = vst.msk [vmem:[%s172 + $0x70] sm:$0xff] %vm4263, %v4219
      %4279 = vst.msk [vmem:[%s172 + $0x78] sm:$0xff] %vm4263, %v4221
      %4280 = vst.msk [vmem:[%s172 + $0x80] sm:$0xff] %vm4263, %v4224
      %4281 = vst.msk [vmem:[%s172 + $0x88] sm:$0xff] %vm4263, %v4226
      %4282 = vst.msk [vmem:[%s172 + $0x90] sm:$0xff] %vm4263, %v4229
      %4283 = vst.msk [vmem:[%s172 + $0x98] sm:$0xff] %vm4263, %v4231
      %4284 = vst.msk [vmem:[%s172 + $0xa0] sm:$0xff] %vm4263, %v4234
      %4285 = vst.msk [vmem:[%s172 + $0xa8] sm:$0xff] %vm4263, %v4236
      %4286 = vst.msk [vmem:[%s172 + $0xb0] sm:$0xff] %vm4263, %v4239
      %4287 = vst.msk [vmem:[%s172 + $0xb8] sm:$0xff] %vm4263, %v4241
      %4288 = vst.msk [vmem:[%s172 + $0xc0] sm:$0xff] %vm4263, %v4244
      %4289 = vst.msk [vmem:[%s172 + $0xc8] sm:$0xff] %vm4263, %v4246
      %4290 = vst.msk [vmem:[%s172 + $0xd0] sm:$0xff] %vm4263, %v4249
      %4291 = vst.msk [vmem:[%s172 + $0xd8] sm:$0xff] %vm4263, %v4251
      %4292 = vst.msk [vmem:[%s172 + $0xe0] sm:$0xff] %vm4263, %v4254
      %4293 = vst.msk [vmem:[%s172 + $0xe8] sm:$0xff] %vm4263, %v4256
      %4294 = vst.msk [vmem:[%s172 + $0xf0] sm:$0xff] %vm4263, %v4259
      %4295 = vst.msk [vmem:[%s172 + $0xf8] sm:$0xff] %vm4263, %v4261
      %s4296 = smul.u32 32, %s14
      %p4297 = scmp.lt.s32.totalorder %s4296, 63
      %s4298 = scalar_select %p4297, %s4296, 63
      %s4299 = smul.addr %s4298, 8
      %s4300 = scalar_lea.vmem %s3, %s4299
      // Predicated region
      $region33: #{decoupled_forward.5} parent=31 // pred_check
        %p4301 = pneg %p100
      $region34: #{decoupled_forward.5} parent=31 // pred_check_branch
        %4303 = sbr.rel (%p4301) target = $region36
      $region35: #{decoupled_forward.5} parent=31 // pred_region
        %s4304 = smul.u32 32, %s14
      $region36: #{decoupled_forward.5} parent=31 // pred_fallthru
        _
    $region32: #{decoupled_forward.5} parent=5 // pred_fallthru
      _
    %p4305 = scmp.le.s32.totalorder 2, %s9
    // Predicated region
    $region37: #{decoupled_forward.5} parent=5 // pred_check
      %p4306 = pneg %p4305
    $region38: #{decoupled_forward.5} parent=5 // pred_check_branch
      %4308 = sbr.rel (%p4306) target = $region40
    $region39: #{decoupled_forward.5} parent=5 // pred_region
      %s4309 = ssub.s32 %s9, 2
      // Predicated region
      $region41: #{decoupled_forward.5} parent=39 // pred_check
        %p4310 = pneg %p106
      $region42: #{decoupled_forward.5} parent=39 // pred_check_branch
        %4312 = sbr.rel (%p4310) target = $region44
      $region43: #{decoupled_forward.5} parent=39 // pred_region
        %s4313 = smul.u32 32, %s15
        %p4314 = scmp.lt.s32.totalorder %s4313, 63
        %s4315 = scalar_select %p4314, %s4313, 63
        %s4316 = smul.addr %s4315, 8
        %s4317 = scalar_lea.vmem %s3, %s4316
      $region44: #{decoupled_forward.5} parent=39 // pred_fallthru
        _
    $region40: #{decoupled_forward.5} parent=5 // pred_fallthru
      _
  $region6: #{decoupled_forward.5} parent=0 // loop_footer
    %s13 = sadd.s32 1, %s9
  $region7: #{decoupled_forward.5} parent=0 // loop_footer_branch
    %8 = sbr.rel target = $region3
  $region8: #{decoupled_forward.5} parent=0 // loop_exit
    _

</llo_original>
